<compile_context>
chip_gen: v5e
topology: v5e:2x2
jax: 0.10.0
libtpu: 0.0.40
codegen_flags: <defaults>
</compile_context>

<pallas_src>
import functools

import numpy as np
import jax
import jax.numpy as jnp
from jax import lax
from jax.experimental import pallas as pl
from jax.experimental.pallas import tpu as pltpu

# ---------------- small synthetic BERT config ----------------
VOCAB = 100
MAX_POS = 64
TYPE_VOCAB = 2
HIDDEN = 32
N_HEADS = 2
HEAD_DIM = HIDDEN // N_HEADS
INTERMEDIATE = 64
N_LAYERS = 2
NUM_LABELS = 5
LN_EPS = 1e-12
VOCAB_PAD = ((VOCAB + 7) // 8) * 8          # pad one-hot contraction dim to a sublane multiple
BIAS_LANES = 3 * HIDDEN                     # widest bias row (bqkv = 96 lanes)


# ---------------- fully fused kernel: embed -> encoder -> hidden2tag -> CRF Viterbi ----------------
def _bertcrf_kernel(ids_ref, mask_ref, abias_ref, emb_ref, wh_ref, w2_ref,
                    bvec_ref, tag_ref, tags_ref, *, B, S):
    H, L, dH, I = HIDDEN, NUM_LABELS, HEAD_DIM, INTERMEDIATE
    BS = B * S
    f32 = jnp.float32

    def layer_norm(h, g, b):
        mu = jnp.mean(h, axis=-1, keepdims=True)
        var = jnp.mean((h - mu) ** 2, axis=-1, keepdims=True)
        return (h - mu) * lax.rsqrt(var + LN_EPS) * g + b

    maskv = mask_ref[...]                      # (B, S) float {0,1}
    attn_bias = abias_ref[...]                 # (BS, BS) block-diagonal additive bias (hoisted)

    # ---- fused embedding: one-hot MXU gather + pos/type add + LayerNorm ----
    emb = emb_ref[...]                         # (VOCAB_PAD + BS + 2, H)
    word_tab = emb[0:VOCAB_PAD, :]             # (VOCAB_PAD, H)
    pt_rows = emb[VOCAB_PAD:VOCAB_PAD + BS, :]         # (BS, H) pos+type, time-major rows
    eg = emb[VOCAB_PAD + BS:VOCAB_PAD + BS + 1, :]     # (1, H)
    eb = emb[VOCAB_PAD + BS + 1:VOCAB_PAD + BS + 2, :]

    ids = ids_ref[...]                         # (BS, 1) int32, time-major (row = t*B + b)
    onehot = (ids == lax.broadcasted_iota(jnp.int32, (BS, VOCAB_PAD), 1)).astype(f32)
    x = jnp.dot(onehot, word_tab, preferred_element_type=f32) + pt_rows
    x = layer_norm(x, eg, eb)                  # (BS, H)

    scale = 1.0 / float(dH) ** 0.5

    # ---- transformer encoder, VMEM-resident, fused QKV, batch-combined attention ----
    for li in range(N_LAYERS):
        wl = wh_ref[li]                        # (H, 3H + H + I) packed weights
        bb = bvec_ref[li]                      # (8, 96)  packed biases / LN params
        wqkv = wl[:, 0:3 * H]
        wo = wl[:, 3 * H:4 * H]
        w1 = wl[:, 4 * H:4 * H + I]
        w2 = w2_ref[li]                        # (I, H)
        bqkv = bb[0:1, 0:3 * H]
        bo = bb[1:2, 0:H]
        ln1g = bb[2:3, 0:H]
        ln1b = bb[3:4, 0:H]
        b1 = bb[4:5, 0:I]
        b2 = bb[5:6, 0:H]
        ln2g = bb[6:7, 0:H]
        ln2b = bb[7:8, 0:H]

        qkv = jnp.dot(x, wqkv, preferred_element_type=f32) + bqkv      # (BS, 3H)
        heads = []
        for h in range(N_HEADS):
            c0 = h * dH
            q = qkv[:, c0:c0 + dH]                                     # (BS, dH)
            k = qkv[:, H + c0:H + c0 + dH]
            v = qkv[:, 2 * H + c0:2 * H + c0 + dH]
            s = jnp.einsum("qd,kd->qk", q, k,
                           preferred_element_type=f32) * scale         # (BS, BS)
            s = s + attn_bias                                          # block-diag + key mask
            s = s - jnp.max(s, axis=-1, keepdims=True)
            p = jnp.exp(s)
            p = p / jnp.sum(p, axis=-1, keepdims=True)
            heads.append(jnp.dot(p, v, preferred_element_type=f32))    # (BS, dH)
        ctx = jnp.concatenate(heads, axis=-1)                          # (BS, H)

        attn_out = jnp.dot(ctx, wo, preferred_element_type=f32) + bo
        x = layer_norm(attn_out + x, ln1g, ln1b)

        h1 = jnp.dot(x, w1, preferred_element_type=f32) + b1
        # TODO(synk): HF BERT uses exact erf-GELU; tanh approximation used for TPU lowering.
        h1 = jax.nn.gelu(h1, approximate=True)
        ff = jnp.dot(h1, w2, preferred_element_type=f32) + b2
        x = layer_norm(ff + x, ln2g, ln2b)

    # ---- hidden2tag (emissions stay in VMEM, time-major rows) ----
    tb = tag_ref[...]                          # (H + 3 + L, L)
    w_tag = tb[0:H, :]
    b_tag = tb[H:H + 1, :]
    start = tb[H + 1:H + 2, :]
    end = tb[H + 2:H + 3, :]
    trans = tb[H + 3:H + 3 + L, :]             # trans[i, j]: tag i -> tag j

    em = jnp.dot(x, w_tag, preferred_element_type=f32) + b_tag         # (BS, L)

    # ---- CRF Viterbi forward DP (unrolled over time; S is small).  Each timestep reads a
    #      contiguous (B, L) sublane slice of the time-major emissions — no concats. ----
    score = start + em[0:B, :]                 # (B, L)
    bps = [None] * S                           # backpointers live as vreg values (no scratch)
    for t in range(1, S):
        em_t = em[t * B:(t + 1) * B, :]        # (B, L)
        m_t = maskv[:, t:t + 1]                # (B, 1)
        best = score[:, 0:1] + trans[0:1, :]   # running max over previous tags
        argm = jnp.zeros((B, L), jnp.int32)
        for i in range(1, L):
            cand = score[:, i:i + 1] + trans[i:i + 1, :]
            upd = cand > best                  # strict > keeps first (lowest) argmax on ties
            best = jnp.where(upd, cand, best)
            argm = jnp.where(upd, jnp.int32(i), argm)
        score = jnp.where(m_t > 0.5, best + em_t, score)
        bps[t] = argm

    final = score + end                        # (B, L)

    # ---- backtrack, fully vectorized over the batch (no scalar loops, no dynamic control) ----
    lane_iota = lax.broadcasted_iota(jnp.int32, (B, L), 1)
    mx = jnp.max(final, axis=-1, keepdims=True)
    tag_last = jnp.min(jnp.where(final == mx, lane_iota, L),
                       axis=-1, keepdims=True).astype(jnp.int32)       # (B, 1)

    cols = [None] * S
    cur = jnp.zeros((B, 1), jnp.int32)
    neg1 = jnp.full((B, 1), -1, jnp.int32)
    for t in range(S - 1, -1, -1):
        m_t = maskv[:, t:t + 1]
        if t < S - 1:
            m_next = maskv[:, t + 1:t + 2]
            prev = jnp.sum(jnp.where(lane_iota == cur, bps[t + 1], 0),
                           axis=-1, keepdims=True).astype(jnp.int32)   # bp[t+1][b, cur]
        else:
            m_next = jnp.zeros((B, 1), f32)
            prev = tag_last                    # unused (is_within impossible at t = S-1)
        is_last = (m_t > 0.5) & (m_next <= 0.5)    # last valid position of this sequence
        is_within = (m_t > 0.5) & (m_next > 0.5)   # interior valid position
        tag_t = jnp.where(is_last, tag_last, jnp.where(is_within, prev, neg1))
        cur = jnp.where(m_t > 0.5, tag_t, cur)
        cols[t] = tag_t

    tags_ref[...] = jnp.concatenate(cols, axis=1)   # (B, S) int32; invalid positions = -1


# ---------------- parameters (QKV pre-fused, per-layer params stacked) ----------------
def init_params(key):
    def nrm(k, shape):
        return (0.02 * jax.random.normal(k, shape)).astype(jnp.float32)

    ks = jax.random.split(key, 11)
    return {
        "word_emb": nrm(ks[0], (VOCAB, HIDDEN)),
        "pos_emb": nrm(ks[1], (MAX_POS, HIDDEN)),
        "type_emb": nrm(ks[2], (TYPE_VOCAB, HIDDEN)),
        "emb_ln_g": jnp.ones((HIDDEN,), jnp.float32),
        "emb_ln_b": jnp.zeros((HIDDEN,), jnp.float32),
        "wqkv": nrm(ks[3], (N_LAYERS, HIDDEN, 3 * HIDDEN)),
        "bqkv": jnp.zeros((N_LAYERS, 3 * HIDDEN), jnp.float32),
        "wo": nrm(ks[4], (N_LAYERS, HIDDEN, HIDDEN)),
        "bo": jnp.zeros((N_LAYERS, HIDDEN), jnp.float32),
        "ln1_g": jnp.ones((N_LAYERS, HIDDEN), jnp.float32),
        "ln1_b": jnp.zeros((N_LAYERS, HIDDEN), jnp.float32),
        "w1": nrm(ks[5], (N_LAYERS, HIDDEN, INTERMEDIATE)),
        "b1": jnp.zeros((N_LAYERS, INTERMEDIATE), jnp.float32),
        "w2": nrm(ks[6], (N_LAYERS, INTERMEDIATE, HIDDEN)),
        "b2": jnp.zeros((N_LAYERS, HIDDEN), jnp.float32),
        "ln2_g": jnp.ones((N_LAYERS, HIDDEN), jnp.float32),
        "ln2_b": jnp.zeros((N_LAYERS, HIDDEN), jnp.float32),
        "w_tag": nrm(ks[7], (HIDDEN, NUM_LABELS)),
        "b_tag": jnp.zeros((NUM_LABELS,), jnp.float32),
        "crf_start": (0.2 * jax.random.uniform(ks[8], (NUM_LABELS,)) - 0.1).astype(jnp.float32),
        "crf_end": (0.2 * jax.random.uniform(ks[9], (NUM_LABELS,)) - 0.1).astype(jnp.float32),
        "crf_trans": (0.2 * jax.random.uniform(ks[10], (NUM_LABELS, NUM_LABELS)) - 0.1).astype(jnp.float32),
    }


# ---------------- forward: pack operands (few DMAs) -> single fused Pallas kernel ----------------
def bertcrf_forward(params, input_ids, attention_mask):
    B, S = input_ids.shape
    H, L, NL, I = HIDDEN, NUM_LABELS, N_LAYERS, INTERMEDIATE
    BS = B * S

    # time-major token ids (row = t*B + b) so Viterbi reads contiguous per-timestep slices
    ids_tm = input_ids.T.reshape(BS, 1).astype(jnp.int32)
    mask_f = attention_mask.astype(jnp.float32)                      # (B, S)

    # block-diagonal attention bias for the batch-combined (BS x BS) per-head attention:
    # 0 where query and key belong to the same batch element AND the key is unmasked, else -1e9
    r = jnp.arange(BS)
    bcol = r % B
    tcol = r // B
    key_ok = attention_mask[bcol, tcol].astype(jnp.float32)          # (BS,)
    same_b = bcol[None, :] == bcol[:, None]
    attn_bias = jnp.where(same_b, (1.0 - key_ok)[None, :] * -1e9, -1e9).astype(jnp.float32)

    # ---- pack the small operands into a handful of blobs (22 DMAs -> 8) ----
    word_pad = jnp.zeros((VOCAB_PAD, H), jnp.float32).at[:VOCAB].set(params["word_emb"])
    pt = params["pos_emb"][:S] + params["type_emb"][0]               # (S, H)
    pt_rows = jnp.repeat(pt, B, axis=0)                              # (BS, H), time-major
    emb_blob = jnp.concatenate(
        [word_pad, pt_rows,
         params["emb_ln_g"].reshape(1, H), params["emb_ln_b"].reshape(1, H)], axis=0)

    w_h_blob = jnp.concatenate([params["wqkv"], params["wo"], params["w1"]], axis=2)  # (NL,H,192)

    def row96(v):
        return jnp.pad(v, ((0, 0), (0, BIAS_LANES - v.shape[1])))[:, None, :]
    bias_blob = jnp.concatenate(
        [row96(params["bqkv"]), row96(params["bo"]),
         row96(params["ln1_g"]), row96(params["ln1_b"]),
         row96(params["b1"]), row96(params["b2"]),
         row96(params["ln2_g"]), row96(params["ln2_b"])], axis=1)    # (NL, 8, 96)

    tag_blob = jnp.concatenate(
        [params["w_tag"],
         params["b_tag"].reshape(1, L),
         params["crf_start"].reshape(1, L),
         params["crf_end"].reshape(1, L),
         params["crf_trans"]], axis=0)                               # (H+3+L, L)

    vmem = pl.BlockSpec(memory_space=pltpu.MemorySpace.VMEM)

    tags = pl.pallas_call(
        functools.partial(_bertcrf_kernel, B=B, S=S),
        out_shape=jax.ShapeDtypeStruct((B, S), jnp.int32),
        in_specs=[vmem] * 8,
        out_specs=vmem,
    )(ids_tm, mask_f, attn_bias, emb_blob, w_h_blob, params["w2"], bias_blob, tag_blob)
    # tags: (B, S) int32; positions beyond the valid sequence length are -1
    return tags


if __name__ == "__main__":
    key = jax.random.PRNGKey(0)
    pkey, ikey = jax.random.split(key)
    params = init_params(pkey)

    B, S = 2, 8
    input_ids = jax.random.randint(ikey, (B, S), 0, VOCAB, dtype=jnp.int32)
    attention_mask = jnp.array([[1, 1, 1, 1, 1, 1, 1, 1],
                                [1, 1, 1, 1, 1, 1, 0, 0]], dtype=jnp.int32)

    tags = jax.jit(bertcrf_forward)(params, input_ids, attention_mask)
    tags = jax.block_until_ready(tags)

    assert tags.shape == (B, S) and tags.dtype == jnp.int32
    tags_np = np.asarray(tags)
    mask_np = np.asarray(attention_mask)
    assert (tags_np[mask_np == 0] == -1).all()
    valid = tags_np[mask_np == 1]
    assert ((valid >= 0) & (valid < NUM_LABELS)).all()
    print("KERNEL_OK")
</pallas_src>

<mosaic_0001>
module attributes {stable_mosaic.version = 11 : i64} {
  func.func @_bertcrf_kernel(%arg0: memref<16x1xi32, #tpu.memory_space<vmem>>, %arg1: memref<2x8xf32, #tpu.memory_space<vmem>>, %arg2: memref<16x16xf32, #tpu.memory_space<vmem>>, %arg3: memref<122x32xf32, #tpu.memory_space<vmem>>, %arg4: memref<2x32x192xf32, #tpu.memory_space<vmem>>, %arg5: memref<2x64x32xf32, #tpu.memory_space<vmem>>, %arg6: memref<2x8x96xf32, #tpu.memory_space<vmem>>, %arg7: memref<40x5xf32, #tpu.memory_space<vmem>>, %arg8: memref<2x8xi32, #tpu.memory_space<vmem>>) attributes {dimension_semantics = [], scalar_prefetch = 0 : i64, scratch_operands = 0 : i64, tpu.core_type = #tpu.core_type<tc>} {
    %c0 = arith.constant 0 : index
    %c0_0 = arith.constant 0 : index
    %0 = vector.load %arg1[%c0, %c0_0] : memref<2x8xf32, #tpu.memory_space<vmem>>, vector<2x8xf32>
    %c0_1 = arith.constant 0 : index
    %c0_2 = arith.constant 0 : index
    %1 = vector.load %arg2[%c0_1, %c0_2] : memref<16x16xf32, #tpu.memory_space<vmem>>, vector<16x16xf32>
    %c0_3 = arith.constant 0 : index
    %c0_4 = arith.constant 0 : index
    %2 = vector.load %arg3[%c0_3, %c0_4] : memref<122x32xf32, #tpu.memory_space<vmem>>, vector<122x32xf32>
    %3 = vector.extract_strided_slice %2 {offsets = [0, 0], sizes = [104, 32], strides = [1, 1]} : vector<122x32xf32> to vector<104x32xf32>
    %4 = vector.extract_strided_slice %2 {offsets = [104, 0], sizes = [16, 32], strides = [1, 1]} : vector<122x32xf32> to vector<16x32xf32>
    %5 = vector.extract_strided_slice %2 {offsets = [120, 0], sizes = [1, 32], strides = [1, 1]} : vector<122x32xf32> to vector<1x32xf32>
    %6 = vector.extract_strided_slice %2 {offsets = [121, 0], sizes = [1, 32], strides = [1, 1]} : vector<122x32xf32> to vector<1x32xf32>
    %c0_5 = arith.constant 0 : index
    %c0_6 = arith.constant 0 : index
    %7 = vector.load %arg0[%c0_5, %c0_6] : memref<16x1xi32, #tpu.memory_space<vmem>>, vector<16x1xi32>
    %8 = tpu.iota {dimensions = array<i32: 1>} : vector<16x104xi32>
    %9 = vector.broadcast %7 : vector<16x1xi32> to vector<16x104xi32>
    %10 = arith.cmpi eq, %9, %8 : vector<16x104xi32>
    %11 = arith.extui %10 : vector<16x104xi1> to vector<16x104xi32>
    %12 = arith.sitofp %11 : vector<16x104xi32> to vector<16x104xf32>
    %cst = arith.constant dense<0.000000e+00> : vector<16x32xf32>
    %13 = tpu.matmul %12, %3, %cst {dimension_numbers = #tpu.dot_dimension_numbers<[1], [0], [0], [1], [0, 0, 1, 1], [], []>} : vector<16x104xf32>, vector<104x32xf32>, vector<16x32xf32> -> vector<16x32xf32>
    %14 = arith.addf %13, %4 : vector<16x32xf32>
    %cst_7 = arith.constant dense<0.000000e+00> : vector<16xf32>
    %15 = vector.multi_reduction <add>, %14, %cst_7 [1] : vector<16x32xf32> to vector<16xf32>
    %16 = vector.shape_cast %15 : vector<16xf32> to vector<16x1xf32>
    %cst_8 = arith.constant 3.200000e+01 : f32
    %17 = vector.broadcast %cst_8 : f32 to vector<16x1xf32>
    %18 = arith.divf %16, %17 : vector<16x1xf32>
    %19 = vector.broadcast %18 : vector<16x1xf32> to vector<16x32xf32>
    %20 = arith.subf %14, %19 : vector<16x32xf32>
    %21 = arith.mulf %20, %20 : vector<16x32xf32>
    %cst_9 = arith.constant dense<0.000000e+00> : vector<16xf32>
    %22 = vector.multi_reduction <add>, %21, %cst_9 [1] : vector<16x32xf32> to vector<16xf32>
    %23 = vector.shape_cast %22 : vector<16xf32> to vector<16x1xf32>
    %cst_10 = arith.constant 3.200000e+01 : f32
    %24 = vector.broadcast %cst_10 : f32 to vector<16x1xf32>
    %25 = arith.divf %23, %24 : vector<16x1xf32>
    %26 = vector.broadcast %18 : vector<16x1xf32> to vector<16x32xf32>
    %27 = arith.subf %14, %26 : vector<16x32xf32>
    %cst_11 = arith.constant 9.99999996E-13 : f32
    %28 = vector.broadcast %cst_11 : f32 to vector<16x1xf32>
    %29 = arith.addf %25, %28 : vector<16x1xf32>
    %30 = math.rsqrt %29 : vector<16x1xf32>
    %31 = vector.broadcast %30 : vector<16x1xf32> to vector<16x32xf32>
    %32 = arith.mulf %27, %31 : vector<16x32xf32>
    %33 = vector.broadcast %5 : vector<1x32xf32> to vector<16x32xf32>
    %34 = arith.mulf %32, %33 : vector<16x32xf32>
    %35 = vector.broadcast %6 : vector<1x32xf32> to vector<16x32xf32>
    %36 = arith.addf %34, %35 : vector<16x32xf32>
    %c0_12 = arith.constant 0 : index
    %c0_13 = arith.constant 0 : index
    %c0_14 = arith.constant 0 : index
    %37 = vector.load %arg4[%c0_12, %c0_13, %c0_14] : memref<2x32x192xf32, #tpu.memory_space<vmem>>, vector<1x32x192xf32>
    %38 = vector.shape_cast %37 : vector<1x32x192xf32> to vector<32x192xf32>
    %c0_15 = arith.constant 0 : index
    %c0_16 = arith.constant 0 : index
    %c0_17 = arith.constant 0 : index
    %39 = vector.load %arg6[%c0_15, %c0_16, %c0_17] : memref<2x8x96xf32, #tpu.memory_space<vmem>>, vector<1x8x96xf32>
    %40 = vector.shape_cast %39 : vector<1x8x96xf32> to vector<8x96xf32>
    %41 = vector.extract_strided_slice %38 {offsets = [0, 0], sizes = [32, 96], strides = [1, 1]} : vector<32x192xf32> to vector<32x96xf32>
    %42 = vector.extract_strided_slice %38 {offsets = [0, 96], sizes = [32, 32], strides = [1, 1]} : vector<32x192xf32> to vector<32x32xf32>
    %43 = vector.extract_strided_slice %38 {offsets = [0, 128], sizes = [32, 64], strides = [1, 1]} : vector<32x192xf32> to vector<32x64xf32>
    %c0_18 = arith.constant 0 : index
    %c0_19 = arith.constant 0 : index
    %c0_20 = arith.constant 0 : index
    %44 = vector.load %arg5[%c0_18, %c0_19, %c0_20] : memref<2x64x32xf32, #tpu.memory_space<vmem>>, vector<1x64x32xf32>
    %45 = vector.shape_cast %44 : vector<1x64x32xf32> to vector<64x32xf32>
    %46 = vector.extract_strided_slice %40 {offsets = [0, 0], sizes = [1, 96], strides = [1, 1]} : vector<8x96xf32> to vector<1x96xf32>
    %47 = vector.extract_strided_slice %40 {offsets = [1, 0], sizes = [1, 32], strides = [1, 1]} : vector<8x96xf32> to vector<1x32xf32>
    %48 = vector.extract_strided_slice %40 {offsets = [2, 0], sizes = [1, 32], strides = [1, 1]} : vector<8x96xf32> to vector<1x32xf32>
    %49 = vector.extract_strided_slice %40 {offsets = [3, 0], sizes = [1, 32], strides = [1, 1]} : vector<8x96xf32> to vector<1x32xf32>
    %50 = vector.extract_strided_slice %40 {offsets = [4, 0], sizes = [1, 64], strides = [1, 1]} : vector<8x96xf32> to vector<1x64xf32>
    %51 = vector.extract_strided_slice %40 {offsets = [5, 0], sizes = [1, 32], strides = [1, 1]} : vector<8x96xf32> to vector<1x32xf32>
    %52 = vector.extract_strided_slice %40 {offsets = [6, 0], sizes = [1, 32], strides = [1, 1]} : vector<8x96xf32> to vector<1x32xf32>
    %53 = vector.extract_strided_slice %40 {offsets = [7, 0], sizes = [1, 32], strides = [1, 1]} : vector<8x96xf32> to vector<1x32xf32>
    %cst_21 = arith.constant dense<0.000000e+00> : vector<16x96xf32>
    %54 = tpu.matmul %36, %41, %cst_21 {dimension_numbers = #tpu.dot_dimension_numbers<[1], [0], [0], [1], [0, 0, 1, 1], [], []>} : vector<16x32xf32>, vector<32x96xf32>, vector<16x96xf32> -> vector<16x96xf32>
    %55 = vector.broadcast %46 : vector<1x96xf32> to vector<16x96xf32>
    %56 = arith.addf %54, %55 : vector<16x96xf32>
    %57 = vector.extract_strided_slice %56 {offsets = [0, 0], sizes = [16, 16], strides = [1, 1]} : vector<16x96xf32> to vector<16x16xf32>
    %58 = vector.extract_strided_slice %56 {offsets = [0, 32], sizes = [16, 16], strides = [1, 1]} : vector<16x96xf32> to vector<16x16xf32>
    %59 = vector.extract_strided_slice %56 {offsets = [0, 64], sizes = [16, 16], strides = [1, 1]} : vector<16x96xf32> to vector<16x16xf32>
    "tpu.trace_start"() <{level = 10 : i32, message = "qd,kd->qk"}> : () -> ()
    %cst_22 = arith.constant dense<0.000000e+00> : vector<16x16xf32>
    %60 = tpu.matmul %57, %58, %cst_22 {dimension_numbers = #tpu.dot_dimension_numbers<[1], [1], [0], [0], [0, 0, 1, 0], [], []>} : vector<16x16xf32>, vector<16x16xf32>, vector<16x16xf32> -> vector<16x16xf32>
    "tpu.trace_stop"() : () -> ()
    %cst_23 = arith.constant 2.500000e-01 : f32
    %61 = vector.broadcast %cst_23 : f32 to vector<16x16xf32>
    %62 = arith.mulf %60, %61 : vector<16x16xf32>
    %63 = arith.addf %62, %1 : vector<16x16xf32>
    %cst_24 = arith.constant dense<0xFF800000> : vector<16xf32>
    %64 = vector.multi_reduction <maximumf>, %63, %cst_24 [1] : vector<16x16xf32> to vector<16xf32>
    %65 = vector.shape_cast %64 : vector<16xf32> to vector<16x1xf32>
    %66 = vector.broadcast %65 : vector<16x1xf32> to vector<16x16xf32>
    %67 = arith.subf %63, %66 : vector<16x16xf32>
    %68 = math.exp %67 : vector<16x16xf32>
    %cst_25 = arith.constant dense<0.000000e+00> : vector<16xf32>
    %69 = vector.multi_reduction <add>, %68, %cst_25 [1] : vector<16x16xf32> to vector<16xf32>
    %70 = vector.shape_cast %69 : vector<16xf32> to vector<16x1xf32>
    %71 = vector.broadcast %70 : vector<16x1xf32> to vector<16x16xf32>
    %72 = arith.divf %68, %71 : vector<16x16xf32>
    %cst_26 = arith.constant dense<0.000000e+00> : vector<16x16xf32>
    %73 = tpu.matmul %72, %59, %cst_26 {dimension_numbers = #tpu.dot_dimension_numbers<[1], [0], [0], [1], [0, 0, 1, 1], [], []>} : vector<16x16xf32>, vector<16x16xf32>, vector<16x16xf32> -> vector<16x16xf32>
    %74 = vector.extract_strided_slice %56 {offsets = [0, 16], sizes = [16, 16], strides = [1, 1]} : vector<16x96xf32> to vector<16x16xf32>
    %75 = vector.extract_strided_slice %56 {offsets = [0, 48], sizes = [16, 16], strides = [1, 1]} : vector<16x96xf32> to vector<16x16xf32>
    %76 = vector.extract_strided_slice %56 {offsets = [0, 80], sizes = [16, 16], strides = [1, 1]} : vector<16x96xf32> to vector<16x16xf32>
    "tpu.trace_start"() <{level = 10 : i32, message = "qd,kd->qk"}> : () -> ()
    %cst_27 = arith.constant dense<0.000000e+00> : vector<16x16xf32>
    %77 = tpu.matmul %74, %75, %cst_27 {dimension_numbers = #tpu.dot_dimension_numbers<[1], [1], [0], [0], [0, 0, 1, 0], [], []>} : vector<16x16xf32>, vector<16x16xf32>, vector<16x16xf32> -> vector<16x16xf32>
    "tpu.trace_stop"() : () -> ()
    %cst_28 = arith.constant 2.500000e-01 : f32
    %78 = vector.broadcast %cst_28 : f32 to vector<16x16xf32>
    %79 = arith.mulf %77, %78 : vector<16x16xf32>
    %80 = arith.addf %79, %1 : vector<16x16xf32>
    %cst_29 = arith.constant dense<0xFF800000> : vector<16xf32>
    %81 = vector.multi_reduction <maximumf>, %80, %cst_29 [1] : vector<16x16xf32> to vector<16xf32>
    %82 = vector.shape_cast %81 : vector<16xf32> to vector<16x1xf32>
    %83 = vector.broadcast %82 : vector<16x1xf32> to vector<16x16xf32>
    %84 = arith.subf %80, %83 : vector<16x16xf32>
    %85 = math.exp %84 : vector<16x16xf32>
    %cst_30 = arith.constant dense<0.000000e+00> : vector<16xf32>
    %86 = vector.multi_reduction <add>, %85, %cst_30 [1] : vector<16x16xf32> to vector<16xf32>
    %87 = vector.shape_cast %86 : vector<16xf32> to vector<16x1xf32>
    %88 = vector.broadcast %87 : vector<16x1xf32> to vector<16x16xf32>
    %89 = arith.divf %85, %88 : vector<16x16xf32>
    %cst_31 = arith.constant dense<0.000000e+00> : vector<16x16xf32>
    %90 = tpu.matmul %89, %76, %cst_31 {dimension_numbers = #tpu.dot_dimension_numbers<[1], [0], [0], [1], [0, 0, 1, 1], [], []>} : vector<16x16xf32>, vector<16x16xf32>, vector<16x16xf32> -> vector<16x16xf32>
    %91 = tpu.concatenate %73, %90 in 1 : vector<16x16xf32>, vector<16x16xf32> -> vector<16x32xf32>
    %cst_32 = arith.constant dense<0.000000e+00> : vector<16x32xf32>
    %92 = tpu.matmul %91, %42, %cst_32 {dimension_numbers = #tpu.dot_dimension_numbers<[1], [0], [0], [1], [0, 0, 1, 1], [], []>} : vector<16x32xf32>, vector<32x32xf32>, vector<16x32xf32> -> vector<16x32xf32>
    %93 = vector.broadcast %47 : vector<1x32xf32> to vector<16x32xf32>
    %94 = arith.addf %92, %93 : vector<16x32xf32>
    %95 = arith.addf %94, %36 : vector<16x32xf32>
    %cst_33 = arith.constant dense<0.000000e+00> : vector<16xf32>
    %96 = vector.multi_reduction <add>, %95, %cst_33 [1] : vector<16x32xf32> to vector<16xf32>
    %97 = vector.shape_cast %96 : vector<16xf32> to vector<16x1xf32>
    %cst_34 = arith.constant 3.200000e+01 : f32
    %98 = vector.broadcast %cst_34 : f32 to vector<16x1xf32>
    %99 = arith.divf %97, %98 : vector<16x1xf32>
    %100 = vector.broadcast %99 : vector<16x1xf32> to vector<16x32xf32>
    %101 = arith.subf %95, %100 : vector<16x32xf32>
    %102 = arith.mulf %101, %101 : vector<16x32xf32>
    %cst_35 = arith.constant dense<0.000000e+00> : vector<16xf32>
    %103 = vector.multi_reduction <add>, %102, %cst_35 [1] : vector<16x32xf32> to vector<16xf32>
    %104 = vector.shape_cast %103 : vector<16xf32> to vector<16x1xf32>
    %cst_36 = arith.constant 3.200000e+01 : f32
    %105 = vector.broadcast %cst_36 : f32 to vector<16x1xf32>
    %106 = arith.divf %104, %105 : vector<16x1xf32>
    %107 = vector.broadcast %99 : vector<16x1xf32> to vector<16x32xf32>
    %108 = arith.subf %95, %107 : vector<16x32xf32>
    %cst_37 = arith.constant 9.99999996E-13 : f32
    %109 = vector.broadcast %cst_37 : f32 to vector<16x1xf32>
    %110 = arith.addf %106, %109 : vector<16x1xf32>
    %111 = math.rsqrt %110 : vector<16x1xf32>
    %112 = vector.broadcast %111 : vector<16x1xf32> to vector<16x32xf32>
    %113 = arith.mulf %108, %112 : vector<16x32xf32>
    %114 = vector.broadcast %48 : vector<1x32xf32> to vector<16x32xf32>
    %115 = arith.mulf %113, %114 : vector<16x32xf32>
    %116 = vector.broadcast %49 : vector<1x32xf32> to vector<16x32xf32>
    %117 = arith.addf %115, %116 : vector<16x32xf32>
    %cst_38 = arith.constant dense<0.000000e+00> : vector<16x64xf32>
    %118 = tpu.matmul %117, %43, %cst_38 {dimension_numbers = #tpu.dot_dimension_numbers<[1], [0], [0], [1], [0, 0, 1, 1], [], []>} : vector<16x32xf32>, vector<32x64xf32>, vector<16x64xf32> -> vector<16x64xf32>
    %119 = vector.broadcast %50 : vector<1x64xf32> to vector<16x64xf32>
    %120 = arith.addf %118, %119 : vector<16x64xf32>
    %121 = arith.mulf %120, %120 : vector<16x64xf32>
    %122 = arith.mulf %120, %121 : vector<16x64xf32>
    %cst_39 = arith.constant 4.471500e-02 : f32
    %123 = vector.broadcast %cst_39 : f32 to vector<16x64xf32>
    %124 = arith.mulf %123, %122 : vector<16x64xf32>
    %125 = arith.addf %120, %124 : vector<16x64xf32>
    %cst_40 = arith.constant 0.797884583 : f32
    %126 = vector.broadcast %cst_40 : f32 to vector<16x64xf32>
    %127 = arith.mulf %126, %125 : vector<16x64xf32>
    %128 = math.tanh %127 : vector<16x64xf32>
    %cst_41 = arith.constant 1.000000e+00 : f32
    %129 = vector.broadcast %cst_41 : f32 to vector<16x64xf32>
    %130 = arith.addf %129, %128 : vector<16x64xf32>
    %cst_42 = arith.constant 5.000000e-01 : f32
    %131 = vector.broadcast %cst_42 : f32 to vector<16x64xf32>
    %132 = arith.mulf %131, %130 : vector<16x64xf32>
    %133 = arith.mulf %120, %132 : vector<16x64xf32>
    %cst_43 = arith.constant dense<0.000000e+00> : vector<16x32xf32>
    %134 = tpu.matmul %133, %45, %cst_43 {dimension_numbers = #tpu.dot_dimension_numbers<[1], [0], [0], [1], [0, 0, 1, 1], [], []>} : vector<16x64xf32>, vector<64x32xf32>, vector<16x32xf32> -> vector<16x32xf32>
    %135 = vector.broadcast %51 : vector<1x32xf32> to vector<16x32xf32>
    %136 = arith.addf %134, %135 : vector<16x32xf32>
    %137 = arith.addf %136, %117 : vector<16x32xf32>
    %cst_44 = arith.constant dense<0.000000e+00> : vector<16xf32>
    %138 = vector.multi_reduction <add>, %137, %cst_44 [1] : vector<16x32xf32> to vector<16xf32>
    %139 = vector.shape_cast %138 : vector<16xf32> to vector<16x1xf32>
    %cst_45 = arith.constant 3.200000e+01 : f32
    %140 = vector.broadcast %cst_45 : f32 to vector<16x1xf32>
    %141 = arith.divf %139, %140 : vector<16x1xf32>
    %142 = vector.broadcast %141 : vector<16x1xf32> to vector<16x32xf32>
    %143 = arith.subf %137, %142 : vector<16x32xf32>
    %144 = arith.mulf %143, %143 : vector<16x32xf32>
    %cst_46 = arith.constant dense<0.000000e+00> : vector<16xf32>
    %145 = vector.multi_reduction <add>, %144, %cst_46 [1] : vector<16x32xf32> to vector<16xf32>
    %146 = vector.shape_cast %145 : vector<16xf32> to vector<16x1xf32>
    %cst_47 = arith.constant 3.200000e+01 : f32
    %147 = vector.broadcast %cst_47 : f32 to vector<16x1xf32>
    %148 = arith.divf %146, %147 : vector<16x1xf32>
    %149 = vector.broadcast %141 : vector<16x1xf32> to vector<16x32xf32>
    %150 = arith.subf %137, %149 : vector<16x32xf32>
    %cst_48 = arith.constant 9.99999996E-13 : f32
    %151 = vector.broadcast %cst_48 : f32 to vector<16x1xf32>
    %152 = arith.addf %148, %151 : vector<16x1xf32>
    %153 = math.rsqrt %152 : vector<16x1xf32>
    %154 = vector.broadcast %153 : vector<16x1xf32> to vector<16x32xf32>
    %155 = arith.mulf %150, %154 : vector<16x32xf32>
    %156 = vector.broadcast %52 : vector<1x32xf32> to vector<16x32xf32>
    %157 = arith.mulf %155, %156 : vector<16x32xf32>
    %158 = vector.broadcast %53 : vector<1x32xf32> to vector<16x32xf32>
    %159 = arith.addf %157, %158 : vector<16x32xf32>
    %c1 = arith.constant 1 : index
    %c0_49 = arith.constant 0 : index
    %c0_50 = arith.constant 0 : index
    %160 = vector.load %arg4[%c1, %c0_49, %c0_50] : memref<2x32x192xf32, #tpu.memory_space<vmem>>, vector<1x32x192xf32>
    %161 = vector.shape_cast %160 : vector<1x32x192xf32> to vector<32x192xf32>
    %c1_51 = arith.constant 1 : index
    %c0_52 = arith.constant 0 : index
    %c0_53 = arith.constant 0 : index
    %162 = vector.load %arg6[%c1_51, %c0_52, %c0_53] : memref<2x8x96xf32, #tpu.memory_space<vmem>>, vector<1x8x96xf32>
    %163 = vector.shape_cast %162 : vector<1x8x96xf32> to vector<8x96xf32>
    %164 = vector.extract_strided_slice %161 {offsets = [0, 0], sizes = [32, 96], strides = [1, 1]} : vector<32x192xf32> to vector<32x96xf32>
    %165 = vector.extract_strided_slice %161 {offsets = [0, 96], sizes = [32, 32], strides = [1, 1]} : vector<32x192xf32> to vector<32x32xf32>
    %166 = vector.extract_strided_slice %161 {offsets = [0, 128], sizes = [32, 64], strides = [1, 1]} : vector<32x192xf32> to vector<32x64xf32>
    %c1_54 = arith.constant 1 : index
    %c0_55 = arith.constant 0 : index
    %c0_56 = arith.constant 0 : index
    %167 = vector.load %arg5[%c1_54, %c0_55, %c0_56] : memref<2x64x32xf32, #tpu.memory_space<vmem>>, vector<1x64x32xf32>
    %168 = vector.shape_cast %167 : vector<1x64x32xf32> to vector<64x32xf32>
    %169 = vector.extract_strided_slice %163 {offsets = [0, 0], sizes = [1, 96], strides = [1, 1]} : vector<8x96xf32> to vector<1x96xf32>
    %170 = vector.extract_strided_slice %163 {offsets = [1, 0], sizes = [1, 32], strides = [1, 1]} : vector<8x96xf32> to vector<1x32xf32>
    %171 = vector.extract_strided_slice %163 {offsets = [2, 0], sizes = [1, 32], strides = [1, 1]} : vector<8x96xf32> to vector<1x32xf32>
    %172 = vector.extract_strided_slice %163 {offsets = [3, 0], sizes = [1, 32], strides = [1, 1]} : vector<8x96xf32> to vector<1x32xf32>
    %173 = vector.extract_strided_slice %163 {offsets = [4, 0], sizes = [1, 64], strides = [1, 1]} : vector<8x96xf32> to vector<1x64xf32>
    %174 = vector.extract_strided_slice %163 {offsets = [5, 0], sizes = [1, 32], strides = [1, 1]} : vector<8x96xf32> to vector<1x32xf32>
    %175 = vector.extract_strided_slice %163 {offsets = [6, 0], sizes = [1, 32], strides = [1, 1]} : vector<8x96xf32> to vector<1x32xf32>
    %176 = vector.extract_strided_slice %163 {offsets = [7, 0], sizes = [1, 32], strides = [1, 1]} : vector<8x96xf32> to vector<1x32xf32>
    %cst_57 = arith.constant dense<0.000000e+00> : vector<16x96xf32>
    %177 = tpu.matmul %159, %164, %cst_57 {dimension_numbers = #tpu.dot_dimension_numbers<[1], [0], [0], [1], [0, 0, 1, 1], [], []>} : vector<16x32xf32>, vector<32x96xf32>, vector<16x96xf32> -> vector<16x96xf32>
    %178 = vector.broadcast %169 : vector<1x96xf32> to vector<16x96xf32>
    %179 = arith.addf %177, %178 : vector<16x96xf32>
    %180 = vector.extract_strided_slice %179 {offsets = [0, 0], sizes = [16, 16], strides = [1, 1]} : vector<16x96xf32> to vector<16x16xf32>
    %181 = vector.extract_strided_slice %179 {offsets = [0, 32], sizes = [16, 16], strides = [1, 1]} : vector<16x96xf32> to vector<16x16xf32>
    %182 = vector.extract_strided_slice %179 {offsets = [0, 64], sizes = [16, 16], strides = [1, 1]} : vector<16x96xf32> to vector<16x16xf32>
    "tpu.trace_start"() <{level = 10 : i32, message = "qd,kd->qk"}> : () -> ()
    %cst_58 = arith.constant dense<0.000000e+00> : vector<16x16xf32>
    %183 = tpu.matmul %180, %181, %cst_58 {dimension_numbers = #tpu.dot_dimension_numbers<[1], [1], [0], [0], [0, 0, 1, 0], [], []>} : vector<16x16xf32>, vector<16x16xf32>, vector<16x16xf32> -> vector<16x16xf32>
    "tpu.trace_stop"() : () -> ()
    %cst_59 = arith.constant 2.500000e-01 : f32
    %184 = vector.broadcast %cst_59 : f32 to vector<16x16xf32>
    %185 = arith.mulf %183, %184 : vector<16x16xf32>
    %186 = arith.addf %185, %1 : vector<16x16xf32>
    %cst_60 = arith.constant dense<0xFF800000> : vector<16xf32>
    %187 = vector.multi_reduction <maximumf>, %186, %cst_60 [1] : vector<16x16xf32> to vector<16xf32>
    %188 = vector.shape_cast %187 : vector<16xf32> to vector<16x1xf32>
    %189 = vector.broadcast %188 : vector<16x1xf32> to vector<16x16xf32>
    %190 = arith.subf %186, %189 : vector<16x16xf32>
    %191 = math.exp %190 : vector<16x16xf32>
    %cst_61 = arith.constant dense<0.000000e+00> : vector<16xf32>
    %192 = vector.multi_reduction <add>, %191, %cst_61 [1] : vector<16x16xf32> to vector<16xf32>
    %193 = vector.shape_cast %192 : vector<16xf32> to vector<16x1xf32>
    %194 = vector.broadcast %193 : vector<16x1xf32> to vector<16x16xf32>
    %195 = arith.divf %191, %194 : vector<16x16xf32>
    %cst_62 = arith.constant dense<0.000000e+00> : vector<16x16xf32>
    %196 = tpu.matmul %195, %182, %cst_62 {dimension_numbers = #tpu.dot_dimension_numbers<[1], [0], [0], [1], [0, 0, 1, 1], [], []>} : vector<16x16xf32>, vector<16x16xf32>, vector<16x16xf32> -> vector<16x16xf32>
    %197 = vector.extract_strided_slice %179 {offsets = [0, 16], sizes = [16, 16], strides = [1, 1]} : vector<16x96xf32> to vector<16x16xf32>
    %198 = vector.extract_strided_slice %179 {offsets = [0, 48], sizes = [16, 16], strides = [1, 1]} : vector<16x96xf32> to vector<16x16xf32>
    %199 = vector.extract_strided_slice %179 {offsets = [0, 80], sizes = [16, 16], strides = [1, 1]} : vector<16x96xf32> to vector<16x16xf32>
    "tpu.trace_start"() <{level = 10 : i32, message = "qd,kd->qk"}> : () -> ()
    %cst_63 = arith.constant dense<0.000000e+00> : vector<16x16xf32>
    %200 = tpu.matmul %197, %198, %cst_63 {dimension_numbers = #tpu.dot_dimension_numbers<[1], [1], [0], [0], [0, 0, 1, 0], [], []>} : vector<16x16xf32>, vector<16x16xf32>, vector<16x16xf32> -> vector<16x16xf32>
    "tpu.trace_stop"() : () -> ()
    %cst_64 = arith.constant 2.500000e-01 : f32
    %201 = vector.broadcast %cst_64 : f32 to vector<16x16xf32>
    %202 = arith.mulf %200, %201 : vector<16x16xf32>
    %203 = arith.addf %202, %1 : vector<16x16xf32>
    %cst_65 = arith.constant dense<0xFF800000> : vector<16xf32>
    %204 = vector.multi_reduction <maximumf>, %203, %cst_65 [1] : vector<16x16xf32> to vector<16xf32>
    %205 = vector.shape_cast %204 : vector<16xf32> to vector<16x1xf32>
    %206 = vector.broadcast %205 : vector<16x1xf32> to vector<16x16xf32>
    %207 = arith.subf %203, %206 : vector<16x16xf32>
    %208 = math.exp %207 : vector<16x16xf32>
    %cst_66 = arith.constant dense<0.000000e+00> : vector<16xf32>
    %209 = vector.multi_reduction <add>, %208, %cst_66 [1] : vector<16x16xf32> to vector<16xf32>
    %210 = vector.shape_cast %209 : vector<16xf32> to vector<16x1xf32>
    %211 = vector.broadcast %210 : vector<16x1xf32> to vector<16x16xf32>
    %212 = arith.divf %208, %211 : vector<16x16xf32>
    %cst_67 = arith.constant dense<0.000000e+00> : vector<16x16xf32>
    %213 = tpu.matmul %212, %199, %cst_67 {dimension_numbers = #tpu.dot_dimension_numbers<[1], [0], [0], [1], [0, 0, 1, 1], [], []>} : vector<16x16xf32>, vector<16x16xf32>, vector<16x16xf32> -> vector<16x16xf32>
    %214 = tpu.concatenate %196, %213 in 1 : vector<16x16xf32>, vector<16x16xf32> -> vector<16x32xf32>
    %cst_68 = arith.constant dense<0.000000e+00> : vector<16x32xf32>
    %215 = tpu.matmul %214, %165, %cst_68 {dimension_numbers = #tpu.dot_dimension_numbers<[1], [0], [0], [1], [0, 0, 1, 1], [], []>} : vector<16x32xf32>, vector<32x32xf32>, vector<16x32xf32> -> vector<16x32xf32>
    %216 = vector.broadcast %170 : vector<1x32xf32> to vector<16x32xf32>
    %217 = arith.addf %215, %216 : vector<16x32xf32>
    %218 = arith.addf %217, %159 : vector<16x32xf32>
    %cst_69 = arith.constant dense<0.000000e+00> : vector<16xf32>
    %219 = vector.multi_reduction <add>, %218, %cst_69 [1] : vector<16x32xf32> to vector<16xf32>
    %220 = vector.shape_cast %219 : vector<16xf32> to vector<16x1xf32>
    %cst_70 = arith.constant 3.200000e+01 : f32
    %221 = vector.broadcast %cst_70 : f32 to vector<16x1xf32>
    %222 = arith.divf %220, %221 : vector<16x1xf32>
    %223 = vector.broadcast %222 : vector<16x1xf32> to vector<16x32xf32>
    %224 = arith.subf %218, %223 : vector<16x32xf32>
    %225 = arith.mulf %224, %224 : vector<16x32xf32>
    %cst_71 = arith.constant dense<0.000000e+00> : vector<16xf32>
    %226 = vector.multi_reduction <add>, %225, %cst_71 [1] : vector<16x32xf32> to vector<16xf32>
    %227 = vector.shape_cast %226 : vector<16xf32> to vector<16x1xf32>
    %cst_72 = arith.constant 3.200000e+01 : f32
    %228 = vector.broadcast %cst_72 : f32 to vector<16x1xf32>
    %229 = arith.divf %227, %228 : vector<16x1xf32>
    %230 = vector.broadcast %222 : vector<16x1xf32> to vector<16x32xf32>
    %231 = arith.subf %218, %230 : vector<16x32xf32>
    %cst_73 = arith.constant 9.99999996E-13 : f32
    %232 = vector.broadcast %cst_73 : f32 to vector<16x1xf32>
    %233 = arith.addf %229, %232 : vector<16x1xf32>
    %234 = math.rsqrt %233 : vector<16x1xf32>
    %235 = vector.broadcast %234 : vector<16x1xf32> to vector<16x32xf32>
    %236 = arith.mulf %231, %235 : vector<16x32xf32>
    %237 = vector.broadcast %171 : vector<1x32xf32> to vector<16x32xf32>
    %238 = arith.mulf %236, %237 : vector<16x32xf32>
    %239 = vector.broadcast %172 : vector<1x32xf32> to vector<16x32xf32>
    %240 = arith.addf %238, %239 : vector<16x32xf32>
    %cst_74 = arith.constant dense<0.000000e+00> : vector<16x64xf32>
    %241 = tpu.matmul %240, %166, %cst_74 {dimension_numbers = #tpu.dot_dimension_numbers<[1], [0], [0], [1], [0, 0, 1, 1], [], []>} : vector<16x32xf32>, vector<32x64xf32>, vector<16x64xf32> -> vector<16x64xf32>
    %242 = vector.broadcast %173 : vector<1x64xf32> to vector<16x64xf32>
    %243 = arith.addf %241, %242 : vector<16x64xf32>
    %244 = arith.mulf %243, %243 : vector<16x64xf32>
    %245 = arith.mulf %243, %244 : vector<16x64xf32>
    %cst_75 = arith.constant 4.471500e-02 : f32
    %246 = vector.broadcast %cst_75 : f32 to vector<16x64xf32>
    %247 = arith.mulf %246, %245 : vector<16x64xf32>
    %248 = arith.addf %243, %247 : vector<16x64xf32>
    %cst_76 = arith.constant 0.797884583 : f32
    %249 = vector.broadcast %cst_76 : f32 to vector<16x64xf32>
    %250 = arith.mulf %249, %248 : vector<16x64xf32>
    %251 = math.tanh %250 : vector<16x64xf32>
    %cst_77 = arith.constant 1.000000e+00 : f32
    %252 = vector.broadcast %cst_77 : f32 to vector<16x64xf32>
    %253 = arith.addf %252, %251 : vector<16x64xf32>
    %cst_78 = arith.constant 5.000000e-01 : f32
    %254 = vector.broadcast %cst_78 : f32 to vector<16x64xf32>
    %255 = arith.mulf %254, %253 : vector<16x64xf32>
    %256 = arith.mulf %243, %255 : vector<16x64xf32>
    %cst_79 = arith.constant dense<0.000000e+00> : vector<16x32xf32>
    %257 = tpu.matmul %256, %168, %cst_79 {dimension_numbers = #tpu.dot_dimension_numbers<[1], [0], [0], [1], [0, 0, 1, 1], [], []>} : vector<16x64xf32>, vector<64x32xf32>, vector<16x32xf32> -> vector<16x32xf32>
    %258 = vector.broadcast %174 : vector<1x32xf32> to vector<16x32xf32>
    %259 = arith.addf %257, %258 : vector<16x32xf32>
    %260 = arith.addf %259, %240 : vector<16x32xf32>
    %cst_80 = arith.constant dense<0.000000e+00> : vector<16xf32>
    %261 = vector.multi_reduction <add>, %260, %cst_80 [1] : vector<16x32xf32> to vector<16xf32>
    %262 = vector.shape_cast %261 : vector<16xf32> to vector<16x1xf32>
    %cst_81 = arith.constant 3.200000e+01 : f32
    %263 = vector.broadcast %cst_81 : f32 to vector<16x1xf32>
    %264 = arith.divf %262, %263 : vector<16x1xf32>
    %265 = vector.broadcast %264 : vector<16x1xf32> to vector<16x32xf32>
    %266 = arith.subf %260, %265 : vector<16x32xf32>
    %267 = arith.mulf %266, %266 : vector<16x32xf32>
    %cst_82 = arith.constant dense<0.000000e+00> : vector<16xf32>
    %268 = vector.multi_reduction <add>, %267, %cst_82 [1] : vector<16x32xf32> to vector<16xf32>
    %269 = vector.shape_cast %268 : vector<16xf32> to vector<16x1xf32>
    %cst_83 = arith.constant 3.200000e+01 : f32
    %270 = vector.broadcast %cst_83 : f32 to vector<16x1xf32>
    %271 = arith.divf %269, %270 : vector<16x1xf32>
    %272 = vector.broadcast %264 : vector<16x1xf32> to vector<16x32xf32>
    %273 = arith.subf %260, %272 : vector<16x32xf32>
    %cst_84 = arith.constant 9.99999996E-13 : f32
    %274 = vector.broadcast %cst_84 : f32 to vector<16x1xf32>
    %275 = arith.addf %271, %274 : vector<16x1xf32>
    %276 = math.rsqrt %275 : vector<16x1xf32>
    %277 = vector.broadcast %276 : vector<16x1xf32> to vector<16x32xf32>
    %278 = arith.mulf %273, %277 : vector<16x32xf32>
    %279 = vector.broadcast %175 : vector<1x32xf32> to vector<16x32xf32>
    %280 = arith.mulf %278, %279 : vector<16x32xf32>
    %281 = vector.broadcast %176 : vector<1x32xf32> to vector<16x32xf32>
    %282 = arith.addf %280, %281 : vector<16x32xf32>
    %c0_85 = arith.constant 0 : index
    %c0_86 = arith.constant 0 : index
    %283 = vector.load %arg7[%c0_85, %c0_86] : memref<40x5xf32, #tpu.memory_space<vmem>>, vector<40x5xf32>
    %284 = vector.extract_strided_slice %283 {offsets = [0, 0], sizes = [32, 5], strides = [1, 1]} : vector<40x5xf32> to vector<32x5xf32>
    %285 = vector.extract_strided_slice %283 {offsets = [32, 0], sizes = [1, 5], strides = [1, 1]} : vector<40x5xf32> to vector<1x5xf32>
    %286 = vector.extract_strided_slice %283 {offsets = [33, 0], sizes = [1, 5], strides = [1, 1]} : vector<40x5xf32> to vector<1x5xf32>
    %287 = vector.extract_strided_slice %283 {offsets = [34, 0], sizes = [1, 5], strides = [1, 1]} : vector<40x5xf32> to vector<1x5xf32>
    %288 = vector.extract_strided_slice %283 {offsets = [35, 0], sizes = [5, 5], strides = [1, 1]} : vector<40x5xf32> to vector<5x5xf32>
    %cst_87 = arith.constant dense<0.000000e+00> : vector<16x5xf32>
    %289 = tpu.matmul %282, %284, %cst_87 {dimension_numbers = #tpu.dot_dimension_numbers<[1], [0], [0], [1], [0, 0, 1, 1], [], []>} : vector<16x32xf32>, vector<32x5xf32>, vector<16x5xf32> -> vector<16x5xf32>
    %290 = vector.broadcast %285 : vector<1x5xf32> to vector<16x5xf32>
    %291 = arith.addf %289, %290 : vector<16x5xf32>
    %292 = vector.extract_strided_slice %291 {offsets = [0, 0], sizes = [2, 5], strides = [1, 1]} : vector<16x5xf32> to vector<2x5xf32>
    %293 = vector.broadcast %286 : vector<1x5xf32> to vector<2x5xf32>
    %294 = arith.addf %293, %292 : vector<2x5xf32>
    %295 = vector.extract_strided_slice %291 {offsets = [2, 0], sizes = [2, 5], strides = [1, 1]} : vector<16x5xf32> to vector<2x5xf32>
    %296 = vector.extract_strided_slice %0 {offsets = [0, 1], sizes = [2, 1], strides = [1, 1]} : vector<2x8xf32> to vector<2x1xf32>
    %297 = vector.extract_strided_slice %294 {offsets = [0, 0], sizes = [2, 1], strides = [1, 1]} : vector<2x5xf32> to vector<2x1xf32>
    %298 = vector.extract_strided_slice %288 {offsets = [0, 0], sizes = [1, 5], strides = [1, 1]} : vector<5x5xf32> to vector<1x5xf32>
    %299 = vector.broadcast %297 : vector<2x1xf32> to vector<2x5xf32>
    %300 = vector.broadcast %298 : vector<1x5xf32> to vector<2x5xf32>
    %301 = arith.addf %299, %300 : vector<2x5xf32>
    %c0_i32 = arith.constant 0 : i32
    %302 = vector.broadcast %c0_i32 : i32 to vector<2x5xi32>
    %303 = vector.extract_strided_slice %294 {offsets = [0, 1], sizes = [2, 1], strides = [1, 1]} : vector<2x5xf32> to vector<2x1xf32>
    %304 = vector.extract_strided_slice %288 {offsets = [1, 0], sizes = [1, 5], strides = [1, 1]} : vector<5x5xf32> to vector<1x5xf32>
    %305 = vector.broadcast %303 : vector<2x1xf32> to vector<2x5xf32>
    %306 = vector.broadcast %304 : vector<1x5xf32> to vector<2x5xf32>
    %307 = arith.addf %305, %306 : vector<2x5xf32>
    %308 = arith.cmpf ogt, %307, %301 : vector<2x5xf32>
    %309 = arith.select %308, %307, %301 : vector<2x5xi1>, vector<2x5xf32>
    %c1_i32 = arith.constant 1 : i32
    %310 = vector.broadcast %c1_i32 : i32 to vector<2x5xi32>
    %311 = arith.select %308, %310, %302 : vector<2x5xi1>, vector<2x5xi32>
    %312 = vector.extract_strided_slice %294 {offsets = [0, 2], sizes = [2, 1], strides = [1, 1]} : vector<2x5xf32> to vector<2x1xf32>
    %313 = vector.extract_strided_slice %288 {offsets = [2, 0], sizes = [1, 5], strides = [1, 1]} : vector<5x5xf32> to vector<1x5xf32>
    %314 = vector.broadcast %312 : vector<2x1xf32> to vector<2x5xf32>
    %315 = vector.broadcast %313 : vector<1x5xf32> to vector<2x5xf32>
    %316 = arith.addf %314, %315 : vector<2x5xf32>
    %317 = arith.cmpf ogt, %316, %309 : vector<2x5xf32>
    %318 = arith.select %317, %316, %309 : vector<2x5xi1>, vector<2x5xf32>
    %c2_i32 = arith.constant 2 : i32
    %319 = vector.broadcast %c2_i32 : i32 to vector<2x5xi32>
    %320 = arith.select %317, %319, %311 : vector<2x5xi1>, vector<2x5xi32>
    %321 = vector.extract_strided_slice %294 {offsets = [0, 3], sizes = [2, 1], strides = [1, 1]} : vector<2x5xf32> to vector<2x1xf32>
    %322 = vector.extract_strided_slice %288 {offsets = [3, 0], sizes = [1, 5], strides = [1, 1]} : vector<5x5xf32> to vector<1x5xf32>
    %323 = vector.broadcast %321 : vector<2x1xf32> to vector<2x5xf32>
    %324 = vector.broadcast %322 : vector<1x5xf32> to vector<2x5xf32>
    %325 = arith.addf %323, %324 : vector<2x5xf32>
    %326 = arith.cmpf ogt, %325, %318 : vector<2x5xf32>
    %327 = arith.select %326, %325, %318 : vector<2x5xi1>, vector<2x5xf32>
    %c3_i32 = arith.constant 3 : i32
    %328 = vector.broadcast %c3_i32 : i32 to vector<2x5xi32>
    %329 = arith.select %326, %328, %320 : vector<2x5xi1>, vector<2x5xi32>
    %330 = vector.extract_strided_slice %294 {offsets = [0, 4], sizes = [2, 1], strides = [1, 1]} : vector<2x5xf32> to vector<2x1xf32>
    %331 = vector.extract_strided_slice %288 {offsets = [4, 0], sizes = [1, 5], strides = [1, 1]} : vector<5x5xf32> to vector<1x5xf32>
    %332 = vector.broadcast %330 : vector<2x1xf32> to vector<2x5xf32>
    %333 = vector.broadcast %331 : vector<1x5xf32> to vector<2x5xf32>
    %334 = arith.addf %332, %333 : vector<2x5xf32>
    %335 = arith.cmpf ogt, %334, %327 : vector<2x5xf32>
    %336 = arith.select %335, %334, %327 : vector<2x5xi1>, vector<2x5xf32>
    %c4_i32 = arith.constant 4 : i32
    %337 = vector.broadcast %c4_i32 : i32 to vector<2x5xi32>
    %338 = arith.select %335, %337, %329 : vector<2x5xi1>, vector<2x5xi32>
    %cst_88 = arith.constant 5.000000e-01 : f32
    %339 = vector.broadcast %cst_88 : f32 to vector<2x1xf32>
    %340 = arith.cmpf ogt, %296, %339 : vector<2x1xf32>
    %341 = arith.addf %336, %295 : vector<2x5xf32>
    %342 = vector.shape_cast %340 : vector<2x1xi1> to vector<2x1xi1>
    %343 = vector.broadcast %342 : vector<2x1xi1> to vector<2x5xi1>
    %344 = arith.select %343, %341, %294 : vector<2x5xi1>, vector<2x5xf32>
    %345 = vector.extract_strided_slice %291 {offsets = [4, 0], sizes = [2, 5], strides = [1, 1]} : vector<16x5xf32> to vector<2x5xf32>
    %346 = vector.extract_strided_slice %0 {offsets = [0, 2], sizes = [2, 1], strides = [1, 1]} : vector<2x8xf32> to vector<2x1xf32>
    %347 = vector.extract_strided_slice %344 {offsets = [0, 0], sizes = [2, 1], strides = [1, 1]} : vector<2x5xf32> to vector<2x1xf32>
    %348 = vector.extract_strided_slice %288 {offsets = [0, 0], sizes = [1, 5], strides = [1, 1]} : vector<5x5xf32> to vector<1x5xf32>
    %349 = vector.broadcast %347 : vector<2x1xf32> to vector<2x5xf32>
    %350 = vector.broadcast %348 : vector<1x5xf32> to vector<2x5xf32>
    %351 = arith.addf %349, %350 : vector<2x5xf32>
    %c0_i32_89 = arith.constant 0 : i32
    %352 = vector.broadcast %c0_i32_89 : i32 to vector<2x5xi32>
    %353 = vector.extract_strided_slice %344 {offsets = [0, 1], sizes = [2, 1], strides = [1, 1]} : vector<2x5xf32> to vector<2x1xf32>
    %354 = vector.extract_strided_slice %288 {offsets = [1, 0], sizes = [1, 5], strides = [1, 1]} : vector<5x5xf32> to vector<1x5xf32>
    %355 = vector.broadcast %353 : vector<2x1xf32> to vector<2x5xf32>
    %356 = vector.broadcast %354 : vector<1x5xf32> to vector<2x5xf32>
    %357 = arith.addf %355, %356 : vector<2x5xf32>
    %358 = arith.cmpf ogt, %357, %351 : vector<2x5xf32>
    %359 = arith.select %358, %357, %351 : vector<2x5xi1>, vector<2x5xf32>
    %c1_i32_90 = arith.constant 1 : i32
    %360 = vector.broadcast %c1_i32_90 : i32 to vector<2x5xi32>
    %361 = arith.select %358, %360, %352 : vector<2x5xi1>, vector<2x5xi32>
    %362 = vector.extract_strided_slice %344 {offsets = [0, 2], sizes = [2, 1], strides = [1, 1]} : vector<2x5xf32> to vector<2x1xf32>
    %363 = vector.extract_strided_slice %288 {offsets = [2, 0], sizes = [1, 5], strides = [1, 1]} : vector<5x5xf32> to vector<1x5xf32>
    %364 = vector.broadcast %362 : vector<2x1xf32> to vector<2x5xf32>
    %365 = vector.broadcast %363 : vector<1x5xf32> to vector<2x5xf32>
    %366 = arith.addf %364, %365 : vector<2x5xf32>
    %367 = arith.cmpf ogt, %366, %359 : vector<2x5xf32>
    %368 = arith.select %367, %366, %359 : vector<2x5xi1>, vector<2x5xf32>
    %c2_i32_91 = arith.constant 2 : i32
    %369 = vector.broadcast %c2_i32_91 : i32 to vector<2x5xi32>
    %370 = arith.select %367, %369, %361 : vector<2x5xi1>, vector<2x5xi32>
    %371 = vector.extract_strided_slice %344 {offsets = [0, 3], sizes = [2, 1], strides = [1, 1]} : vector<2x5xf32> to vector<2x1xf32>
    %372 = vector.extract_strided_slice %288 {offsets = [3, 0], sizes = [1, 5], strides = [1, 1]} : vector<5x5xf32> to vector<1x5xf32>
    %373 = vector.broadcast %371 : vector<2x1xf32> to vector<2x5xf32>
    %374 = vector.broadcast %372 : vector<1x5xf32> to vector<2x5xf32>
    %375 = arith.addf %373, %374 : vector<2x5xf32>
    %376 = arith.cmpf ogt, %375, %368 : vector<2x5xf32>
    %377 = arith.select %376, %375, %368 : vector<2x5xi1>, vector<2x5xf32>
    %c3_i32_92 = arith.constant 3 : i32
    %378 = vector.broadcast %c3_i32_92 : i32 to vector<2x5xi32>
    %379 = arith.select %376, %378, %370 : vector<2x5xi1>, vector<2x5xi32>
    %380 = vector.extract_strided_slice %344 {offsets = [0, 4], sizes = [2, 1], strides = [1, 1]} : vector<2x5xf32> to vector<2x1xf32>
    %381 = vector.extract_strided_slice %288 {offsets = [4, 0], sizes = [1, 5], strides = [1, 1]} : vector<5x5xf32> to vector<1x5xf32>
    %382 = vector.broadcast %380 : vector<2x1xf32> to vector<2x5xf32>
    %383 = vector.broadcast %381 : vector<1x5xf32> to vector<2x5xf32>
    %384 = arith.addf %382, %383 : vector<2x5xf32>
    %385 = arith.cmpf ogt, %384, %377 : vector<2x5xf32>
    %386 = arith.select %385, %384, %377 : vector<2x5xi1>, vector<2x5xf32>
    %c4_i32_93 = arith.constant 4 : i32
    %387 = vector.broadcast %c4_i32_93 : i32 to vector<2x5xi32>
    %388 = arith.select %385, %387, %379 : vector<2x5xi1>, vector<2x5xi32>
    %cst_94 = arith.constant 5.000000e-01 : f32
    %389 = vector.broadcast %cst_94 : f32 to vector<2x1xf32>
    %390 = arith.cmpf ogt, %346, %389 : vector<2x1xf32>
    %391 = arith.addf %386, %345 : vector<2x5xf32>
    %392 = vector.shape_cast %390 : vector<2x1xi1> to vector<2x1xi1>
    %393 = vector.broadcast %392 : vector<2x1xi1> to vector<2x5xi1>
    %394 = arith.select %393, %391, %344 : vector<2x5xi1>, vector<2x5xf32>
    %395 = vector.extract_strided_slice %291 {offsets = [6, 0], sizes = [2, 5], strides = [1, 1]} : vector<16x5xf32> to vector<2x5xf32>
    %396 = vector.extract_strided_slice %0 {offsets = [0, 3], sizes = [2, 1], strides = [1, 1]} : vector<2x8xf32> to vector<2x1xf32>
    %397 = vector.extract_strided_slice %394 {offsets = [0, 0], sizes = [2, 1], strides = [1, 1]} : vector<2x5xf32> to vector<2x1xf32>
    %398 = vector.extract_strided_slice %288 {offsets = [0, 0], sizes = [1, 5], strides = [1, 1]} : vector<5x5xf32> to vector<1x5xf32>
    %399 = vector.broadcast %397 : vector<2x1xf32> to vector<2x5xf32>
    %400 = vector.broadcast %398 : vector<1x5xf32> to vector<2x5xf32>
    %401 = arith.addf %399, %400 : vector<2x5xf32>
    %c0_i32_95 = arith.constant 0 : i32
    %402 = vector.broadcast %c0_i32_95 : i32 to vector<2x5xi32>
    %403 = vector.extract_strided_slice %394 {offsets = [0, 1], sizes = [2, 1], strides = [1, 1]} : vector<2x5xf32> to vector<2x1xf32>
    %404 = vector.extract_strided_slice %288 {offsets = [1, 0], sizes = [1, 5], strides = [1, 1]} : vector<5x5xf32> to vector<1x5xf32>
    %405 = vector.broadcast %403 : vector<2x1xf32> to vector<2x5xf32>
    %406 = vector.broadcast %404 : vector<1x5xf32> to vector<2x5xf32>
    %407 = arith.addf %405, %406 : vector<2x5xf32>
    %408 = arith.cmpf ogt, %407, %401 : vector<2x5xf32>
    %409 = arith.select %408, %407, %401 : vector<2x5xi1>, vector<2x5xf32>
    %c1_i32_96 = arith.constant 1 : i32
    %410 = vector.broadcast %c1_i32_96 : i32 to vector<2x5xi32>
    %411 = arith.select %408, %410, %402 : vector<2x5xi1>, vector<2x5xi32>
    %412 = vector.extract_strided_slice %394 {offsets = [0, 2], sizes = [2, 1], strides = [1, 1]} : vector<2x5xf32> to vector<2x1xf32>
    %413 = vector.extract_strided_slice %288 {offsets = [2, 0], sizes = [1, 5], strides = [1, 1]} : vector<5x5xf32> to vector<1x5xf32>
    %414 = vector.broadcast %412 : vector<2x1xf32> to vector<2x5xf32>
    %415 = vector.broadcast %413 : vector<1x5xf32> to vector<2x5xf32>
    %416 = arith.addf %414, %415 : vector<2x5xf32>
    %417 = arith.cmpf ogt, %416, %409 : vector<2x5xf32>
    %418 = arith.select %417, %416, %409 : vector<2x5xi1>, vector<2x5xf32>
    %c2_i32_97 = arith.constant 2 : i32
    %419 = vector.broadcast %c2_i32_97 : i32 to vector<2x5xi32>
    %420 = arith.select %417, %419, %411 : vector<2x5xi1>, vector<2x5xi32>
    %421 = vector.extract_strided_slice %394 {offsets = [0, 3], sizes = [2, 1], strides = [1, 1]} : vector<2x5xf32> to vector<2x1xf32>
    %422 = vector.extract_strided_slice %288 {offsets = [3, 0], sizes = [1, 5], strides = [1, 1]} : vector<5x5xf32> to vector<1x5xf32>
    %423 = vector.broadcast %421 : vector<2x1xf32> to vector<2x5xf32>
    %424 = vector.broadcast %422 : vector<1x5xf32> to vector<2x5xf32>
    %425 = arith.addf %423, %424 : vector<2x5xf32>
    %426 = arith.cmpf ogt, %425, %418 : vector<2x5xf32>
    %427 = arith.select %426, %425, %418 : vector<2x5xi1>, vector<2x5xf32>
    %c3_i32_98 = arith.constant 3 : i32
    %428 = vector.broadcast %c3_i32_98 : i32 to vector<2x5xi32>
    %429 = arith.select %426, %428, %420 : vector<2x5xi1>, vector<2x5xi32>
    %430 = vector.extract_strided_slice %394 {offsets = [0, 4], sizes = [2, 1], strides = [1, 1]} : vector<2x5xf32> to vector<2x1xf32>
    %431 = vector.extract_strided_slice %288 {offsets = [4, 0], sizes = [1, 5], strides = [1, 1]} : vector<5x5xf32> to vector<1x5xf32>
    %432 = vector.broadcast %430 : vector<2x1xf32> to vector<2x5xf32>
    %433 = vector.broadcast %431 : vector<1x5xf32> to vector<2x5xf32>
    %434 = arith.addf %432, %433 : vector<2x5xf32>
    %435 = arith.cmpf ogt, %434, %427 : vector<2x5xf32>
    %436 = arith.select %435, %434, %427 : vector<2x5xi1>, vector<2x5xf32>
    %c4_i32_99 = arith.constant 4 : i32
    %437 = vector.broadcast %c4_i32_99 : i32 to vector<2x5xi32>
    %438 = arith.select %435, %437, %429 : vector<2x5xi1>, vector<2x5xi32>
    %cst_100 = arith.constant 5.000000e-01 : f32
    %439 = vector.broadcast %cst_100 : f32 to vector<2x1xf32>
    %440 = arith.cmpf ogt, %396, %439 : vector<2x1xf32>
    %441 = arith.addf %436, %395 : vector<2x5xf32>
    %442 = vector.shape_cast %440 : vector<2x1xi1> to vector<2x1xi1>
    %443 = vector.broadcast %442 : vector<2x1xi1> to vector<2x5xi1>
    %444 = arith.select %443, %441, %394 : vector<2x5xi1>, vector<2x5xf32>
    %445 = vector.extract_strided_slice %291 {offsets = [8, 0], sizes = [2, 5], strides = [1, 1]} : vector<16x5xf32> to vector<2x5xf32>
    %446 = vector.extract_strided_slice %0 {offsets = [0, 4], sizes = [2, 1], strides = [1, 1]} : vector<2x8xf32> to vector<2x1xf32>
    %447 = vector.extract_strided_slice %444 {offsets = [0, 0], sizes = [2, 1], strides = [1, 1]} : vector<2x5xf32> to vector<2x1xf32>
    %448 = vector.extract_strided_slice %288 {offsets = [0, 0], sizes = [1, 5], strides = [1, 1]} : vector<5x5xf32> to vector<1x5xf32>
    %449 = vector.broadcast %447 : vector<2x1xf32> to vector<2x5xf32>
    %450 = vector.broadcast %448 : vector<1x5xf32> to vector<2x5xf32>
    %451 = arith.addf %449, %450 : vector<2x5xf32>
    %c0_i32_101 = arith.constant 0 : i32
    %452 = vector.broadcast %c0_i32_101 : i32 to vector<2x5xi32>
    %453 = vector.extract_strided_slice %444 {offsets = [0, 1], sizes = [2, 1], strides = [1, 1]} : vector<2x5xf32> to vector<2x1xf32>
    %454 = vector.extract_strided_slice %288 {offsets = [1, 0], sizes = [1, 5], strides = [1, 1]} : vector<5x5xf32> to vector<1x5xf32>
    %455 = vector.broadcast %453 : vector<2x1xf32> to vector<2x5xf32>
    %456 = vector.broadcast %454 : vector<1x5xf32> to vector<2x5xf32>
    %457 = arith.addf %455, %456 : vector<2x5xf32>
    %458 = arith.cmpf ogt, %457, %451 : vector<2x5xf32>
    %459 = arith.select %458, %457, %451 : vector<2x5xi1>, vector<2x5xf32>
    %c1_i32_102 = arith.constant 1 : i32
    %460 = vector.broadcast %c1_i32_102 : i32 to vector<2x5xi32>
    %461 = arith.select %458, %460, %452 : vector<2x5xi1>, vector<2x5xi32>
    %462 = vector.extract_strided_slice %444 {offsets = [0, 2], sizes = [2, 1], strides = [1, 1]} : vector<2x5xf32> to vector<2x1xf32>
    %463 = vector.extract_strided_slice %288 {offsets = [2, 0], sizes = [1, 5], strides = [1, 1]} : vector<5x5xf32> to vector<1x5xf32>
    %464 = vector.broadcast %462 : vector<2x1xf32> to vector<2x5xf32>
    %465 = vector.broadcast %463 : vector<1x5xf32> to vector<2x5xf32>
    %466 = arith.addf %464, %465 : vector<2x5xf32>
    %467 = arith.cmpf ogt, %466, %459 : vector<2x5xf32>
    %468 = arith.select %467, %466, %459 : vector<2x5xi1>, vector<2x5xf32>
    %c2_i32_103 = arith.constant 2 : i32
    %469 = vector.broadcast %c2_i32_103 : i32 to vector<2x5xi32>
    %470 = arith.select %467, %469, %461 : vector<2x5xi1>, vector<2x5xi32>
    %471 = vector.extract_strided_slice %444 {offsets = [0, 3], sizes = [2, 1], strides = [1, 1]} : vector<2x5xf32> to vector<2x1xf32>
    %472 = vector.extract_strided_slice %288 {offsets = [3, 0], sizes = [1, 5], strides = [1, 1]} : vector<5x5xf32> to vector<1x5xf32>
    %473 = vector.broadcast %471 : vector<2x1xf32> to vector<2x5xf32>
    %474 = vector.broadcast %472 : vector<1x5xf32> to vector<2x5xf32>
    %475 = arith.addf %473, %474 : vector<2x5xf32>
    %476 = arith.cmpf ogt, %475, %468 : vector<2x5xf32>
    %477 = arith.select %476, %475, %468 : vector<2x5xi1>, vector<2x5xf32>
    %c3_i32_104 = arith.constant 3 : i32
    %478 = vector.broadcast %c3_i32_104 : i32 to vector<2x5xi32>
    %479 = arith.select %476, %478, %470 : vector<2x5xi1>, vector<2x5xi32>
    %480 = vector.extract_strided_slice %444 {offsets = [0, 4], sizes = [2, 1], strides = [1, 1]} : vector<2x5xf32> to vector<2x1xf32>
    %481 = vector.extract_strided_slice %288 {offsets = [4, 0], sizes = [1, 5], strides = [1, 1]} : vector<5x5xf32> to vector<1x5xf32>
    %482 = vector.broadcast %480 : vector<2x1xf32> to vector<2x5xf32>
    %483 = vector.broadcast %481 : vector<1x5xf32> to vector<2x5xf32>
    %484 = arith.addf %482, %483 : vector<2x5xf32>
    %485 = arith.cmpf ogt, %484, %477 : vector<2x5xf32>
    %486 = arith.select %485, %484, %477 : vector<2x5xi1>, vector<2x5xf32>
    %c4_i32_105 = arith.constant 4 : i32
    %487 = vector.broadcast %c4_i32_105 : i32 to vector<2x5xi32>
    %488 = arith.select %485, %487, %479 : vector<2x5xi1>, vector<2x5xi32>
    %cst_106 = arith.constant 5.000000e-01 : f32
    %489 = vector.broadcast %cst_106 : f32 to vector<2x1xf32>
    %490 = arith.cmpf ogt, %446, %489 : vector<2x1xf32>
    %491 = arith.addf %486, %445 : vector<2x5xf32>
    %492 = vector.shape_cast %490 : vector<2x1xi1> to vector<2x1xi1>
    %493 = vector.broadcast %492 : vector<2x1xi1> to vector<2x5xi1>
    %494 = arith.select %493, %491, %444 : vector<2x5xi1>, vector<2x5xf32>
    %495 = vector.extract_strided_slice %291 {offsets = [10, 0], sizes = [2, 5], strides = [1, 1]} : vector<16x5xf32> to vector<2x5xf32>
    %496 = vector.extract_strided_slice %0 {offsets = [0, 5], sizes = [2, 1], strides = [1, 1]} : vector<2x8xf32> to vector<2x1xf32>
    %497 = vector.extract_strided_slice %494 {offsets = [0, 0], sizes = [2, 1], strides = [1, 1]} : vector<2x5xf32> to vector<2x1xf32>
    %498 = vector.extract_strided_slice %288 {offsets = [0, 0], sizes = [1, 5], strides = [1, 1]} : vector<5x5xf32> to vector<1x5xf32>
    %499 = vector.broadcast %497 : vector<2x1xf32> to vector<2x5xf32>
    %500 = vector.broadcast %498 : vector<1x5xf32> to vector<2x5xf32>
    %501 = arith.addf %499, %500 : vector<2x5xf32>
    %c0_i32_107 = arith.constant 0 : i32
    %502 = vector.broadcast %c0_i32_107 : i32 to vector<2x5xi32>
    %503 = vector.extract_strided_slice %494 {offsets = [0, 1], sizes = [2, 1], strides = [1, 1]} : vector<2x5xf32> to vector<2x1xf32>
    %504 = vector.extract_strided_slice %288 {offsets = [1, 0], sizes = [1, 5], strides = [1, 1]} : vector<5x5xf32> to vector<1x5xf32>
    %505 = vector.broadcast %503 : vector<2x1xf32> to vector<2x5xf32>
    %506 = vector.broadcast %504 : vector<1x5xf32> to vector<2x5xf32>
    %507 = arith.addf %505, %506 : vector<2x5xf32>
    %508 = arith.cmpf ogt, %507, %501 : vector<2x5xf32>
    %509 = arith.select %508, %507, %501 : vector<2x5xi1>, vector<2x5xf32>
    %c1_i32_108 = arith.constant 1 : i32
    %510 = vector.broadcast %c1_i32_108 : i32 to vector<2x5xi32>
    %511 = arith.select %508, %510, %502 : vector<2x5xi1>, vector<2x5xi32>
    %512 = vector.extract_strided_slice %494 {offsets = [0, 2], sizes = [2, 1], strides = [1, 1]} : vector<2x5xf32> to vector<2x1xf32>
    %513 = vector.extract_strided_slice %288 {offsets = [2, 0], sizes = [1, 5], strides = [1, 1]} : vector<5x5xf32> to vector<1x5xf32>
    %514 = vector.broadcast %512 : vector<2x1xf32> to vector<2x5xf32>
    %515 = vector.broadcast %513 : vector<1x5xf32> to vector<2x5xf32>
    %516 = arith.addf %514, %515 : vector<2x5xf32>
    %517 = arith.cmpf ogt, %516, %509 : vector<2x5xf32>
    %518 = arith.select %517, %516, %509 : vector<2x5xi1>, vector<2x5xf32>
    %c2_i32_109 = arith.constant 2 : i32
    %519 = vector.broadcast %c2_i32_109 : i32 to vector<2x5xi32>
    %520 = arith.select %517, %519, %511 : vector<2x5xi1>, vector<2x5xi32>
    %521 = vector.extract_strided_slice %494 {offsets = [0, 3], sizes = [2, 1], strides = [1, 1]} : vector<2x5xf32> to vector<2x1xf32>
    %522 = vector.extract_strided_slice %288 {offsets = [3, 0], sizes = [1, 5], strides = [1, 1]} : vector<5x5xf32> to vector<1x5xf32>
    %523 = vector.broadcast %521 : vector<2x1xf32> to vector<2x5xf32>
    %524 = vector.broadcast %522 : vector<1x5xf32> to vector<2x5xf32>
    %525 = arith.addf %523, %524 : vector<2x5xf32>
    %526 = arith.cmpf ogt, %525, %518 : vector<2x5xf32>
    %527 = arith.select %526, %525, %518 : vector<2x5xi1>, vector<2x5xf32>
    %c3_i32_110 = arith.constant 3 : i32
    %528 = vector.broadcast %c3_i32_110 : i32 to vector<2x5xi32>
    %529 = arith.select %526, %528, %520 : vector<2x5xi1>, vector<2x5xi32>
    %530 = vector.extract_strided_slice %494 {offsets = [0, 4], sizes = [2, 1], strides = [1, 1]} : vector<2x5xf32> to vector<2x1xf32>
    %531 = vector.extract_strided_slice %288 {offsets = [4, 0], sizes = [1, 5], strides = [1, 1]} : vector<5x5xf32> to vector<1x5xf32>
    %532 = vector.broadcast %530 : vector<2x1xf32> to vector<2x5xf32>
    %533 = vector.broadcast %531 : vector<1x5xf32> to vector<2x5xf32>
    %534 = arith.addf %532, %533 : vector<2x5xf32>
    %535 = arith.cmpf ogt, %534, %527 : vector<2x5xf32>
    %536 = arith.select %535, %534, %527 : vector<2x5xi1>, vector<2x5xf32>
    %c4_i32_111 = arith.constant 4 : i32
    %537 = vector.broadcast %c4_i32_111 : i32 to vector<2x5xi32>
    %538 = arith.select %535, %537, %529 : vector<2x5xi1>, vector<2x5xi32>
    %cst_112 = arith.constant 5.000000e-01 : f32
    %539 = vector.broadcast %cst_112 : f32 to vector<2x1xf32>
    %540 = arith.cmpf ogt, %496, %539 : vector<2x1xf32>
    %541 = arith.addf %536, %495 : vector<2x5xf32>
    %542 = vector.shape_cast %540 : vector<2x1xi1> to vector<2x1xi1>
    %543 = vector.broadcast %542 : vector<2x1xi1> to vector<2x5xi1>
    %544 = arith.select %543, %541, %494 : vector<2x5xi1>, vector<2x5xf32>
    %545 = vector.extract_strided_slice %291 {offsets = [12, 0], sizes = [2, 5], strides = [1, 1]} : vector<16x5xf32> to vector<2x5xf32>
    %546 = vector.extract_strided_slice %0 {offsets = [0, 6], sizes = [2, 1], strides = [1, 1]} : vector<2x8xf32> to vector<2x1xf32>
    %547 = vector.extract_strided_slice %544 {offsets = [0, 0], sizes = [2, 1], strides = [1, 1]} : vector<2x5xf32> to vector<2x1xf32>
    %548 = vector.extract_strided_slice %288 {offsets = [0, 0], sizes = [1, 5], strides = [1, 1]} : vector<5x5xf32> to vector<1x5xf32>
    %549 = vector.broadcast %547 : vector<2x1xf32> to vector<2x5xf32>
    %550 = vector.broadcast %548 : vector<1x5xf32> to vector<2x5xf32>
    %551 = arith.addf %549, %550 : vector<2x5xf32>
    %c0_i32_113 = arith.constant 0 : i32
    %552 = vector.broadcast %c0_i32_113 : i32 to vector<2x5xi32>
    %553 = vector.extract_strided_slice %544 {offsets = [0, 1], sizes = [2, 1], strides = [1, 1]} : vector<2x5xf32> to vector<2x1xf32>
    %554 = vector.extract_strided_slice %288 {offsets = [1, 0], sizes = [1, 5], strides = [1, 1]} : vector<5x5xf32> to vector<1x5xf32>
    %555 = vector.broadcast %553 : vector<2x1xf32> to vector<2x5xf32>
    %556 = vector.broadcast %554 : vector<1x5xf32> to vector<2x5xf32>
    %557 = arith.addf %555, %556 : vector<2x5xf32>
    %558 = arith.cmpf ogt, %557, %551 : vector<2x5xf32>
    %559 = arith.select %558, %557, %551 : vector<2x5xi1>, vector<2x5xf32>
    %c1_i32_114 = arith.constant 1 : i32
    %560 = vector.broadcast %c1_i32_114 : i32 to vector<2x5xi32>
    %561 = arith.select %558, %560, %552 : vector<2x5xi1>, vector<2x5xi32>
    %562 = vector.extract_strided_slice %544 {offsets = [0, 2], sizes = [2, 1], strides = [1, 1]} : vector<2x5xf32> to vector<2x1xf32>
    %563 = vector.extract_strided_slice %288 {offsets = [2, 0], sizes = [1, 5], strides = [1, 1]} : vector<5x5xf32> to vector<1x5xf32>
    %564 = vector.broadcast %562 : vector<2x1xf32> to vector<2x5xf32>
    %565 = vector.broadcast %563 : vector<1x5xf32> to vector<2x5xf32>
    %566 = arith.addf %564, %565 : vector<2x5xf32>
    %567 = arith.cmpf ogt, %566, %559 : vector<2x5xf32>
    %568 = arith.select %567, %566, %559 : vector<2x5xi1>, vector<2x5xf32>
    %c2_i32_115 = arith.constant 2 : i32
    %569 = vector.broadcast %c2_i32_115 : i32 to vector<2x5xi32>
    %570 = arith.select %567, %569, %561 : vector<2x5xi1>, vector<2x5xi32>
    %571 = vector.extract_strided_slice %544 {offsets = [0, 3], sizes = [2, 1], strides = [1, 1]} : vector<2x5xf32> to vector<2x1xf32>
    %572 = vector.extract_strided_slice %288 {offsets = [3, 0], sizes = [1, 5], strides = [1, 1]} : vector<5x5xf32> to vector<1x5xf32>
    %573 = vector.broadcast %571 : vector<2x1xf32> to vector<2x5xf32>
    %574 = vector.broadcast %572 : vector<1x5xf32> to vector<2x5xf32>
    %575 = arith.addf %573, %574 : vector<2x5xf32>
    %576 = arith.cmpf ogt, %575, %568 : vector<2x5xf32>
    %577 = arith.select %576, %575, %568 : vector<2x5xi1>, vector<2x5xf32>
    %c3_i32_116 = arith.constant 3 : i32
    %578 = vector.broadcast %c3_i32_116 : i32 to vector<2x5xi32>
    %579 = arith.select %576, %578, %570 : vector<2x5xi1>, vector<2x5xi32>
    %580 = vector.extract_strided_slice %544 {offsets = [0, 4], sizes = [2, 1], strides = [1, 1]} : vector<2x5xf32> to vector<2x1xf32>
    %581 = vector.extract_strided_slice %288 {offsets = [4, 0], sizes = [1, 5], strides = [1, 1]} : vector<5x5xf32> to vector<1x5xf32>
    %582 = vector.broadcast %580 : vector<2x1xf32> to vector<2x5xf32>
    %583 = vector.broadcast %581 : vector<1x5xf32> to vector<2x5xf32>
    %584 = arith.addf %582, %583 : vector<2x5xf32>
    %585 = arith.cmpf ogt, %584, %577 : vector<2x5xf32>
    %586 = arith.select %585, %584, %577 : vector<2x5xi1>, vector<2x5xf32>
    %c4_i32_117 = arith.constant 4 : i32
    %587 = vector.broadcast %c4_i32_117 : i32 to vector<2x5xi32>
    %588 = arith.select %585, %587, %579 : vector<2x5xi1>, vector<2x5xi32>
    %cst_118 = arith.constant 5.000000e-01 : f32
    %589 = vector.broadcast %cst_118 : f32 to vector<2x1xf32>
    %590 = arith.cmpf ogt, %546, %589 : vector<2x1xf32>
    %591 = arith.addf %586, %545 : vector<2x5xf32>
    %592 = vector.shape_cast %590 : vector<2x1xi1> to vector<2x1xi1>
    %593 = vector.broadcast %592 : vector<2x1xi1> to vector<2x5xi1>
    %594 = arith.select %593, %591, %544 : vector<2x5xi1>, vector<2x5xf32>
    %595 = vector.extract_strided_slice %291 {offsets = [14, 0], sizes = [2, 5], strides = [1, 1]} : vector<16x5xf32> to vector<2x5xf32>
    %596 = vector.extract_strided_slice %0 {offsets = [0, 7], sizes = [2, 1], strides = [1, 1]} : vector<2x8xf32> to vector<2x1xf32>
    %597 = vector.extract_strided_slice %594 {offsets = [0, 0], sizes = [2, 1], strides = [1, 1]} : vector<2x5xf32> to vector<2x1xf32>
    %598 = vector.extract_strided_slice %288 {offsets = [0, 0], sizes = [1, 5], strides = [1, 1]} : vector<5x5xf32> to vector<1x5xf32>
    %599 = vector.broadcast %597 : vector<2x1xf32> to vector<2x5xf32>
    %600 = vector.broadcast %598 : vector<1x5xf32> to vector<2x5xf32>
    %601 = arith.addf %599, %600 : vector<2x5xf32>
    %c0_i32_119 = arith.constant 0 : i32
    %602 = vector.broadcast %c0_i32_119 : i32 to vector<2x5xi32>
    %603 = vector.extract_strided_slice %594 {offsets = [0, 1], sizes = [2, 1], strides = [1, 1]} : vector<2x5xf32> to vector<2x1xf32>
    %604 = vector.extract_strided_slice %288 {offsets = [1, 0], sizes = [1, 5], strides = [1, 1]} : vector<5x5xf32> to vector<1x5xf32>
    %605 = vector.broadcast %603 : vector<2x1xf32> to vector<2x5xf32>
    %606 = vector.broadcast %604 : vector<1x5xf32> to vector<2x5xf32>
    %607 = arith.addf %605, %606 : vector<2x5xf32>
    %608 = arith.cmpf ogt, %607, %601 : vector<2x5xf32>
    %609 = arith.select %608, %607, %601 : vector<2x5xi1>, vector<2x5xf32>
    %c1_i32_120 = arith.constant 1 : i32
    %610 = vector.broadcast %c1_i32_120 : i32 to vector<2x5xi32>
    %611 = arith.select %608, %610, %602 : vector<2x5xi1>, vector<2x5xi32>
    %612 = vector.extract_strided_slice %594 {offsets = [0, 2], sizes = [2, 1], strides = [1, 1]} : vector<2x5xf32> to vector<2x1xf32>
    %613 = vector.extract_strided_slice %288 {offsets = [2, 0], sizes = [1, 5], strides = [1, 1]} : vector<5x5xf32> to vector<1x5xf32>
    %614 = vector.broadcast %612 : vector<2x1xf32> to vector<2x5xf32>
    %615 = vector.broadcast %613 : vector<1x5xf32> to vector<2x5xf32>
    %616 = arith.addf %614, %615 : vector<2x5xf32>
    %617 = arith.cmpf ogt, %616, %609 : vector<2x5xf32>
    %618 = arith.select %617, %616, %609 : vector<2x5xi1>, vector<2x5xf32>
    %c2_i32_121 = arith.constant 2 : i32
    %619 = vector.broadcast %c2_i32_121 : i32 to vector<2x5xi32>
    %620 = arith.select %617, %619, %611 : vector<2x5xi1>, vector<2x5xi32>
    %621 = vector.extract_strided_slice %594 {offsets = [0, 3], sizes = [2, 1], strides = [1, 1]} : vector<2x5xf32> to vector<2x1xf32>
    %622 = vector.extract_strided_slice %288 {offsets = [3, 0], sizes = [1, 5], strides = [1, 1]} : vector<5x5xf32> to vector<1x5xf32>
    %623 = vector.broadcast %621 : vector<2x1xf32> to vector<2x5xf32>
    %624 = vector.broadcast %622 : vector<1x5xf32> to vector<2x5xf32>
    %625 = arith.addf %623, %624 : vector<2x5xf32>
    %626 = arith.cmpf ogt, %625, %618 : vector<2x5xf32>
    %627 = arith.select %626, %625, %618 : vector<2x5xi1>, vector<2x5xf32>
    %c3_i32_122 = arith.constant 3 : i32
    %628 = vector.broadcast %c3_i32_122 : i32 to vector<2x5xi32>
    %629 = arith.select %626, %628, %620 : vector<2x5xi1>, vector<2x5xi32>
    %630 = vector.extract_strided_slice %594 {offsets = [0, 4], sizes = [2, 1], strides = [1, 1]} : vector<2x5xf32> to vector<2x1xf32>
    %631 = vector.extract_strided_slice %288 {offsets = [4, 0], sizes = [1, 5], strides = [1, 1]} : vector<5x5xf32> to vector<1x5xf32>
    %632 = vector.broadcast %630 : vector<2x1xf32> to vector<2x5xf32>
    %633 = vector.broadcast %631 : vector<1x5xf32> to vector<2x5xf32>
    %634 = arith.addf %632, %633 : vector<2x5xf32>
    %635 = arith.cmpf ogt, %634, %627 : vector<2x5xf32>
    %636 = arith.select %635, %634, %627 : vector<2x5xi1>, vector<2x5xf32>
    %c4_i32_123 = arith.constant 4 : i32
    %637 = vector.broadcast %c4_i32_123 : i32 to vector<2x5xi32>
    %638 = arith.select %635, %637, %629 : vector<2x5xi1>, vector<2x5xi32>
    %cst_124 = arith.constant 5.000000e-01 : f32
    %639 = vector.broadcast %cst_124 : f32 to vector<2x1xf32>
    %640 = arith.cmpf ogt, %596, %639 : vector<2x1xf32>
    %641 = arith.addf %636, %595 : vector<2x5xf32>
    %642 = vector.shape_cast %640 : vector<2x1xi1> to vector<2x1xi1>
    %643 = vector.broadcast %642 : vector<2x1xi1> to vector<2x5xi1>
    %644 = arith.select %643, %641, %594 : vector<2x5xi1>, vector<2x5xf32>
    %645 = vector.broadcast %287 : vector<1x5xf32> to vector<2x5xf32>
    %646 = arith.addf %644, %645 : vector<2x5xf32>
    %647 = tpu.iota {dimensions = array<i32: 1>} : vector<2x5xi32>
    %cst_125 = arith.constant dense<0xFF800000> : vector<2xf32>
    %648 = vector.multi_reduction <maximumf>, %646, %cst_125 [1] : vector<2x5xf32> to vector<2xf32>
    %649 = vector.shape_cast %648 : vector<2xf32> to vector<2x1xf32>
    %650 = vector.broadcast %649 : vector<2x1xf32> to vector<2x5xf32>
    %651 = arith.cmpf oeq, %646, %650 : vector<2x5xf32>
    %c5_i32 = arith.constant 5 : i32
    %652 = vector.broadcast %c5_i32 : i32 to vector<2x5xi32>
    %653 = arith.select %651, %647, %652 : vector<2x5xi1>, vector<2x5xi32>
    %cst_126 = arith.constant dense<2147483647> : vector<2xi32>
    %654 = vector.multi_reduction <minsi>, %653, %cst_126 [1] : vector<2x5xi32> to vector<2xi32>
    %655 = vector.shape_cast %654 : vector<2xi32> to vector<2x1xi32>
    %c0_i32_127 = arith.constant 0 : i32
    %656 = vector.broadcast %c0_i32_127 : i32 to vector<2x1xi32>
    %c-1_i32 = arith.constant -1 : i32
    %657 = vector.broadcast %c-1_i32 : i32 to vector<2x1xi32>
    %658 = vector.extract_strided_slice %0 {offsets = [0, 7], sizes = [2, 1], strides = [1, 1]} : vector<2x8xf32> to vector<2x1xf32>
    %cst_128 = arith.constant 0.000000e+00 : f32
    %659 = vector.broadcast %cst_128 : f32 to vector<2x1xf32>
    %cst_129 = arith.constant 5.000000e-01 : f32
    %660 = vector.broadcast %cst_129 : f32 to vector<2x1xf32>
    %661 = arith.cmpf ogt, %658, %660 : vector<2x1xf32>
    %cst_130 = arith.constant 5.000000e-01 : f32
    %662 = vector.broadcast %cst_130 : f32 to vector<2x1xf32>
    %663 = arith.cmpf ole, %659, %662 : vector<2x1xf32>
    %664 = arith.andi %661, %663 : vector<2x1xi1>
    %cst_131 = arith.constant 5.000000e-01 : f32
    %665 = vector.broadcast %cst_131 : f32 to vector<2x1xf32>
    %666 = arith.cmpf ogt, %658, %665 : vector<2x1xf32>
    %cst_132 = arith.constant 5.000000e-01 : f32
    %667 = vector.broadcast %cst_132 : f32 to vector<2x1xf32>
    %668 = arith.cmpf ogt, %659, %667 : vector<2x1xf32>
    %669 = arith.andi %666, %668 : vector<2x1xi1>
    %670 = arith.select %669, %655, %657 : vector<2x1xi1>, vector<2x1xi32>
    %671 = arith.select %664, %655, %670 : vector<2x1xi1>, vector<2x1xi32>
    %cst_133 = arith.constant 5.000000e-01 : f32
    %672 = vector.broadcast %cst_133 : f32 to vector<2x1xf32>
    %673 = arith.cmpf ogt, %658, %672 : vector<2x1xf32>
    %674 = arith.select %673, %671, %656 : vector<2x1xi1>, vector<2x1xi32>
    %675 = vector.extract_strided_slice %0 {offsets = [0, 6], sizes = [2, 1], strides = [1, 1]} : vector<2x8xf32> to vector<2x1xf32>
    %676 = vector.extract_strided_slice %0 {offsets = [0, 7], sizes = [2, 1], strides = [1, 1]} : vector<2x8xf32> to vector<2x1xf32>
    %677 = vector.broadcast %674 : vector<2x1xi32> to vector<2x5xi32>
    %678 = arith.cmpi eq, %647, %677 : vector<2x5xi32>
    %c0_i32_134 = arith.constant 0 : i32
    %679 = vector.broadcast %c0_i32_134 : i32 to vector<2x5xi32>
    %680 = arith.select %678, %638, %679 : vector<2x5xi1>, vector<2x5xi32>
    %cst_135 = arith.constant dense<0> : vector<2xi32>
    %681 = vector.multi_reduction <add>, %680, %cst_135 [1] : vector<2x5xi32> to vector<2xi32>
    %682 = vector.shape_cast %681 : vector<2xi32> to vector<2x1xi32>
    %cst_136 = arith.constant 5.000000e-01 : f32
    %683 = vector.broadcast %cst_136 : f32 to vector<2x1xf32>
    %684 = arith.cmpf ogt, %675, %683 : vector<2x1xf32>
    %cst_137 = arith.constant 5.000000e-01 : f32
    %685 = vector.broadcast %cst_137 : f32 to vector<2x1xf32>
    %686 = arith.cmpf ole, %676, %685 : vector<2x1xf32>
    %687 = arith.andi %684, %686 : vector<2x1xi1>
    %cst_138 = arith.constant 5.000000e-01 : f32
    %688 = vector.broadcast %cst_138 : f32 to vector<2x1xf32>
    %689 = arith.cmpf ogt, %675, %688 : vector<2x1xf32>
    %cst_139 = arith.constant 5.000000e-01 : f32
    %690 = vector.broadcast %cst_139 : f32 to vector<2x1xf32>
    %691 = arith.cmpf ogt, %676, %690 : vector<2x1xf32>
    %692 = arith.andi %689, %691 : vector<2x1xi1>
    %693 = arith.select %692, %682, %657 : vector<2x1xi1>, vector<2x1xi32>
    %694 = arith.select %687, %655, %693 : vector<2x1xi1>, vector<2x1xi32>
    %cst_140 = arith.constant 5.000000e-01 : f32
    %695 = vector.broadcast %cst_140 : f32 to vector<2x1xf32>
    %696 = arith.cmpf ogt, %675, %695 : vector<2x1xf32>
    %697 = arith.select %696, %694, %674 : vector<2x1xi1>, vector<2x1xi32>
    %698 = vector.extract_strided_slice %0 {offsets = [0, 5], sizes = [2, 1], strides = [1, 1]} : vector<2x8xf32> to vector<2x1xf32>
    %699 = vector.extract_strided_slice %0 {offsets = [0, 6], sizes = [2, 1], strides = [1, 1]} : vector<2x8xf32> to vector<2x1xf32>
    %700 = vector.broadcast %697 : vector<2x1xi32> to vector<2x5xi32>
    %701 = arith.cmpi eq, %647, %700 : vector<2x5xi32>
    %c0_i32_141 = arith.constant 0 : i32
    %702 = vector.broadcast %c0_i32_141 : i32 to vector<2x5xi32>
    %703 = arith.select %701, %588, %702 : vector<2x5xi1>, vector<2x5xi32>
    %cst_142 = arith.constant dense<0> : vector<2xi32>
    %704 = vector.multi_reduction <add>, %703, %cst_142 [1] : vector<2x5xi32> to vector<2xi32>
    %705 = vector.shape_cast %704 : vector<2xi32> to vector<2x1xi32>
    %cst_143 = arith.constant 5.000000e-01 : f32
    %706 = vector.broadcast %cst_143 : f32 to vector<2x1xf32>
    %707 = arith.cmpf ogt, %698, %706 : vector<2x1xf32>
    %cst_144 = arith.constant 5.000000e-01 : f32
    %708 = vector.broadcast %cst_144 : f32 to vector<2x1xf32>
    %709 = arith.cmpf ole, %699, %708 : vector<2x1xf32>
    %710 = arith.andi %707, %709 : vector<2x1xi1>
    %cst_145 = arith.constant 5.000000e-01 : f32
    %711 = vector.broadcast %cst_145 : f32 to vector<2x1xf32>
    %712 = arith.cmpf ogt, %698, %711 : vector<2x1xf32>
    %cst_146 = arith.constant 5.000000e-01 : f32
    %713 = vector.broadcast %cst_146 : f32 to vector<2x1xf32>
    %714 = arith.cmpf ogt, %699, %713 : vector<2x1xf32>
    %715 = arith.andi %712, %714 : vector<2x1xi1>
    %716 = arith.select %715, %705, %657 : vector<2x1xi1>, vector<2x1xi32>
    %717 = arith.select %710, %655, %716 : vector<2x1xi1>, vector<2x1xi32>
    %cst_147 = arith.constant 5.000000e-01 : f32
    %718 = vector.broadcast %cst_147 : f32 to vector<2x1xf32>
    %719 = arith.cmpf ogt, %698, %718 : vector<2x1xf32>
    %720 = arith.select %719, %717, %697 : vector<2x1xi1>, vector<2x1xi32>
    %721 = vector.extract_strided_slice %0 {offsets = [0, 4], sizes = [2, 1], strides = [1, 1]} : vector<2x8xf32> to vector<2x1xf32>
    %722 = vector.extract_strided_slice %0 {offsets = [0, 5], sizes = [2, 1], strides = [1, 1]} : vector<2x8xf32> to vector<2x1xf32>
    %723 = vector.broadcast %720 : vector<2x1xi32> to vector<2x5xi32>
    %724 = arith.cmpi eq, %647, %723 : vector<2x5xi32>
    %c0_i32_148 = arith.constant 0 : i32
    %725 = vector.broadcast %c0_i32_148 : i32 to vector<2x5xi32>
    %726 = arith.select %724, %538, %725 : vector<2x5xi1>, vector<2x5xi32>
    %cst_149 = arith.constant dense<0> : vector<2xi32>
    %727 = vector.multi_reduction <add>, %726, %cst_149 [1] : vector<2x5xi32> to vector<2xi32>
    %728 = vector.shape_cast %727 : vector<2xi32> to vector<2x1xi32>
    %cst_150 = arith.constant 5.000000e-01 : f32
    %729 = vector.broadcast %cst_150 : f32 to vector<2x1xf32>
    %730 = arith.cmpf ogt, %721, %729 : vector<2x1xf32>
    %cst_151 = arith.constant 5.000000e-01 : f32
    %731 = vector.broadcast %cst_151 : f32 to vector<2x1xf32>
    %732 = arith.cmpf ole, %722, %731 : vector<2x1xf32>
    %733 = arith.andi %730, %732 : vector<2x1xi1>
    %cst_152 = arith.constant 5.000000e-01 : f32
    %734 = vector.broadcast %cst_152 : f32 to vector<2x1xf32>
    %735 = arith.cmpf ogt, %721, %734 : vector<2x1xf32>
    %cst_153 = arith.constant 5.000000e-01 : f32
    %736 = vector.broadcast %cst_153 : f32 to vector<2x1xf32>
    %737 = arith.cmpf ogt, %722, %736 : vector<2x1xf32>
    %738 = arith.andi %735, %737 : vector<2x1xi1>
    %739 = arith.select %738, %728, %657 : vector<2x1xi1>, vector<2x1xi32>
    %740 = arith.select %733, %655, %739 : vector<2x1xi1>, vector<2x1xi32>
    %cst_154 = arith.constant 5.000000e-01 : f32
    %741 = vector.broadcast %cst_154 : f32 to vector<2x1xf32>
    %742 = arith.cmpf ogt, %721, %741 : vector<2x1xf32>
    %743 = arith.select %742, %740, %720 : vector<2x1xi1>, vector<2x1xi32>
    %744 = vector.extract_strided_slice %0 {offsets = [0, 3], sizes = [2, 1], strides = [1, 1]} : vector<2x8xf32> to vector<2x1xf32>
    %745 = vector.extract_strided_slice %0 {offsets = [0, 4], sizes = [2, 1], strides = [1, 1]} : vector<2x8xf32> to vector<2x1xf32>
    %746 = vector.broadcast %743 : vector<2x1xi32> to vector<2x5xi32>
    %747 = arith.cmpi eq, %647, %746 : vector<2x5xi32>
    %c0_i32_155 = arith.constant 0 : i32
    %748 = vector.broadcast %c0_i32_155 : i32 to vector<2x5xi32>
    %749 = arith.select %747, %488, %748 : vector<2x5xi1>, vector<2x5xi32>
    %cst_156 = arith.constant dense<0> : vector<2xi32>
    %750 = vector.multi_reduction <add>, %749, %cst_156 [1] : vector<2x5xi32> to vector<2xi32>
    %751 = vector.shape_cast %750 : vector<2xi32> to vector<2x1xi32>
    %cst_157 = arith.constant 5.000000e-01 : f32
    %752 = vector.broadcast %cst_157 : f32 to vector<2x1xf32>
    %753 = arith.cmpf ogt, %744, %752 : vector<2x1xf32>
    %cst_158 = arith.constant 5.000000e-01 : f32
    %754 = vector.broadcast %cst_158 : f32 to vector<2x1xf32>
    %755 = arith.cmpf ole, %745, %754 : vector<2x1xf32>
    %756 = arith.andi %753, %755 : vector<2x1xi1>
    %cst_159 = arith.constant 5.000000e-01 : f32
    %757 = vector.broadcast %cst_159 : f32 to vector<2x1xf32>
    %758 = arith.cmpf ogt, %744, %757 : vector<2x1xf32>
    %cst_160 = arith.constant 5.000000e-01 : f32
    %759 = vector.broadcast %cst_160 : f32 to vector<2x1xf32>
    %760 = arith.cmpf ogt, %745, %759 : vector<2x1xf32>
    %761 = arith.andi %758, %760 : vector<2x1xi1>
    %762 = arith.select %761, %751, %657 : vector<2x1xi1>, vector<2x1xi32>
    %763 = arith.select %756, %655, %762 : vector<2x1xi1>, vector<2x1xi32>
    %cst_161 = arith.constant 5.000000e-01 : f32
    %764 = vector.broadcast %cst_161 : f32 to vector<2x1xf32>
    %765 = arith.cmpf ogt, %744, %764 : vector<2x1xf32>
    %766 = arith.select %765, %763, %743 : vector<2x1xi1>, vector<2x1xi32>
    %767 = vector.extract_strided_slice %0 {offsets = [0, 2], sizes = [2, 1], strides = [1, 1]} : vector<2x8xf32> to vector<2x1xf32>
    %768 = vector.extract_strided_slice %0 {offsets = [0, 3], sizes = [2, 1], strides = [1, 1]} : vector<2x8xf32> to vector<2x1xf32>
    %769 = vector.broadcast %766 : vector<2x1xi32> to vector<2x5xi32>
    %770 = arith.cmpi eq, %647, %769 : vector<2x5xi32>
    %c0_i32_162 = arith.constant 0 : i32
    %771 = vector.broadcast %c0_i32_162 : i32 to vector<2x5xi32>
    %772 = arith.select %770, %438, %771 : vector<2x5xi1>, vector<2x5xi32>
    %cst_163 = arith.constant dense<0> : vector<2xi32>
    %773 = vector.multi_reduction <add>, %772, %cst_163 [1] : vector<2x5xi32> to vector<2xi32>
    %774 = vector.shape_cast %773 : vector<2xi32> to vector<2x1xi32>
    %cst_164 = arith.constant 5.000000e-01 : f32
    %775 = vector.broadcast %cst_164 : f32 to vector<2x1xf32>
    %776 = arith.cmpf ogt, %767, %775 : vector<2x1xf32>
    %cst_165 = arith.constant 5.000000e-01 : f32
    %777 = vector.broadcast %cst_165 : f32 to vector<2x1xf32>
    %778 = arith.cmpf ole, %768, %777 : vector<2x1xf32>
    %779 = arith.andi %776, %778 : vector<2x1xi1>
    %cst_166 = arith.constant 5.000000e-01 : f32
    %780 = vector.broadcast %cst_166 : f32 to vector<2x1xf32>
    %781 = arith.cmpf ogt, %767, %780 : vector<2x1xf32>
    %cst_167 = arith.constant 5.000000e-01 : f32
    %782 = vector.broadcast %cst_167 : f32 to vector<2x1xf32>
    %783 = arith.cmpf ogt, %768, %782 : vector<2x1xf32>
    %784 = arith.andi %781, %783 : vector<2x1xi1>
    %785 = arith.select %784, %774, %657 : vector<2x1xi1>, vector<2x1xi32>
    %786 = arith.select %779, %655, %785 : vector<2x1xi1>, vector<2x1xi32>
    %cst_168 = arith.constant 5.000000e-01 : f32
    %787 = vector.broadcast %cst_168 : f32 to vector<2x1xf32>
    %788 = arith.cmpf ogt, %767, %787 : vector<2x1xf32>
    %789 = arith.select %788, %786, %766 : vector<2x1xi1>, vector<2x1xi32>
    %790 = vector.extract_strided_slice %0 {offsets = [0, 1], sizes = [2, 1], strides = [1, 1]} : vector<2x8xf32> to vector<2x1xf32>
    %791 = vector.extract_strided_slice %0 {offsets = [0, 2], sizes = [2, 1], strides = [1, 1]} : vector<2x8xf32> to vector<2x1xf32>
    %792 = vector.broadcast %789 : vector<2x1xi32> to vector<2x5xi32>
    %793 = arith.cmpi eq, %647, %792 : vector<2x5xi32>
    %c0_i32_169 = arith.constant 0 : i32
    %794 = vector.broadcast %c0_i32_169 : i32 to vector<2x5xi32>
    %795 = arith.select %793, %388, %794 : vector<2x5xi1>, vector<2x5xi32>
    %cst_170 = arith.constant dense<0> : vector<2xi32>
    %796 = vector.multi_reduction <add>, %795, %cst_170 [1] : vector<2x5xi32> to vector<2xi32>
    %797 = vector.shape_cast %796 : vector<2xi32> to vector<2x1xi32>
    %cst_171 = arith.constant 5.000000e-01 : f32
    %798 = vector.broadcast %cst_171 : f32 to vector<2x1xf32>
    %799 = arith.cmpf ogt, %790, %798 : vector<2x1xf32>
    %cst_172 = arith.constant 5.000000e-01 : f32
    %800 = vector.broadcast %cst_172 : f32 to vector<2x1xf32>
    %801 = arith.cmpf ole, %791, %800 : vector<2x1xf32>
    %802 = arith.andi %799, %801 : vector<2x1xi1>
    %cst_173 = arith.constant 5.000000e-01 : f32
    %803 = vector.broadcast %cst_173 : f32 to vector<2x1xf32>
    %804 = arith.cmpf ogt, %790, %803 : vector<2x1xf32>
    %cst_174 = arith.constant 5.000000e-01 : f32
    %805 = vector.broadcast %cst_174 : f32 to vector<2x1xf32>
    %806 = arith.cmpf ogt, %791, %805 : vector<2x1xf32>
    %807 = arith.andi %804, %806 : vector<2x1xi1>
    %808 = arith.select %807, %797, %657 : vector<2x1xi1>, vector<2x1xi32>
    %809 = arith.select %802, %655, %808 : vector<2x1xi1>, vector<2x1xi32>
    %cst_175 = arith.constant 5.000000e-01 : f32
    %810 = vector.broadcast %cst_175 : f32 to vector<2x1xf32>
    %811 = arith.cmpf ogt, %790, %810 : vector<2x1xf32>
    %812 = arith.select %811, %809, %789 : vector<2x1xi1>, vector<2x1xi32>
    %813 = vector.extract_strided_slice %0 {offsets = [0, 0], sizes = [2, 1], strides = [1, 1]} : vector<2x8xf32> to vector<2x1xf32>
    %814 = vector.extract_strided_slice %0 {offsets = [0, 1], sizes = [2, 1], strides = [1, 1]} : vector<2x8xf32> to vector<2x1xf32>
    %815 = vector.broadcast %812 : vector<2x1xi32> to vector<2x5xi32>
    %816 = arith.cmpi eq, %647, %815 : vector<2x5xi32>
    %c0_i32_176 = arith.constant 0 : i32
    %817 = vector.broadcast %c0_i32_176 : i32 to vector<2x5xi32>
    %818 = arith.select %816, %338, %817 : vector<2x5xi1>, vector<2x5xi32>
    %cst_177 = arith.constant dense<0> : vector<2xi32>
    %819 = vector.multi_reduction <add>, %818, %cst_177 [1] : vector<2x5xi32> to vector<2xi32>
    %820 = vector.shape_cast %819 : vector<2xi32> to vector<2x1xi32>
    %cst_178 = arith.constant 5.000000e-01 : f32
    %821 = vector.broadcast %cst_178 : f32 to vector<2x1xf32>
    %822 = arith.cmpf ogt, %813, %821 : vector<2x1xf32>
    %cst_179 = arith.constant 5.000000e-01 : f32
    %823 = vector.broadcast %cst_179 : f32 to vector<2x1xf32>
    %824 = arith.cmpf ole, %814, %823 : vector<2x1xf32>
    %825 = arith.andi %822, %824 : vector<2x1xi1>
    %cst_180 = arith.constant 5.000000e-01 : f32
    %826 = vector.broadcast %cst_180 : f32 to vector<2x1xf32>
    %827 = arith.cmpf ogt, %813, %826 : vector<2x1xf32>
    %cst_181 = arith.constant 5.000000e-01 : f32
    %828 = vector.broadcast %cst_181 : f32 to vector<2x1xf32>
    %829 = arith.cmpf ogt, %814, %828 : vector<2x1xf32>
    %830 = arith.andi %827, %829 : vector<2x1xi1>
    %831 = arith.select %830, %820, %657 : vector<2x1xi1>, vector<2x1xi32>
    %832 = arith.select %825, %655, %831 : vector<2x1xi1>, vector<2x1xi32>
    %833 = tpu.concatenate %832, %809, %786, %763, %740, %717, %694, %671 in 1 : vector<2x1xi32>, vector<2x1xi32>, vector<2x1xi32>, vector<2x1xi32>, vector<2x1xi32>, vector<2x1xi32>, vector<2x1xi32>, vector<2x1xi32> -> vector<2x8xi32>
    %c0_182 = arith.constant 0 : index
    %c0_183 = arith.constant 0 : index
    %834 = vector.load %arg8[%c0_182, %c0_183] : memref<2x8xi32, #tpu.memory_space<vmem>>, vector<2x8xi32>
    tpu.vector_store %arg8[%c0_182, %c0_183], %833 {strides = array<i32>} : memref<2x8xi32, #tpu.memory_space<vmem>>, vector<2x8xi32>,
    return
  }
}

</mosaic_0001>

<llo_original>
// kernel: bertcrf_forward.1
$region0: #{bertcrf_forward.1}
  #allocation0 [shape = 'u32[]', space=smem, size = 0x4, offset = 0x4, fixed_abs, tag = 'smem constant byte address 0x4 - core index']
  #allocation1 [shape = 'u32[72,128]{1,0:T(1,128)}', space=vmem, size = 0x9000, scoped, tag = 'internal scratch']
  %s0 = inlined_call_operand.vmem [shape: s32[16,1], index: 0, kind: input, shape index: {}]
  %s1 = inlined_call_operand.vmem [shape: f32[2,8], index: 1, kind: input, shape index: {}]
  %s2 = inlined_call_operand.vmem [shape: f32[16,16], index: 2, kind: input, shape index: {}]
  %s3 = inlined_call_operand.vmem [shape: f32[122,32], index: 3, kind: input, shape index: {}]
  %s4 = inlined_call_operand.vmem [shape: f32[2,32,192], index: 4, kind: input, shape index: {}]
  %s5 = inlined_call_operand.vmem [shape: f32[2,64,32], index: 5, kind: input, shape index: {}]
  %s6 = inlined_call_operand.vmem [shape: f32[2,8,96], index: 6, kind: input, shape index: {}]
  %s7 = inlined_call_operand.vmem [shape: f32[40,5], index: 7, kind: input, shape index: {}]
  %s8 = inlined_call_operand.hbm [shape: s32[2,8], index: 8, kind: output, shape index: {}]
  %s9 = sld [smem:[#allocation0]]
  $region42: #{bertcrf_forward.1} parent=0
    _
  %s11 = ssub.s32 1, %s9
  %s12 = scalar_select 0, %s11, %s9
  $region1: #{bertcrf_forward.1} parent=0
    #allocation2 [shape = 'u8[1024]{0}', space=vmem, size = 0x400, scoped, tag = 'output window, operand 0, single buffered']
    #allocation3 [shape = 's32[1]{0}', space=sflag, size = 0x4, scoped, tag = 'scoped memory for bertcrf_forward.1']
    %13 = vsyncpa [#allocation3], 0
    // Predicated region
    $region2: #{bertcrf_forward.1} parent=1 // pred_check
      _
    $region3: #{bertcrf_forward.1} parent=1 // pred_check_branch
      %15 = sbr.rel (0) target = $region5
    $region4: #{bertcrf_forward.1} parent=1 // pred_region
      _
    $region5: #{bertcrf_forward.1} parent=1 // pred_fallthru
      _
    // Predicated region
    $region6: #{bertcrf_forward.1} parent=1 // pred_check
      _
    $region7: #{bertcrf_forward.1} parent=1 // pred_check_branch
      %17 = sbr.rel (0) target = $region9
    $region8: #{bertcrf_forward.1} parent=1 // pred_region
      _
    $region9: #{bertcrf_forward.1} parent=1 // pred_fallthru
      _
    // Predicated region
    $region10: #{bertcrf_forward.1} parent=1 // pred_check
      _
    $region11: #{bertcrf_forward.1} parent=1 // pred_check_branch
      %19 = sbr.rel (0) target = $region13
    $region12: #{bertcrf_forward.1} parent=1 // pred_region
      _
    $region13: #{bertcrf_forward.1} parent=1 // pred_fallthru
      _
    // Predicated region
    $region14: #{bertcrf_forward.1} parent=1 // pred_check
      _
    $region15: #{bertcrf_forward.1} parent=1 // pred_check_branch
      %21 = sbr.rel (0) target = $region17
    $region16: #{bertcrf_forward.1} parent=1 // pred_region
      _
    $region17: #{bertcrf_forward.1} parent=1 // pred_fallthru
      _
    // Predicated region
    $region18: #{bertcrf_forward.1} parent=1 // pred_check
      _
    $region19: #{bertcrf_forward.1} parent=1 // pred_check_branch
      %23 = sbr.rel (0) target = $region21
    $region20: #{bertcrf_forward.1} parent=1 // pred_region
      _
    $region21: #{bertcrf_forward.1} parent=1 // pred_fallthru
      _
    // Predicated region
    $region22: #{bertcrf_forward.1} parent=1 // pred_check
      _
    $region23: #{bertcrf_forward.1} parent=1 // pred_check_branch
      %25 = sbr.rel (0) target = $region25
    $region24: #{bertcrf_forward.1} parent=1 // pred_region
      _
    $region25: #{bertcrf_forward.1} parent=1 // pred_fallthru
      _
    // Predicated region
    $region26: #{bertcrf_forward.1} parent=1 // pred_check
      _
    $region27: #{bertcrf_forward.1} parent=1 // pred_check_branch
      %27 = sbr.rel (0) target = $region29
    $region28: #{bertcrf_forward.1} parent=1 // pred_region
      _
    $region29: #{bertcrf_forward.1} parent=1 // pred_fallthru
      _
    // Predicated region
    $region30: #{bertcrf_forward.1} parent=1 // pred_check
      _
    $region31: #{bertcrf_forward.1} parent=1 // pred_check_branch
      %29 = sbr.rel (0) target = $region33
    $region32: #{bertcrf_forward.1} parent=1 // pred_region
      _
    $region33: #{bertcrf_forward.1} parent=1 // pred_fallthru
      _
    %v30 = vld [vmem:[%s1] sm:$0x3]
    %v31 = vld [vmem:[%s2] sm:$0xff]
    %v32 = vld [vmem:[%s2 + $0x8] sm:$0xff]
    %v33 = vld [vmem:[%s3] sm:$0xff]
    %v34 = vld [vmem:[%s3 + $0x8] sm:$0xff]
    %v35 = vld [vmem:[%s3 + $0x10] sm:$0xff]
    %v36 = vld [vmem:[%s3 + $0x18] sm:$0xff]
    %v37 = vld [vmem:[%s3 + $0x20] sm:$0xff]
    %v38 = vld [vmem:[%s3 + $0x28] sm:$0xff]
    %v39 = vld [vmem:[%s3 + $0x30] sm:$0xff]
    %v40 = vld [vmem:[%s3 + $0x38] sm:$0xff]
    %v41 = vld [vmem:[%s3 + $0x40] sm:$0xff]
    %v42 = vld [vmem:[%s3 + $0x48] sm:$0xff]
    %v43 = vld [vmem:[%s3 + $0x50] sm:$0xff]
    %v44 = vld [vmem:[%s3 + $0x58] sm:$0xff]
    %v45 = vld [vmem:[%s3 + $0x60] sm:$0xff]
    %v46 = vld [vmem:[%s3 + $0x68] sm:$0xff]
    %v47 = vld [vmem:[%s3 + $0x70] sm:$0xff]
    %v48 = vld [vmem:[%s3 + $0x78] sm:$0x3]
    %v49 = vld [vmem:[%s0] sm:$0xff]
    %v50 = vld [vmem:[%s0 + $0x8] sm:$0xff]
    %v51 = vlaneseq
    %v52 = vand.u32 %v51, 127
    %53 = vset.pattern.permute.xlu0 0
    %54 = vperm.xlu0 %53, %v49
    %v55 = vpop.permute.xlu0 %54
    %56 = vset.pattern.permute.xlu0 0
    %57 = vperm.xlu0 %56, %v50
    %v58 = vpop.permute.xlu0 %57
    %vm59 = vcmp.eq.s32.totalorder %v55, %v52
    %vm60 = vcmp.eq.s32.totalorder %v58, %v52
    %v61 = vsel %vm59, 1, 0
    %v62 = vsel %vm60, 1, 0
    %v63 = vcvt.s32.f32 %v61
    %v64 = vcvt.s32.f32 %v62
    %vm65 = vcmask 850944
    %v67 = vsel %vm65, %v63, 0
    %v70 = vsel %vm65, %v64, 0
    %72 = vmatpush.msra.mxu0 0.0
    %73 = vmatpush.msra.mxu0 0.0
    %74 = vmatpush.msra.mxu0 0.0
    %75 = vmatpush.msra.mxu0 %v45
    %76 = vmatpush.msra.mxu0 %v44
    %77 = vmatpush.msra.mxu0 %v43
    %78 = vmatpush.msra.mxu0 %v42
    %79 = vmatpush.msra.mxu0 %v41
    %80 = vmatpush.msra.mxu0 %v40
    %81 = vmatpush.msra.mxu0 %v39
    %82 = vmatpush.msra.mxu0 %v38
    %83 = vmatpush.msra.mxu0 %v37
    %84 = vmatpush.msra.mxu0 %v36
    %85 = vmatpush.msra.mxu0 %v35
    %86 = vmatpush.msra.mxu0 %v34
    %87 = vmatpush.msra.mxu0 %v33
    %88 = vmatmul.f32.gmra.mxu0 %v67
    %v89 = vpop.f32.mrf.mxu0
    %v90 = vadd.f32 %v46, %v89
    %91 = vmatmul.f32.gmra.mxu0 %v70
    %v92 = vpop.f32.mrf.mxu0
    %v93 = vadd.f32 %v47, %v92
    %94 = vdwg.mxu0
    %vm95 = vcmask 261120
    %v96 = vsel %vm95, %v90, 0.0
    %97 = vadd.xlane.f32.xlu0 %v96
    %v98 = vpop.xlane.xlu0 %97
    %v99 = vsel %vm95, %v93, 0.0
    %100 = vadd.xlane.f32.xlu0 %v99
    %v101 = vpop.xlane.xlu0 %100
    %v102 = vrcp.pop 32.0
    %v103 = vmul.f32 32.0, %v102
    %v104 = vsub.f32 1.0, %v103
    %v105 = vmul.f32 %v102, %v104
    %v106 = vadd.f32 %v102, %v105
    %vm107 = vweird.f32 %v102
    %v108 = vsel %vm107, %v102, %v106
    %v109 = vmul.f32 %v98, %v108
    %v110 = vmul.f32 %v101, %v108
    %v111 = vsub.f32 %v90, %v109
    %v112 = vsub.f32 %v93, %v110
    %v113 = vmul.f32 %v111, %v111
    %v114 = vmul.f32 %v112, %v112
    %v115 = vsel %vm95, %v113, 0.0
    %116 = vadd.xlane.f32.xlu0 %v115
    %v117 = vpop.xlane.xlu0 %116
    %v118 = vsel %vm95, %v114, 0.0
    %119 = vadd.xlane.f32.xlu0 %v118
    %v120 = vpop.xlane.xlu0 %119
    %v121 = vmul.f32 %v117, %v108
    %v122 = vmul.f32 %v120, %v108
    %v123 = vadd.f32 %v121, 1e-12
    %v124 = vadd.f32 %v122, 1e-12
    %v125 = vrsqrt.pop %v123
    %v126 = vmul.f32 %v125, %v123
    %v127 = vmul.f32 %v126, %v125
    %v128 = vmul.f32 0.5, %v127
    %v129 = vsub.f32 1.5, %v128
    %v130 = vmul.f32 %v125, %v129
    %vm131 = vweird.f32 %v123
    %vm132 = vweird.f32 %v125
    %vm133 = vmor %vm131, %vm132
    %v134 = vsel %vm133, %v125, %v130
    %v135 = vrsqrt.pop %v124
    %v136 = vmul.f32 %v135, %v124
    %v137 = vmul.f32 %v136, %v135
    %v138 = vmul.f32 0.5, %v137
    %v139 = vsub.f32 1.5, %v138
    %v140 = vmul.f32 %v135, %v139
    %vm141 = vweird.f32 %v124
    %vm142 = vweird.f32 %v135
    %vm143 = vmor %vm141, %vm142
    %v144 = vsel %vm143, %v135, %v140
    %v145 = vmul.f32 %v111, %v134
    %v146 = vmul.f32 %v112, %v144
    %v147 = vperm.slane %v48, 0
    %v148 = vmul.f32 %v145, %v147
    %v149 = vmul.f32 %v146, %v147
    %v150 = vperm.slane %v48, 1
    %v151 = vadd.f32 %v148, %v150
    %v152 = vadd.f32 %v149, %v150
    %v153 = vld [vmem:[%s4] sm:$0xff]
    %v154 = vld [vmem:[%s4 + $0x8] sm:$0xff]
    %v155 = vld [vmem:[%s4 + $0x10] sm:$0xff]
    %v156 = vld [vmem:[%s4 + $0x18] sm:$0xff]
    %v157 = vld [vmem:[%s4 + $0x20] sm:$0xff]
    %v158 = vld [vmem:[%s4 + $0x28] sm:$0xff]
    %v159 = vld [vmem:[%s4 + $0x30] sm:$0xff]
    %v160 = vld [vmem:[%s4 + $0x38] sm:$0xff]
    %v161 = vld [vmem:[%s6] sm:$0xff]
    %v162 = vld [vmem:[%s5] sm:$0xff]
    %v163 = vld [vmem:[%s5 + $0x8] sm:$0xff]
    %v164 = vld [vmem:[%s5 + $0x10] sm:$0xff]
    %v165 = vld [vmem:[%s5 + $0x18] sm:$0xff]
    %v166 = vld [vmem:[%s5 + $0x20] sm:$0xff]
    %v167 = vld [vmem:[%s5 + $0x28] sm:$0xff]
    %v168 = vld [vmem:[%s5 + $0x30] sm:$0xff]
    %v169 = vld [vmem:[%s5 + $0x38] sm:$0xff]
    %v170 = vperm.slane %v161, 0
    %v172 = vsel %vm95, %v151, 0
    %v175 = vsel %vm95, %v152, 0
    %177 = vmatpush.msra.mxu0 0.0
    %178 = vmatpush.msra.mxu0 0.0
    %179 = vmatpush.msra.mxu0 0.0
    %180 = vmatpush.msra.mxu0 0.0
    %181 = vmatpush.msra.mxu0 0.0
    %182 = vmatpush.msra.mxu0 0.0
    %183 = vmatpush.msra.mxu0 0.0
    %184 = vmatpush.msra.mxu0 0.0
    %185 = vmatpush.msra.mxu0 0.0
    %186 = vmatpush.msra.mxu0 0.0
    %187 = vmatpush.msra.mxu0 0.0
    %188 = vmatpush.msra.mxu0 0.0
    %189 = vmatpush.msra.mxu0 %v159
    %190 = vmatpush.msra.mxu0 %v157
    %191 = vmatpush.msra.mxu0 %v155
    %192 = vmatpush.msra.mxu0 %v153
    %193 = vmatmul.f32.gmra.mxu0 %v172
    %v194 = vpop.f32.mrf.mxu0
    %v195 = vadd.f32 %v170, %v194
    %196 = vmatmul.f32.gmra.mxu0 %v175
    %v197 = vpop.f32.mrf.mxu0
    %v198 = vadd.f32 %v170, %v197
    %199 = vdwg.mxu0
    %202 = vrot.lane.b32.xlu0 %v195, 96
    %v203 = vpop.permute.xlu0 %202
    %204 = vrot.lane.b32.xlu0 %v198, 96
    %v205 = vpop.permute.xlu0 %204
    %vm206 = vcmask 130048
    %v207 = vsel %vm206, %v195, 0
    %v209 = vsel %vm206, %v198, 0
    %v211 = vsel %vm206, %v203, 0
    %v213 = vsel %vm206, %v205, 0
    %215 = vmatpush.xpose.msra.mxu0 0.0
    %216 = vmatpush.xpose.msra.mxu0 0.0
    %217 = vmatpush.xpose.msra.mxu0 0.0
    %218 = vmatpush.xpose.msra.mxu0 0.0
    %219 = vmatpush.xpose.msra.mxu0 0.0
    %220 = vmatpush.xpose.msra.mxu0 0.0
    %221 = vmatpush.xpose.msra.mxu0 0.0
    %222 = vmatpush.xpose.msra.mxu0 0.0
    %223 = vmatpush.xpose.msra.mxu0 0.0
    %224 = vmatpush.xpose.msra.mxu0 0.0
    %225 = vmatpush.xpose.msra.mxu0 0.0
    %226 = vmatpush.xpose.msra.mxu0 0.0
    %227 = vmatpush.xpose.msra.mxu0 0.0
    %228 = vmatpush.xpose.msra.mxu0 0.0
    %229 = vmatpush.xpose.msra.mxu0 %v213
    %230 = vmatpush.xpose.msra.mxu0 %v211
    %231 = vmatmul.f32.gmra.mxu0 %v207
    %v232 = vpop.f32.mrf.mxu0
    %v233 = vadd.f32 0.0, %v232
    %234 = vmatmul.f32.gmra.mxu0 %v209
    %v235 = vpop.f32.mrf.mxu0
    %v236 = vadd.f32 0.0, %v235
    %237 = vdwg.mxu0
    %v238 = vmul.f32 %v233, 0.25
    %v239 = vmul.f32 %v236, 0.25
    %v240 = vadd.f32 %v238, %v31
    %v241 = vadd.f32 %v239, %v32
    %v242 = vsel %vm206, %v240, -inf
    %243 = vmax.xlane.f32.xlu0 %v242
    %v244 = vpop.xlane.xlu0 %243
    %v245 = vsel %vm206, %v241, -inf
    %246 = vmax.xlane.f32.xlu0 %v245
    %v247 = vpop.xlane.xlu0 %246
    %v248 = vsub.f32 %v240, %v244
    %v249 = vsub.f32 %v241, %v247
    %v250 = vmul.f32 %v248, 1.442695
    %v251 = vpow.pop %v250
    %v252 = vmul.f32 %v249, 1.442695
    %v253 = vpow.pop %v252
    %v254 = vsel %vm206, %v251, 0.0
    %255 = vadd.xlane.f32.xlu0 %v254
    %v256 = vpop.xlane.xlu0 %255
    %v257 = vsel %vm206, %v253, 0.0
    %258 = vadd.xlane.f32.xlu0 %v257
    %v259 = vpop.xlane.xlu0 %258
    %v260 = vrcp.pop %v256
    %v261 = vmul.f32 %v256, %v260
    %v262 = vsub.f32 1.0, %v261
    %v263 = vmul.f32 %v260, %v262
    %v264 = vadd.f32 %v260, %v263
    %vm265 = vweird.f32 %v256
    %vm266 = vweird.f32 %v260
    %vm267 = vmor %vm265, %vm266
    %v268 = vsel %vm267, %v260, %v264
    %v269 = vand.u32 2147483647, %v256
    %vm270 = vcmp.eq.f32.partialorder %v269, 8.507059e+37
    %v271 = vand.u32 %v256, 2147483648
    %v272 = vor.u32 1.1754944e-38, %v271
    %v273 = vsel %vm270, %v272, %v268
    %v274 = vmul.f32 %v251, %v273
    %v275 = vrcp.pop %v259
    %v276 = vmul.f32 %v259, %v275
    %v277 = vsub.f32 1.0, %v276
    %v278 = vmul.f32 %v275, %v277
    %v279 = vadd.f32 %v275, %v278
    %vm280 = vweird.f32 %v259
    %vm281 = vweird.f32 %v275
    %vm282 = vmor %vm280, %vm281
    %v283 = vsel %vm282, %v275, %v279
    %v284 = vand.u32 2147483647, %v259
    %vm285 = vcmp.eq.f32.partialorder %v284, 8.507059e+37
    %v286 = vand.u32 %v259, 2147483648
    %v287 = vor.u32 1.1754944e-38, %v286
    %v288 = vsel %vm285, %v287, %v283
    %v289 = vmul.f32 %v253, %v288
    %290 = vrot.lane.b32.xlu0 %v195, 64
    %v291 = vpop.permute.xlu0 %290
    %292 = vrot.lane.b32.xlu0 %v198, 64
    %v293 = vpop.permute.xlu0 %292
    %v297 = vsel %vm206, %v274, 0
    %v300 = vsel %vm206, %v289, 0
    %302 = vmatpush.msra.mxu0 0.0
    %303 = vmatpush.msra.mxu0 0.0
    %304 = vmatpush.msra.mxu0 0.0
    %305 = vmatpush.msra.mxu0 0.0
    %306 = vmatpush.msra.mxu0 0.0
    %307 = vmatpush.msra.mxu0 0.0
    %308 = vmatpush.msra.mxu0 0.0
    %309 = vmatpush.msra.mxu0 0.0
    %310 = vmatpush.msra.mxu0 0.0
    %311 = vmatpush.msra.mxu0 0.0
    %312 = vmatpush.msra.mxu0 0.0
    %313 = vmatpush.msra.mxu0 0.0
    %314 = vmatpush.msra.mxu0 0.0
    %315 = vmatpush.msra.mxu0 0.0
    %316 = vmatpush.msra.mxu0 %v293
    %317 = vmatpush.msra.mxu0 %v291
    %318 = vmatmul.f32.gmra.mxu0 %v297
    %v319 = vpop.f32.mrf.mxu0
    %v320 = vadd.f32 0.0, %v319
    %321 = vmatmul.f32.gmra.mxu0 %v300
    %v322 = vpop.f32.mrf.mxu0
    %v323 = vadd.f32 0.0, %v322
    %324 = vdwg.mxu0
    %325 = vrot.lane.b32.xlu0 %v195, 112
    %v326 = vpop.permute.xlu0 %325
    %327 = vrot.lane.b32.xlu0 %v198, 112
    %v328 = vpop.permute.xlu0 %327
    %329 = vrot.lane.b32.xlu0 %v195, 80
    %v330 = vpop.permute.xlu0 %329
    %331 = vrot.lane.b32.xlu0 %v198, 80
    %v332 = vpop.permute.xlu0 %331
    %v333 = vsel %vm206, %v326, 0
    %v335 = vsel %vm206, %v328, 0
    %v337 = vsel %vm206, %v330, 0
    %v339 = vsel %vm206, %v332, 0
    %341 = vmatpush.xpose.msra.mxu0 0.0
    %342 = vmatpush.xpose.msra.mxu0 0.0
    %343 = vmatpush.xpose.msra.mxu0 0.0
    %344 = vmatpush.xpose.msra.mxu0 0.0
    %345 = vmatpush.xpose.msra.mxu0 0.0
    %346 = vmatpush.xpose.msra.mxu0 0.0
    %347 = vmatpush.xpose.msra.mxu0 0.0
    %348 = vmatpush.xpose.msra.mxu0 0.0
    %349 = vmatpush.xpose.msra.mxu0 0.0
    %350 = vmatpush.xpose.msra.mxu0 0.0
    %351 = vmatpush.xpose.msra.mxu0 0.0
    %352 = vmatpush.xpose.msra.mxu0 0.0
    %353 = vmatpush.xpose.msra.mxu0 0.0
    %354 = vmatpush.xpose.msra.mxu0 0.0
    %355 = vmatpush.xpose.msra.mxu0 %v339
    %356 = vmatpush.xpose.msra.mxu0 %v337
    %357 = vmatmul.f32.gmra.mxu0 %v333
    %v358 = vpop.f32.mrf.mxu0
    %v359 = vadd.f32 0.0, %v358
    %360 = vmatmul.f32.gmra.mxu0 %v335
    %v361 = vpop.f32.mrf.mxu0
    %v362 = vadd.f32 0.0, %v361
    %363 = vdwg.mxu0
    %v364 = vmul.f32 %v359, 0.25
    %v365 = vmul.f32 %v362, 0.25
    %v366 = vadd.f32 %v364, %v31
    %v367 = vadd.f32 %v365, %v32
    %v368 = vsel %vm206, %v366, -inf
    %369 = vmax.xlane.f32.xlu0 %v368
    %v370 = vpop.xlane.xlu0 %369
    %v371 = vsel %vm206, %v367, -inf
    %372 = vmax.xlane.f32.xlu0 %v371
    %v373 = vpop.xlane.xlu0 %372
    %v374 = vsub.f32 %v366, %v370
    %v375 = vsub.f32 %v367, %v373
    %v376 = vmul.f32 %v374, 1.442695
    %v377 = vpow.pop %v376
    %v378 = vmul.f32 %v375, 1.442695
    %v379 = vpow.pop %v378
    %v380 = vsel %vm206, %v377, 0.0
    %381 = vadd.xlane.f32.xlu0 %v380
    %v382 = vpop.xlane.xlu0 %381
    %v383 = vsel %vm206, %v379, 0.0
    %384 = vadd.xlane.f32.xlu0 %v383
    %v385 = vpop.xlane.xlu0 %384
    %v386 = vrcp.pop %v382
    %v387 = vmul.f32 %v382, %v386
    %v388 = vsub.f32 1.0, %v387
    %v389 = vmul.f32 %v386, %v388
    %v390 = vadd.f32 %v386, %v389
    %vm391 = vweird.f32 %v382
    %vm392 = vweird.f32 %v386
    %vm393 = vmor %vm391, %vm392
    %v394 = vsel %vm393, %v386, %v390
    %v395 = vand.u32 2147483647, %v382
    %vm396 = vcmp.eq.f32.partialorder %v395, 8.507059e+37
    %v397 = vand.u32 %v382, 2147483648
    %v398 = vor.u32 1.1754944e-38, %v397
    %v399 = vsel %vm396, %v398, %v394
    %v400 = vmul.f32 %v377, %v399
    %v401 = vrcp.pop %v385
    %v402 = vmul.f32 %v385, %v401
    %v403 = vsub.f32 1.0, %v402
    %v404 = vmul.f32 %v401, %v403
    %v405 = vadd.f32 %v401, %v404
    %vm406 = vweird.f32 %v385
    %vm407 = vweird.f32 %v401
    %vm408 = vmor %vm406, %vm407
    %v409 = vsel %vm408, %v401, %v405
    %v410 = vand.u32 2147483647, %v385
    %vm411 = vcmp.eq.f32.partialorder %v410, 8.507059e+37
    %v412 = vand.u32 %v385, 2147483648
    %v413 = vor.u32 1.1754944e-38, %v412
    %v414 = vsel %vm411, %v413, %v409
    %v415 = vmul.f32 %v379, %v414
    %416 = vrot.lane.b32.xlu0 %v195, 48
    %v417 = vpop.permute.xlu0 %416
    %418 = vrot.lane.b32.xlu0 %v198, 48
    %v419 = vpop.permute.xlu0 %418
    %v423 = vsel %vm206, %v400, 0
    %v426 = vsel %vm206, %v415, 0
    %428 = vmatpush.msra.mxu0 0.0
    %429 = vmatpush.msra.mxu0 0.0
    %430 = vmatpush.msra.mxu0 0.0
    %431 = vmatpush.msra.mxu0 0.0
    %432 = vmatpush.msra.mxu0 0.0
    %433 = vmatpush.msra.mxu0 0.0
    %434 = vmatpush.msra.mxu0 0.0
    %435 = vmatpush.msra.mxu0 0.0
    %436 = vmatpush.msra.mxu0 0.0
    %437 = vmatpush.msra.mxu0 0.0
    %438 = vmatpush.msra.mxu0 0.0
    %439 = vmatpush.msra.mxu0 0.0
    %440 = vmatpush.msra.mxu0 0.0
    %441 = vmatpush.msra.mxu0 0.0
    %442 = vmatpush.msra.mxu0 %v419
    %443 = vmatpush.msra.mxu0 %v417
    %444 = vmatmul.f32.gmra.mxu0 %v423
    %v445 = vpop.f32.mrf.mxu0
    %v446 = vadd.f32 0.0, %v445
    %447 = vmatmul.f32.gmra.mxu0 %v426
    %v448 = vpop.f32.mrf.mxu0
    %v449 = vadd.f32 0.0, %v448
    %450 = vdwg.mxu0
    %453 = vrot.lane.b32.xlu0 %v446, 16
    %v454 = vpop.permute.xlu0 %453
    %455 = vrot.lane.b32.xlu0 %v449, 16
    %v456 = vpop.permute.xlu0 %455
    %v459 = vsel %vm206, %v320, %v454
    %v460 = vsel %vm206, %v323, %v456
    %v461 = vperm.slane %v161, 1
    %466 = vrot.lane.b32.xlu0 %v153, 32
    %v467 = vpop.permute.xlu0 %466
    %468 = vrot.lane.b32.xlu0 %v155, 32
    %v469 = vpop.permute.xlu0 %468
    %470 = vrot.lane.b32.xlu0 %v157, 32
    %v471 = vpop.permute.xlu0 %470
    %472 = vrot.lane.b32.xlu0 %v159, 32
    %v473 = vpop.permute.xlu0 %472
    %v479 = vsel %vm95, %v459, 0
    %v482 = vsel %vm95, %v460, 0
    %484 = vmatpush.msra.mxu0 0.0
    %485 = vmatpush.msra.mxu0 0.0
    %486 = vmatpush.msra.mxu0 0.0
    %487 = vmatpush.msra.mxu0 0.0
    %488 = vmatpush.msra.mxu0 0.0
    %489 = vmatpush.msra.mxu0 0.0
    %490 = vmatpush.msra.mxu0 0.0
    %491 = vmatpush.msra.mxu0 0.0
    %492 = vmatpush.msra.mxu0 0.0
    %493 = vmatpush.msra.mxu0 0.0
    %494 = vmatpush.msra.mxu0 0.0
    %495 = vmatpush.msra.mxu0 0.0
    %496 = vmatpush.msra.mxu0 %v473
    %497 = vmatpush.msra.mxu0 %v471
    %498 = vmatpush.msra.mxu0 %v469
    %499 = vmatpush.msra.mxu0 %v467
    %500 = vmatmul.f32.gmra.mxu0 %v479
    %v501 = vpop.f32.mrf.mxu0
    %v502 = vadd.f32 %v461, %v501
    %503 = vmatmul.f32.gmra.mxu0 %v482
    %v504 = vpop.f32.mrf.mxu0
    %v505 = vadd.f32 %v461, %v504
    %506 = vdwg.mxu0
    %v507 = vadd.f32 %v502, %v151
    %v508 = vadd.f32 %v505, %v152
    %v509 = vsel %vm95, %v507, 0.0
    %510 = vadd.xlane.f32.xlu0 %v509
    %v511 = vpop.xlane.xlu0 %510
    %v512 = vsel %vm95, %v508, 0.0
    %513 = vadd.xlane.f32.xlu0 %v512
    %v514 = vpop.xlane.xlu0 %513
    %v515 = vmul.f32 %v511, %v108
    %v516 = vmul.f32 %v514, %v108
    %v517 = vsub.f32 %v507, %v515
    %v518 = vsub.f32 %v508, %v516
    %v519 = vmul.f32 %v517, %v517
    %v520 = vmul.f32 %v518, %v518
    %v521 = vsel %vm95, %v519, 0.0
    %522 = vadd.xlane.f32.xlu0 %v521
    %v523 = vpop.xlane.xlu0 %522
    %v524 = vsel %vm95, %v520, 0.0
    %525 = vadd.xlane.f32.xlu0 %v524
    %v526 = vpop.xlane.xlu0 %525
    %v527 = vmul.f32 %v523, %v108
    %v528 = vmul.f32 %v526, %v108
    %v529 = vadd.f32 %v527, 1e-12
    %v530 = vadd.f32 %v528, 1e-12
    %v531 = vrsqrt.pop %v529
    %v532 = vmul.f32 %v531, %v529
    %v533 = vmul.f32 %v532, %v531
    %v534 = vmul.f32 0.5, %v533
    %v535 = vsub.f32 1.5, %v534
    %v536 = vmul.f32 %v531, %v535
    %vm537 = vweird.f32 %v529
    %vm538 = vweird.f32 %v531
    %vm539 = vmor %vm537, %vm538
    %v540 = vsel %vm539, %v531, %v536
    %v541 = vrsqrt.pop %v530
    %v542 = vmul.f32 %v541, %v530
    %v543 = vmul.f32 %v542, %v541
    %v544 = vmul.f32 0.5, %v543
    %v545 = vsub.f32 1.5, %v544
    %v546 = vmul.f32 %v541, %v545
    %vm547 = vweird.f32 %v530
    %vm548 = vweird.f32 %v541
    %vm549 = vmor %vm547, %vm548
    %v550 = vsel %vm549, %v541, %v546
    %v551 = vmul.f32 %v517, %v540
    %v552 = vmul.f32 %v518, %v550
    %v553 = vperm.slane %v161, 2
    %v554 = vmul.f32 %v551, %v553
    %v555 = vmul.f32 %v552, %v553
    %v556 = vperm.slane %v161, 3
    %v557 = vadd.f32 %v554, %v556
    %v558 = vadd.f32 %v555, %v556
    %v559 = vperm.slane %v161, 4
    %v561 = vsel %vm95, %v557, 0
    %v564 = vsel %vm95, %v558, 0
    %566 = vmatpush.msra.mxu0 0.0
    %567 = vmatpush.msra.mxu0 0.0
    %568 = vmatpush.msra.mxu0 0.0
    %569 = vmatpush.msra.mxu0 0.0
    %570 = vmatpush.msra.mxu0 0.0
    %571 = vmatpush.msra.mxu0 0.0
    %572 = vmatpush.msra.mxu0 0.0
    %573 = vmatpush.msra.mxu0 0.0
    %574 = vmatpush.msra.mxu0 0.0
    %575 = vmatpush.msra.mxu0 0.0
    %576 = vmatpush.msra.mxu0 0.0
    %577 = vmatpush.msra.mxu0 0.0
    %578 = vmatpush.msra.mxu0 %v160
    %579 = vmatpush.msra.mxu0 %v158
    %580 = vmatpush.msra.mxu0 %v156
    %581 = vmatpush.msra.mxu0 %v154
    %582 = vmatmul.f32.gmra.mxu0 %v561
    %v583 = vpop.f32.mrf.mxu0
    %v584 = vadd.f32 %v559, %v583
    %585 = vmatmul.f32.gmra.mxu0 %v564
    %v586 = vpop.f32.mrf.mxu0
    %v587 = vadd.f32 %v559, %v586
    %588 = vdwg.mxu0
    %v589 = vmul.f32 %v584, %v584
    %v590 = vmul.f32 %v587, %v587
    %v591 = vmul.f32 %v584, %v589
    %v592 = vmul.f32 %v587, %v590
    %v593 = vmul.f32 %v591, 0.044715
    %v594 = vmul.f32 %v592, 0.044715
    %v595 = vadd.f32 %v584, %v593
    %v596 = vadd.f32 %v587, %v594
    %v597 = vmul.f32 %v595, 0.7978846
    %v598 = vmul.f32 %v596, 0.7978846
    %v599 = vtanh.pop %v597
    %v600 = vtanh.pop %v598
    %v601 = vadd.f32 %v599, 1.0
    %v602 = vadd.f32 %v600, 1.0
    %v603 = vmul.f32 %v601, 0.5
    %v604 = vmul.f32 %v602, 0.5
    %v605 = vmul.f32 %v584, %v603
    %v606 = vmul.f32 %v587, %v604
    %v607 = vperm.slane %v161, 5
    %vm608 = vcmask 523264
    %v610 = vsel %vm608, %v605, 0
    %v613 = vsel %vm608, %v606, 0
    %615 = vmatpush.msra.mxu0 0.0
    %616 = vmatpush.msra.mxu0 0.0
    %617 = vmatpush.msra.mxu0 0.0
    %618 = vmatpush.msra.mxu0 0.0
    %619 = vmatpush.msra.mxu0 0.0
    %620 = vmatpush.msra.mxu0 0.0
    %621 = vmatpush.msra.mxu0 0.0
    %622 = vmatpush.msra.mxu0 0.0
    %623 = vmatpush.msra.mxu0 %v169
    %624 = vmatpush.msra.mxu0 %v168
    %625 = vmatpush.msra.mxu0 %v167
    %626 = vmatpush.msra.mxu0 %v166
    %627 = vmatpush.msra.mxu0 %v165
    %628 = vmatpush.msra.mxu0 %v164
    %629 = vmatpush.msra.mxu0 %v163
    %630 = vmatpush.msra.mxu0 %v162
    %631 = vmatmul.f32.gmra.mxu0 %v610
    %v632 = vpop.f32.mrf.mxu0
    %v633 = vadd.f32 %v607, %v632
    %634 = vmatmul.f32.gmra.mxu0 %v613
    %v635 = vpop.f32.mrf.mxu0
    %v636 = vadd.f32 %v607, %v635
    %637 = vdwg.mxu0
    %v638 = vadd.f32 %v633, %v557
    %v639 = vadd.f32 %v636, %v558
    %v640 = vsel %vm95, %v638, 0.0
    %641 = vadd.xlane.f32.xlu0 %v640
    %v642 = vpop.xlane.xlu0 %641
    %v643 = vsel %vm95, %v639, 0.0
    %644 = vadd.xlane.f32.xlu0 %v643
    %v645 = vpop.xlane.xlu0 %644
    %v646 = vmul.f32 %v642, %v108
    %v647 = vmul.f32 %v645, %v108
    %v648 = vsub.f32 %v638, %v646
    %v649 = vsub.f32 %v639, %v647
    %v650 = vmul.f32 %v648, %v648
    %v651 = vmul.f32 %v649, %v649
    %v652 = vsel %vm95, %v650, 0.0
    %653 = vadd.xlane.f32.xlu0 %v652
    %v654 = vpop.xlane.xlu0 %653
    %v655 = vsel %vm95, %v651, 0.0
    %656 = vadd.xlane.f32.xlu0 %v655
    %v657 = vpop.xlane.xlu0 %656
    %v658 = vmul.f32 %v654, %v108
    %v659 = vmul.f32 %v657, %v108
    %v660 = vadd.f32 %v658, 1e-12
    %v661 = vadd.f32 %v659, 1e-12
    %v662 = vrsqrt.pop %v660
    %v663 = vmul.f32 %v662, %v660
    %v664 = vmul.f32 %v663, %v662
    %v665 = vmul.f32 0.5, %v664
    %v666 = vsub.f32 1.5, %v665
    %v667 = vmul.f32 %v662, %v666
    %vm668 = vweird.f32 %v660
    %vm669 = vweird.f32 %v662
    %vm670 = vmor %vm668, %vm669
    %v671 = vsel %vm670, %v662, %v667
    %v672 = vrsqrt.pop %v661
    %v673 = vmul.f32 %v672, %v661
    %v674 = vmul.f32 %v673, %v672
    %v675 = vmul.f32 0.5, %v674
    %v676 = vsub.f32 1.5, %v675
    %v677 = vmul.f32 %v672, %v676
    %vm678 = vweird.f32 %v661
    %vm679 = vweird.f32 %v672
    %vm680 = vmor %vm678, %vm679
    %v681 = vsel %vm680, %v672, %v677
    %v682 = vmul.f32 %v648, %v671
    %v683 = vmul.f32 %v649, %v681
    %v684 = vperm.slane %v161, 6
    %v685 = vmul.f32 %v682, %v684
    %v686 = vmul.f32 %v683, %v684
    %v687 = vperm.slane %v161, 7
    %v688 = vadd.f32 %v685, %v687
    %v689 = vadd.f32 %v686, %v687
    %s690 = scalar_lea.vmem %s4, 64
    %v691 = vld [vmem:[%s690] sm:$0xff]
    %v692 = vld [vmem:[%s690 + $0x8] sm:$0xff]
    %v693 = vld [vmem:[%s690 + $0x10] sm:$0xff]
    %v694 = vld [vmem:[%s690 + $0x18] sm:$0xff]
    %v695 = vld [vmem:[%s690 + $0x20] sm:$0xff]
    %v696 = vld [vmem:[%s690 + $0x28] sm:$0xff]
    %v697 = vld [vmem:[%s690 + $0x30] sm:$0xff]
    %v698 = vld [vmem:[%s690 + $0x38] sm:$0xff]
    %s699 = scalar_lea.vmem %s6, 8
    %v700 = vld [vmem:[%s699] sm:$0xff]
    %s701 = scalar_lea.vmem %s5, 64
    %v702 = vld [vmem:[%s701] sm:$0xff]
    %v703 = vld [vmem:[%s701 + $0x8] sm:$0xff]
    %v704 = vld [vmem:[%s701 + $0x10] sm:$0xff]
    %v705 = vld [vmem:[%s701 + $0x18] sm:$0xff]
    %v706 = vld [vmem:[%s701 + $0x20] sm:$0xff]
    %v707 = vld [vmem:[%s701 + $0x28] sm:$0xff]
    %v708 = vld [vmem:[%s701 + $0x30] sm:$0xff]
    %v709 = vld [vmem:[%s701 + $0x38] sm:$0xff]
    %v710 = vperm.slane %v700, 0
    %v712 = vsel %vm95, %v688, 0
    %v715 = vsel %vm95, %v689, 0
    %717 = vmatpush.msra.mxu0 0.0
    %718 = vmatpush.msra.mxu0 0.0
    %719 = vmatpush.msra.mxu0 0.0
    %720 = vmatpush.msra.mxu0 0.0
    %721 = vmatpush.msra.mxu0 0.0
    %722 = vmatpush.msra.mxu0 0.0
    %723 = vmatpush.msra.mxu0 0.0
    %724 = vmatpush.msra.mxu0 0.0
    %725 = vmatpush.msra.mxu0 0.0
    %726 = vmatpush.msra.mxu0 0.0
    %727 = vmatpush.msra.mxu0 0.0
    %728 = vmatpush.msra.mxu0 0.0
    %729 = vmatpush.msra.mxu0 %v697
    %730 = vmatpush.msra.mxu0 %v695
    %731 = vmatpush.msra.mxu0 %v693
    %732 = vmatpush.msra.mxu0 %v691
    %733 = vmatmul.f32.gmra.mxu0 %v712
    %v734 = vpop.f32.mrf.mxu0
    %v735 = vadd.f32 %v710, %v734
    %736 = vmatmul.f32.gmra.mxu0 %v715
    %v737 = vpop.f32.mrf.mxu0
    %v738 = vadd.f32 %v710, %v737
    %739 = vdwg.mxu0
    %742 = vrot.lane.b32.xlu0 %v735, 96
    %v743 = vpop.permute.xlu0 %742
    %744 = vrot.lane.b32.xlu0 %v738, 96
    %v745 = vpop.permute.xlu0 %744
    %v746 = vsel %vm206, %v735, 0
    %v748 = vsel %vm206, %v738, 0
    %v750 = vsel %vm206, %v743, 0
    %v752 = vsel %vm206, %v745, 0
    %754 = vmatpush.xpose.msra.mxu0 0.0
    %755 = vmatpush.xpose.msra.mxu0 0.0
    %756 = vmatpush.xpose.msra.mxu0 0.0
    %757 = vmatpush.xpose.msra.mxu0 0.0
    %758 = vmatpush.xpose.msra.mxu0 0.0
    %759 = vmatpush.xpose.msra.mxu0 0.0
    %760 = vmatpush.xpose.msra.mxu0 0.0
    %761 = vmatpush.xpose.msra.mxu0 0.0
    %762 = vmatpush.xpose.msra.mxu0 0.0
    %763 = vmatpush.xpose.msra.mxu0 0.0
    %764 = vmatpush.xpose.msra.mxu0 0.0
    %765 = vmatpush.xpose.msra.mxu0 0.0
    %766 = vmatpush.xpose.msra.mxu0 0.0
    %767 = vmatpush.xpose.msra.mxu0 0.0
    %768 = vmatpush.xpose.msra.mxu0 %v752
    %769 = vmatpush.xpose.msra.mxu0 %v750
    %770 = vmatmul.f32.gmra.mxu0 %v746
    %v771 = vpop.f32.mrf.mxu0
    %v772 = vadd.f32 0.0, %v771
    %773 = vmatmul.f32.gmra.mxu0 %v748
    %v774 = vpop.f32.mrf.mxu0
    %v775 = vadd.f32 0.0, %v774
    %776 = vdwg.mxu0
    %v777 = vmul.f32 %v772, 0.25
    %v778 = vmul.f32 %v775, 0.25
    %v779 = vadd.f32 %v777, %v31
    %v780 = vadd.f32 %v778, %v32
    %v781 = vsel %vm206, %v779, -inf
    %782 = vmax.xlane.f32.xlu0 %v781
    %v783 = vpop.xlane.xlu0 %782
    %v784 = vsel %vm206, %v780, -inf
    %785 = vmax.xlane.f32.xlu0 %v784
    %v786 = vpop.xlane.xlu0 %785
    %v787 = vsub.f32 %v779, %v783
    %v788 = vsub.f32 %v780, %v786
    %v789 = vmul.f32 %v787, 1.442695
    %v790 = vpow.pop %v789
    %v791 = vmul.f32 %v788, 1.442695
    %v792 = vpow.pop %v791
    %v793 = vsel %vm206, %v790, 0.0
    %794 = vadd.xlane.f32.xlu0 %v793
    %v795 = vpop.xlane.xlu0 %794
    %v796 = vsel %vm206, %v792, 0.0
    %797 = vadd.xlane.f32.xlu0 %v796
    %v798 = vpop.xlane.xlu0 %797
    %v799 = vrcp.pop %v795
    %v800 = vmul.f32 %v795, %v799
    %v801 = vsub.f32 1.0, %v800
    %v802 = vmul.f32 %v799, %v801
    %v803 = vadd.f32 %v799, %v802
    %vm804 = vweird.f32 %v795
    %vm805 = vweird.f32 %v799
    %vm806 = vmor %vm804, %vm805
    %v807 = vsel %vm806, %v799, %v803
    %v808 = vand.u32 2147483647, %v795
    %vm809 = vcmp.eq.f32.partialorder %v808, 8.507059e+37
    %v810 = vand.u32 %v795, 2147483648
    %v811 = vor.u32 1.1754944e-38, %v810
    %v812 = vsel %vm809, %v811, %v807
    %v813 = vmul.f32 %v790, %v812
    %v814 = vrcp.pop %v798
    %v815 = vmul.f32 %v798, %v814
    %v816 = vsub.f32 1.0, %v815
    %v817 = vmul.f32 %v814, %v816
    %v818 = vadd.f32 %v814, %v817
    %vm819 = vweird.f32 %v798
    %vm820 = vweird.f32 %v814
    %vm821 = vmor %vm819, %vm820
    %v822 = vsel %vm821, %v814, %v818
    %v823 = vand.u32 2147483647, %v798
    %vm824 = vcmp.eq.f32.partialorder %v823, 8.507059e+37
    %v825 = vand.u32 %v798, 2147483648
    %v826 = vor.u32 1.1754944e-38, %v825
    %v827 = vsel %vm824, %v826, %v822
    %v828 = vmul.f32 %v792, %v827
    %829 = vrot.lane.b32.xlu0 %v735, 64
    %v830 = vpop.permute.xlu0 %829
    %831 = vrot.lane.b32.xlu0 %v738, 64
    %v832 = vpop.permute.xlu0 %831
    %v836 = vsel %vm206, %v813, 0
    %v839 = vsel %vm206, %v828, 0
    %841 = vmatpush.msra.mxu0 0.0
    %842 = vmatpush.msra.mxu0 0.0
    %843 = vmatpush.msra.mxu0 0.0
    %844 = vmatpush.msra.mxu0 0.0
    %845 = vmatpush.msra.mxu0 0.0
    %846 = vmatpush.msra.mxu0 0.0
    %847 = vmatpush.msra.mxu0 0.0
    %848 = vmatpush.msra.mxu0 0.0
    %849 = vmatpush.msra.mxu0 0.0
    %850 = vmatpush.msra.mxu0 0.0
    %851 = vmatpush.msra.mxu0 0.0
    %852 = vmatpush.msra.mxu0 0.0
    %853 = vmatpush.msra.mxu0 0.0
    %854 = vmatpush.msra.mxu0 0.0
    %855 = vmatpush.msra.mxu0 %v832
    %856 = vmatpush.msra.mxu0 %v830
    %857 = vmatmul.f32.gmra.mxu0 %v836
    %v858 = vpop.f32.mrf.mxu0
    %v859 = vadd.f32 0.0, %v858
    %860 = vmatmul.f32.gmra.mxu0 %v839
    %v861 = vpop.f32.mrf.mxu0
    %v862 = vadd.f32 0.0, %v861
    %863 = vdwg.mxu0
    %864 = vrot.lane.b32.xlu0 %v735, 112
    %v865 = vpop.permute.xlu0 %864
    %866 = vrot.lane.b32.xlu0 %v738, 112
    %v867 = vpop.permute.xlu0 %866
    %868 = vrot.lane.b32.xlu0 %v735, 80
    %v869 = vpop.permute.xlu0 %868
    %870 = vrot.lane.b32.xlu0 %v738, 80
    %v871 = vpop.permute.xlu0 %870
    %v872 = vsel %vm206, %v865, 0
    %v874 = vsel %vm206, %v867, 0
    %v876 = vsel %vm206, %v869, 0
    %v878 = vsel %vm206, %v871, 0
    %880 = vmatpush.xpose.msra.mxu0 0.0
    %881 = vmatpush.xpose.msra.mxu0 0.0
    %882 = vmatpush.xpose.msra.mxu0 0.0
    %883 = vmatpush.xpose.msra.mxu0 0.0
    %884 = vmatpush.xpose.msra.mxu0 0.0
    %885 = vmatpush.xpose.msra.mxu0 0.0
    %886 = vmatpush.xpose.msra.mxu0 0.0
    %887 = vmatpush.xpose.msra.mxu0 0.0
    %888 = vmatpush.xpose.msra.mxu0 0.0
    %889 = vmatpush.xpose.msra.mxu0 0.0
    %890 = vmatpush.xpose.msra.mxu0 0.0
    %891 = vmatpush.xpose.msra.mxu0 0.0
    %892 = vmatpush.xpose.msra.mxu0 0.0
    %893 = vmatpush.xpose.msra.mxu0 0.0
    %894 = vmatpush.xpose.msra.mxu0 %v878
    %895 = vmatpush.xpose.msra.mxu0 %v876
    %896 = vmatmul.f32.gmra.mxu0 %v872
    %v897 = vpop.f32.mrf.mxu0
    %v898 = vadd.f32 0.0, %v897
    %899 = vmatmul.f32.gmra.mxu0 %v874
    %v900 = vpop.f32.mrf.mxu0
    %v901 = vadd.f32 0.0, %v900
    %902 = vdwg.mxu0
    %v903 = vmul.f32 %v898, 0.25
    %v904 = vmul.f32 %v901, 0.25
    %v905 = vadd.f32 %v903, %v31
    %v906 = vadd.f32 %v904, %v32
    %v907 = vsel %vm206, %v905, -inf
    %908 = vmax.xlane.f32.xlu0 %v907
    %v909 = vpop.xlane.xlu0 %908
    %v910 = vsel %vm206, %v906, -inf
    %911 = vmax.xlane.f32.xlu0 %v910
    %v912 = vpop.xlane.xlu0 %911
    %v913 = vsub.f32 %v905, %v909
    %v914 = vsub.f32 %v906, %v912
    %v915 = vmul.f32 %v913, 1.442695
    %v916 = vpow.pop %v915
    %v917 = vmul.f32 %v914, 1.442695
    %v918 = vpow.pop %v917
    %v919 = vsel %vm206, %v916, 0.0
    %920 = vadd.xlane.f32.xlu0 %v919
    %v921 = vpop.xlane.xlu0 %920
    %v922 = vsel %vm206, %v918, 0.0
    %923 = vadd.xlane.f32.xlu0 %v922
    %v924 = vpop.xlane.xlu0 %923
    %v925 = vrcp.pop %v921
    %v926 = vmul.f32 %v921, %v925
    %v927 = vsub.f32 1.0, %v926
    %v928 = vmul.f32 %v925, %v927
    %v929 = vadd.f32 %v925, %v928
    %vm930 = vweird.f32 %v921
    %vm931 = vweird.f32 %v925
    %vm932 = vmor %vm930, %vm931
    %v933 = vsel %vm932, %v925, %v929
    %v934 = vand.u32 2147483647, %v921
    %vm935 = vcmp.eq.f32.partialorder %v934, 8.507059e+37
    %v936 = vand.u32 %v921, 2147483648
    %v937 = vor.u32 1.1754944e-38, %v936
    %v938 = vsel %vm935, %v937, %v933
    %v939 = vmul.f32 %v916, %v938
    %v940 = vrcp.pop %v924
    %v941 = vmul.f32 %v924, %v940
    %v942 = vsub.f32 1.0, %v941
    %v943 = vmul.f32 %v940, %v942
    %v944 = vadd.f32 %v940, %v943
    %vm945 = vweird.f32 %v924
    %vm946 = vweird.f32 %v940
    %vm947 = vmor %vm945, %vm946
    %v948 = vsel %vm947, %v940, %v944
    %v949 = vand.u32 2147483647, %v924
    %vm950 = vcmp.eq.f32.partialorder %v949, 8.507059e+37
    %v951 = vand.u32 %v924, 2147483648
    %v952 = vor.u32 1.1754944e-38, %v951
    %v953 = vsel %vm950, %v952, %v948
    %v954 = vmul.f32 %v918, %v953
    %955 = vrot.lane.b32.xlu0 %v735, 48
    %v956 = vpop.permute.xlu0 %955
    %957 = vrot.lane.b32.xlu0 %v738, 48
    %v958 = vpop.permute.xlu0 %957
    %v962 = vsel %vm206, %v939, 0
    %v965 = vsel %vm206, %v954, 0
    %967 = vmatpush.msra.mxu0 0.0
    %968 = vmatpush.msra.mxu0 0.0
    %969 = vmatpush.msra.mxu0 0.0
    %970 = vmatpush.msra.mxu0 0.0
    %971 = vmatpush.msra.mxu0 0.0
    %972 = vmatpush.msra.mxu0 0.0
    %973 = vmatpush.msra.mxu0 0.0
    %974 = vmatpush.msra.mxu0 0.0
    %975 = vmatpush.msra.mxu0 0.0
    %976 = vmatpush.msra.mxu0 0.0
    %977 = vmatpush.msra.mxu0 0.0
    %978 = vmatpush.msra.mxu0 0.0
    %979 = vmatpush.msra.mxu0 0.0
    %980 = vmatpush.msra.mxu0 0.0
    %981 = vmatpush.msra.mxu0 %v958
    %982 = vmatpush.msra.mxu0 %v956
    %983 = vmatmul.f32.gmra.mxu0 %v962
    %v984 = vpop.f32.mrf.mxu0
    %v985 = vadd.f32 0.0, %v984
    %986 = vmatmul.f32.gmra.mxu0 %v965
    %v987 = vpop.f32.mrf.mxu0
    %v988 = vadd.f32 0.0, %v987
    %989 = vdwg.mxu0
    %992 = vrot.lane.b32.xlu0 %v985, 16
    %v993 = vpop.permute.xlu0 %992
    %994 = vrot.lane.b32.xlu0 %v988, 16
    %v995 = vpop.permute.xlu0 %994
    %v998 = vsel %vm206, %v859, %v993
    %v999 = vsel %vm206, %v862, %v995
    %v1000 = vperm.slane %v700, 1
    %1005 = vrot.lane.b32.xlu0 %v691, 32
    %v1006 = vpop.permute.xlu0 %1005
    %1007 = vrot.lane.b32.xlu0 %v693, 32
    %v1008 = vpop.permute.xlu0 %1007
    %1009 = vrot.lane.b32.xlu0 %v695, 32
    %v1010 = vpop.permute.xlu0 %1009
    %1011 = vrot.lane.b32.xlu0 %v697, 32
    %v1012 = vpop.permute.xlu0 %1011
    %v1018 = vsel %vm95, %v998, 0
    %v1021 = vsel %vm95, %v999, 0
    %1023 = vmatpush.msra.mxu0 0.0
    %1024 = vmatpush.msra.mxu0 0.0
    %1025 = vmatpush.msra.mxu0 0.0
    %1026 = vmatpush.msra.mxu0 0.0
    %1027 = vmatpush.msra.mxu0 0.0
    %1028 = vmatpush.msra.mxu0 0.0
    %1029 = vmatpush.msra.mxu0 0.0
    %1030 = vmatpush.msra.mxu0 0.0
    %1031 = vmatpush.msra.mxu0 0.0
    %1032 = vmatpush.msra.mxu0 0.0
    %1033 = vmatpush.msra.mxu0 0.0
    %1034 = vmatpush.msra.mxu0 0.0
    %1035 = vmatpush.msra.mxu0 %v1012
    %1036 = vmatpush.msra.mxu0 %v1010
    %1037 = vmatpush.msra.mxu0 %v1008
    %1038 = vmatpush.msra.mxu0 %v1006
    %1039 = vmatmul.f32.gmra.mxu0 %v1018
    %v1040 = vpop.f32.mrf.mxu0
    %v1041 = vadd.f32 %v1000, %v1040
    %1042 = vmatmul.f32.gmra.mxu0 %v1021
    %v1043 = vpop.f32.mrf.mxu0
    %v1044 = vadd.f32 %v1000, %v1043
    %1045 = vdwg.mxu0
    %v1046 = vadd.f32 %v1041, %v688
    %v1047 = vadd.f32 %v1044, %v689
    %v1048 = vsel %vm95, %v1046, 0.0
    %1049 = vadd.xlane.f32.xlu0 %v1048
    %v1050 = vpop.xlane.xlu0 %1049
    %v1051 = vsel %vm95, %v1047, 0.0
    %1052 = vadd.xlane.f32.xlu0 %v1051
    %v1053 = vpop.xlane.xlu0 %1052
    %v1054 = vmul.f32 %v1050, %v108
    %v1055 = vmul.f32 %v1053, %v108
    %v1056 = vsub.f32 %v1046, %v1054
    %v1057 = vsub.f32 %v1047, %v1055
    %v1058 = vmul.f32 %v1056, %v1056
    %v1059 = vmul.f32 %v1057, %v1057
    %v1060 = vsel %vm95, %v1058, 0.0
    %1061 = vadd.xlane.f32.xlu0 %v1060
    %v1062 = vpop.xlane.xlu0 %1061
    %v1063 = vsel %vm95, %v1059, 0.0
    %1064 = vadd.xlane.f32.xlu0 %v1063
    %v1065 = vpop.xlane.xlu0 %1064
    %v1066 = vmul.f32 %v1062, %v108
    %v1067 = vmul.f32 %v1065, %v108
    %v1068 = vadd.f32 %v1066, 1e-12
    %v1069 = vadd.f32 %v1067, 1e-12
    %v1070 = vrsqrt.pop %v1068
    %v1071 = vmul.f32 %v1070, %v1068
    %v1072 = vmul.f32 %v1071, %v1070
    %v1073 = vmul.f32 0.5, %v1072
    %v1074 = vsub.f32 1.5, %v1073
    %v1075 = vmul.f32 %v1070, %v1074
    %vm1076 = vweird.f32 %v1068
    %vm1077 = vweird.f32 %v1070
    %vm1078 = vmor %vm1076, %vm1077
    %v1079 = vsel %vm1078, %v1070, %v1075
    %v1080 = vrsqrt.pop %v1069
    %v1081 = vmul.f32 %v1080, %v1069
    %v1082 = vmul.f32 %v1081, %v1080
    %v1083 = vmul.f32 0.5, %v1082
    %v1084 = vsub.f32 1.5, %v1083
    %v1085 = vmul.f32 %v1080, %v1084
    %vm1086 = vweird.f32 %v1069
    %vm1087 = vweird.f32 %v1080
    %vm1088 = vmor %vm1086, %vm1087
    %v1089 = vsel %vm1088, %v1080, %v1085
    %v1090 = vmul.f32 %v1056, %v1079
    %v1091 = vmul.f32 %v1057, %v1089
    %v1092 = vperm.slane %v700, 2
    %v1093 = vmul.f32 %v1090, %v1092
    %v1094 = vmul.f32 %v1091, %v1092
    %v1095 = vperm.slane %v700, 3
    %v1096 = vadd.f32 %v1093, %v1095
    %v1097 = vadd.f32 %v1094, %v1095
    %v1098 = vperm.slane %v700, 4
    %v1100 = vsel %vm95, %v1096, 0
    %v1103 = vsel %vm95, %v1097, 0
    %1105 = vmatpush.msra.mxu0 0.0
    %1106 = vmatpush.msra.mxu0 0.0
    %1107 = vmatpush.msra.mxu0 0.0
    %1108 = vmatpush.msra.mxu0 0.0
    %1109 = vmatpush.msra.mxu0 0.0
    %1110 = vmatpush.msra.mxu0 0.0
    %1111 = vmatpush.msra.mxu0 0.0
    %1112 = vmatpush.msra.mxu0 0.0
    %1113 = vmatpush.msra.mxu0 0.0
    %1114 = vmatpush.msra.mxu0 0.0
    %1115 = vmatpush.msra.mxu0 0.0
    %1116 = vmatpush.msra.mxu0 0.0
    %1117 = vmatpush.msra.mxu0 %v698
    %1118 = vmatpush.msra.mxu0 %v696
    %1119 = vmatpush.msra.mxu0 %v694
    %1120 = vmatpush.msra.mxu0 %v692
    %1121 = vmatmul.f32.gmra.mxu0 %v1100
    %v1122 = vpop.f32.mrf.mxu0
    %v1123 = vadd.f32 %v1098, %v1122
    %1124 = vmatmul.f32.gmra.mxu0 %v1103
    %v1125 = vpop.f32.mrf.mxu0
    %v1126 = vadd.f32 %v1098, %v1125
    %1127 = vdwg.mxu0
    %v1128 = vmul.f32 %v1123, %v1123
    %v1129 = vmul.f32 %v1126, %v1126
    %v1130 = vmul.f32 %v1123, %v1128
    %v1131 = vmul.f32 %v1126, %v1129
    %v1132 = vmul.f32 %v1130, 0.044715
    %v1133 = vmul.f32 %v1131, 0.044715
    %v1134 = vadd.f32 %v1123, %v1132
    %v1135 = vadd.f32 %v1126, %v1133
    %v1136 = vmul.f32 %v1134, 0.7978846
    %v1137 = vmul.f32 %v1135, 0.7978846
    %v1138 = vtanh.pop %v1136
    %v1139 = vtanh.pop %v1137
    %v1140 = vadd.f32 %v1138, 1.0
    %v1141 = vadd.f32 %v1139, 1.0
    %v1142 = vmul.f32 %v1140, 0.5
    %v1143 = vmul.f32 %v1141, 0.5
    %v1144 = vmul.f32 %v1123, %v1142
    %v1145 = vmul.f32 %v1126, %v1143
    %v1146 = vperm.slane %v700, 5
    %v1148 = vsel %vm608, %v1144, 0
    %v1151 = vsel %vm608, %v1145, 0
    %1153 = vmatpush.msra.mxu0 0.0
    %1154 = vmatpush.msra.mxu0 0.0
    %1155 = vmatpush.msra.mxu0 0.0
    %1156 = vmatpush.msra.mxu0 0.0
    %1157 = vmatpush.msra.mxu0 0.0
    %1158 = vmatpush.msra.mxu0 0.0
    %1159 = vmatpush.msra.mxu0 0.0
    %1160 = vmatpush.msra.mxu0 0.0
    %1161 = vmatpush.msra.mxu0 %v709
    %1162 = vmatpush.msra.mxu0 %v708
    %1163 = vmatpush.msra.mxu0 %v707
    %1164 = vmatpush.msra.mxu0 %v706
    %1165 = vmatpush.msra.mxu0 %v705
    %1166 = vmatpush.msra.mxu0 %v704
    %1167 = vmatpush.msra.mxu0 %v703
    %1168 = vmatpush.msra.mxu0 %v702
    %1169 = vmatmul.f32.gmra.mxu0 %v1148
    %v1170 = vpop.f32.mrf.mxu0
    %v1171 = vadd.f32 %v1146, %v1170
    %1172 = vmatmul.f32.gmra.mxu0 %v1151
    %v1173 = vpop.f32.mrf.mxu0
    %v1174 = vadd.f32 %v1146, %v1173
    %1175 = vdwg.mxu0
    %v1176 = vadd.f32 %v1171, %v1096
    %v1177 = vadd.f32 %v1174, %v1097
    %v1178 = vsel %vm95, %v1176, 0.0
    %1179 = vadd.xlane.f32.xlu0 %v1178
    %v1180 = vpop.xlane.xlu0 %1179
    %v1181 = vsel %vm95, %v1177, 0.0
    %1182 = vadd.xlane.f32.xlu0 %v1181
    %v1183 = vpop.xlane.xlu0 %1182
    %v1184 = vmul.f32 %v1180, %v108
    %v1185 = vmul.f32 %v1183, %v108
    %v1186 = vsub.f32 %v1176, %v1184
    %v1187 = vsub.f32 %v1177, %v1185
    %v1188 = vmul.f32 %v1186, %v1186
    %v1189 = vmul.f32 %v1187, %v1187
    %v1190 = vsel %vm95, %v1188, 0.0
    %1191 = vadd.xlane.f32.xlu0 %v1190
    %v1192 = vpop.xlane.xlu0 %1191
    %v1193 = vsel %vm95, %v1189, 0.0
    %1194 = vadd.xlane.f32.xlu0 %v1193
    %v1195 = vpop.xlane.xlu0 %1194
    %v1196 = vmul.f32 %v1192, %v108
    %v1197 = vmul.f32 %v1195, %v108
    %v1198 = vadd.f32 %v1196, 1e-12
    %v1199 = vadd.f32 %v1197, 1e-12
    %v1200 = vrsqrt.pop %v1198
    %v1201 = vmul.f32 %v1200, %v1198
    %v1202 = vmul.f32 %v1201, %v1200
    %v1203 = vmul.f32 0.5, %v1202
    %v1204 = vsub.f32 1.5, %v1203
    %v1205 = vmul.f32 %v1200, %v1204
    %vm1206 = vweird.f32 %v1198
    %vm1207 = vweird.f32 %v1200
    %vm1208 = vmor %vm1206, %vm1207
    %v1209 = vsel %vm1208, %v1200, %v1205
    %v1210 = vrsqrt.pop %v1199
    %v1211 = vmul.f32 %v1210, %v1199
    %v1212 = vmul.f32 %v1211, %v1210
    %v1213 = vmul.f32 0.5, %v1212
    %v1214 = vsub.f32 1.5, %v1213
    %v1215 = vmul.f32 %v1210, %v1214
    %vm1216 = vweird.f32 %v1199
    %vm1217 = vweird.f32 %v1210
    %vm1218 = vmor %vm1216, %vm1217
    %v1219 = vsel %vm1218, %v1210, %v1215
    %v1220 = vmul.f32 %v1186, %v1209
    %v1221 = vmul.f32 %v1187, %v1219
    %v1222 = vperm.slane %v700, 6
    %v1223 = vmul.f32 %v1220, %v1222
    %v1224 = vmul.f32 %v1221, %v1222
    %v1225 = vperm.slane %v700, 7
    %v1226 = vadd.f32 %v1223, %v1225
    %v1227 = vadd.f32 %v1224, %v1225
    %v1228 = vld [vmem:[%s7] sm:$0xff]
    %v1229 = vld [vmem:[%s7 + $0x8] sm:$0xff]
    %v1230 = vld [vmem:[%s7 + $0x10] sm:$0xff]
    %v1231 = vld [vmem:[%s7 + $0x18] sm:$0xff]
    %v1232 = vld [vmem:[%s7 + $0x20] sm:$0xff]
    %v1233 = vperm.slane %v1232, 0
    %v1235 = vsel %vm95, %v1226, 0
    %v1238 = vsel %vm95, %v1227, 0
    %1240 = vmatpush.msra.mxu0 0.0
    %1241 = vmatpush.msra.mxu0 0.0
    %1242 = vmatpush.msra.mxu0 0.0
    %1243 = vmatpush.msra.mxu0 0.0
    %1244 = vmatpush.msra.mxu0 0.0
    %1245 = vmatpush.msra.mxu0 0.0
    %1246 = vmatpush.msra.mxu0 0.0
    %1247 = vmatpush.msra.mxu0 0.0
    %1248 = vmatpush.msra.mxu0 0.0
    %1249 = vmatpush.msra.mxu0 0.0
    %1250 = vmatpush.msra.mxu0 0.0
    %1251 = vmatpush.msra.mxu0 0.0
    %1252 = vmatpush.msra.mxu0 %v1231
    %1253 = vmatpush.msra.mxu0 %v1230
    %1254 = vmatpush.msra.mxu0 %v1229
    %1255 = vmatpush.msra.mxu0 %v1228
    %1256 = vmatmul.f32.gmra.mxu0 %v1235
    %v1257 = vpop.f32.mrf.mxu0
    %v1258 = vadd.f32 %v1233, %v1257
    %1259 = vmatmul.f32.gmra.mxu0 %v1238
    %v1260 = vpop.f32.mrf.mxu0
    %v1261 = vadd.f32 %v1233, %v1260
    %1262 = vdwg.mxu0
    %v1263 = vperm.slane %v1232, 1
    %v1264 = vadd.f32 %v1263, %v1258
    %1266 = vset.pattern.permute.xlu0 0
    %1267 = vperm.xlu0 %1266, %v1264
    %v1268 = vpop.permute.xlu0 %1267
    %v1270 = vperm.slane %v1232, 3
    %v1271 = vadd.f32 %v1268, %v1270
    %1272 = vset.pattern.permute.xlu0 1
    %1273 = vperm.xlu0 %1272, %v1264
    %v1274 = vpop.permute.xlu0 %1273
    %v1276 = vperm.slane %v1232, 4
    %v1277 = vadd.f32 %v1274, %v1276
    %vm1278 = vcmp.gt.f32.partialorder %v1277, %v1271
    %v1279 = vsel %vm1278, %v1277, %v1271
    %v1280 = vsel %vm1278, 1, 0
    %1281 = vset.pattern.permute.xlu0 2
    %1282 = vperm.xlu0 %1281, %v1264
    %v1283 = vpop.permute.xlu0 %1282
    %v1285 = vperm.slane %v1232, 5
    %v1286 = vadd.f32 %v1283, %v1285
    %vm1287 = vcmp.gt.f32.partialorder %v1286, %v1279
    %v1288 = vsel %vm1287, %v1286, %v1279
    %v1289 = vsel %vm1287, 2, %v1280
    %1290 = vset.pattern.permute.xlu0 3
    %1291 = vperm.xlu0 %1290, %v1264
    %v1292 = vpop.permute.xlu0 %1291
    %v1294 = vperm.slane %v1232, 6
    %v1295 = vadd.f32 %v1292, %v1294
    %vm1296 = vcmp.gt.f32.partialorder %v1295, %v1288
    %v1297 = vsel %vm1296, %v1295, %v1288
    %v1298 = vsel %vm1296, 3, %v1289
    %1299 = vset.pattern.permute.xlu0 4
    %1300 = vperm.xlu0 %1299, %v1264
    %v1301 = vpop.permute.xlu0 %1300
    %v1303 = vperm.slane %v1232, 7
    %v1304 = vadd.f32 %v1301, %v1303
    %vm1305 = vcmp.gt.f32.partialorder %v1304, %v1297
    %v1306 = vsel %vm1305, %v1304, %v1297
    %v1307 = vsel %vm1305, 4, %v1298
    %vm1308 = vcmp.gt.f32.partialorder %v30, 0.5
    %v1310 = vrot.slane %v1258, 2
    %v1312 = vadd.f32 %v1306, %v1310
    %v1313 = vsel %vm1308, 1, 0
    %1314 = vset.pattern.permute.xlu0 1
    %1315 = vperm.xlu0 %1314, %v1313
    %v1316 = vpop.permute.xlu0 %1315
    %vm1317 = vcmp.eq.s32.totalorder %v1316, 1
    %v1318 = vsel %vm1317, %v1312, %v1264
    %1320 = vset.pattern.permute.xlu0 0
    %1321 = vperm.xlu0 %1320, %v1318
    %v1322 = vpop.permute.xlu0 %1321
    %v1324 = vadd.f32 %v1322, %v1270
    %1325 = vset.pattern.permute.xlu0 1
    %1326 = vperm.xlu0 %1325, %v1318
    %v1327 = vpop.permute.xlu0 %1326
    %v1329 = vadd.f32 %v1327, %v1276
    %vm1330 = vcmp.gt.f32.partialorder %v1329, %v1324
    %v1331 = vsel %vm1330, %v1329, %v1324
    %v1332 = vsel %vm1330, 1, 0
    %1333 = vset.pattern.permute.xlu0 2
    %1334 = vperm.xlu0 %1333, %v1318
    %v1335 = vpop.permute.xlu0 %1334
    %v1337 = vadd.f32 %v1335, %v1285
    %vm1338 = vcmp.gt.f32.partialorder %v1337, %v1331
    %v1339 = vsel %vm1338, %v1337, %v1331
    %v1340 = vsel %vm1338, 2, %v1332
    %1341 = vset.pattern.permute.xlu0 3
    %1342 = vperm.xlu0 %1341, %v1318
    %v1343 = vpop.permute.xlu0 %1342
    %v1345 = vadd.f32 %v1343, %v1294
    %vm1346 = vcmp.gt.f32.partialorder %v1345, %v1339
    %v1347 = vsel %vm1346, %v1345, %v1339
    %v1348 = vsel %vm1346, 3, %v1340
    %1349 = vset.pattern.permute.xlu0 4
    %1350 = vperm.xlu0 %1349, %v1318
    %v1351 = vpop.permute.xlu0 %1350
    %v1353 = vadd.f32 %v1351, %v1303
    %vm1354 = vcmp.gt.f32.partialorder %v1353, %v1347
    %v1355 = vsel %vm1354, %v1353, %v1347
    %v1356 = vsel %vm1354, 4, %v1348
    %v1357 = vrot.slane %v1258, 4
    %v1359 = vadd.f32 %v1355, %v1357
    %1360 = vset.pattern.permute.xlu0 2
    %1361 = vperm.xlu0 %1360, %v1313
    %v1362 = vpop.permute.xlu0 %1361
    %vm1363 = vcmp.eq.s32.totalorder %v1362, 1
    %v1364 = vsel %vm1363, %v1359, %v1318
    %1366 = vset.pattern.permute.xlu0 0
    %1367 = vperm.xlu0 %1366, %v1364
    %v1368 = vpop.permute.xlu0 %1367
    %v1370 = vadd.f32 %v1368, %v1270
    %1371 = vset.pattern.permute.xlu0 1
    %1372 = vperm.xlu0 %1371, %v1364
    %v1373 = vpop.permute.xlu0 %1372
    %v1375 = vadd.f32 %v1373, %v1276
    %vm1376 = vcmp.gt.f32.partialorder %v1375, %v1370
    %v1377 = vsel %vm1376, %v1375, %v1370
    %v1378 = vsel %vm1376, 1, 0
    %1379 = vset.pattern.permute.xlu0 2
    %1380 = vperm.xlu0 %1379, %v1364
    %v1381 = vpop.permute.xlu0 %1380
    %v1383 = vadd.f32 %v1381, %v1285
    %vm1384 = vcmp.gt.f32.partialorder %v1383, %v1377
    %v1385 = vsel %vm1384, %v1383, %v1377
    %v1386 = vsel %vm1384, 2, %v1378
    %1387 = vset.pattern.permute.xlu0 3
    %1388 = vperm.xlu0 %1387, %v1364
    %v1389 = vpop.permute.xlu0 %1388
    %v1391 = vadd.f32 %v1389, %v1294
    %vm1392 = vcmp.gt.f32.partialorder %v1391, %v1385
    %v1393 = vsel %vm1392, %v1391, %v1385
    %v1394 = vsel %vm1392, 3, %v1386
    %1395 = vset.pattern.permute.xlu0 4
    %1396 = vperm.xlu0 %1395, %v1364
    %v1397 = vpop.permute.xlu0 %1396
    %v1399 = vadd.f32 %v1397, %v1303
    %vm1400 = vcmp.gt.f32.partialorder %v1399, %v1393
    %v1401 = vsel %vm1400, %v1399, %v1393
    %v1402 = vsel %vm1400, 4, %v1394
    %v1403 = vrot.slane %v1258, 6
    %v1405 = vadd.f32 %v1401, %v1403
    %1406 = vset.pattern.permute.xlu0 3
    %1407 = vperm.xlu0 %1406, %v1313
    %v1408 = vpop.permute.xlu0 %1407
    %vm1409 = vcmp.eq.s32.totalorder %v1408, 1
    %v1410 = vsel %vm1409, %v1405, %v1364
    %1412 = vset.pattern.permute.xlu0 0
    %1413 = vperm.xlu0 %1412, %v1410
    %v1414 = vpop.permute.xlu0 %1413
    %v1416 = vadd.f32 %v1414, %v1270
    %1417 = vset.pattern.permute.xlu0 1
    %1418 = vperm.xlu0 %1417, %v1410
    %v1419 = vpop.permute.xlu0 %1418
    %v1421 = vadd.f32 %v1419, %v1276
    %vm1422 = vcmp.gt.f32.partialorder %v1421, %v1416
    %v1423 = vsel %vm1422, %v1421, %v1416
    %v1424 = vsel %vm1422, 1, 0
    %1425 = vset.pattern.permute.xlu0 2
    %1426 = vperm.xlu0 %1425, %v1410
    %v1427 = vpop.permute.xlu0 %1426
    %v1429 = vadd.f32 %v1427, %v1285
    %vm1430 = vcmp.gt.f32.partialorder %v1429, %v1423
    %v1431 = vsel %vm1430, %v1429, %v1423
    %v1432 = vsel %vm1430, 2, %v1424
    %1433 = vset.pattern.permute.xlu0 3
    %1434 = vperm.xlu0 %1433, %v1410
    %v1435 = vpop.permute.xlu0 %1434
    %v1437 = vadd.f32 %v1435, %v1294
    %vm1438 = vcmp.gt.f32.partialorder %v1437, %v1431
    %v1439 = vsel %vm1438, %v1437, %v1431
    %v1440 = vsel %vm1438, 3, %v1432
    %1441 = vset.pattern.permute.xlu0 4
    %1442 = vperm.xlu0 %1441, %v1410
    %v1443 = vpop.permute.xlu0 %1442
    %v1445 = vadd.f32 %v1443, %v1303
    %vm1446 = vcmp.gt.f32.partialorder %v1445, %v1439
    %v1447 = vsel %vm1446, %v1445, %v1439
    %v1448 = vsel %vm1446, 4, %v1440
    %v1449 = vadd.f32 %v1447, %v1261
    %1450 = vset.pattern.permute.xlu0 4
    %1451 = vperm.xlu0 %1450, %v1313
    %v1452 = vpop.permute.xlu0 %1451
    %vm1453 = vcmp.eq.s32.totalorder %v1452, 1
    %v1454 = vsel %vm1453, %v1449, %v1410
    %1456 = vset.pattern.permute.xlu0 0
    %1457 = vperm.xlu0 %1456, %v1454
    %v1458 = vpop.permute.xlu0 %1457
    %v1460 = vadd.f32 %v1458, %v1270
    %1461 = vset.pattern.permute.xlu0 1
    %1462 = vperm.xlu0 %1461, %v1454
    %v1463 = vpop.permute.xlu0 %1462
    %v1465 = vadd.f32 %v1463, %v1276
    %vm1466 = vcmp.gt.f32.partialorder %v1465, %v1460
    %v1467 = vsel %vm1466, %v1465, %v1460
    %v1468 = vsel %vm1466, 1, 0
    %1469 = vset.pattern.permute.xlu0 2
    %1470 = vperm.xlu0 %1469, %v1454
    %v1471 = vpop.permute.xlu0 %1470
    %v1473 = vadd.f32 %v1471, %v1285
    %vm1474 = vcmp.gt.f32.partialorder %v1473, %v1467
    %v1475 = vsel %vm1474, %v1473, %v1467
    %v1476 = vsel %vm1474, 2, %v1468
    %1477 = vset.pattern.permute.xlu0 3
    %1478 = vperm.xlu0 %1477, %v1454
    %v1479 = vpop.permute.xlu0 %1478
    %v1481 = vadd.f32 %v1479, %v1294
    %vm1482 = vcmp.gt.f32.partialorder %v1481, %v1475
    %v1483 = vsel %vm1482, %v1481, %v1475
    %v1484 = vsel %vm1482, 3, %v1476
    %1485 = vset.pattern.permute.xlu0 4
    %1486 = vperm.xlu0 %1485, %v1454
    %v1487 = vpop.permute.xlu0 %1486
    %v1489 = vadd.f32 %v1487, %v1303
    %vm1490 = vcmp.gt.f32.partialorder %v1489, %v1483
    %v1491 = vsel %vm1490, %v1489, %v1483
    %v1492 = vsel %vm1490, 4, %v1484
    %v1494 = vrot.slane %v1261, 2
    %v1496 = vadd.f32 %v1491, %v1494
    %1497 = vset.pattern.permute.xlu0 5
    %1498 = vperm.xlu0 %1497, %v1313
    %v1499 = vpop.permute.xlu0 %1498
    %vm1500 = vcmp.eq.s32.totalorder %v1499, 1
    %v1501 = vsel %vm1500, %v1496, %v1454
    %1503 = vset.pattern.permute.xlu0 0
    %1504 = vperm.xlu0 %1503, %v1501
    %v1505 = vpop.permute.xlu0 %1504
    %v1507 = vadd.f32 %v1505, %v1270
    %1508 = vset.pattern.permute.xlu0 1
    %1509 = vperm.xlu0 %1508, %v1501
    %v1510 = vpop.permute.xlu0 %1509
    %v1512 = vadd.f32 %v1510, %v1276
    %vm1513 = vcmp.gt.f32.partialorder %v1512, %v1507
    %v1514 = vsel %vm1513, %v1512, %v1507
    %v1515 = vsel %vm1513, 1, 0
    %1516 = vset.pattern.permute.xlu0 2
    %1517 = vperm.xlu0 %1516, %v1501
    %v1518 = vpop.permute.xlu0 %1517
    %v1520 = vadd.f32 %v1518, %v1285
    %vm1521 = vcmp.gt.f32.partialorder %v1520, %v1514
    %v1522 = vsel %vm1521, %v1520, %v1514
    %v1523 = vsel %vm1521, 2, %v1515
    %1524 = vset.pattern.permute.xlu0 3
    %1525 = vperm.xlu0 %1524, %v1501
    %v1526 = vpop.permute.xlu0 %1525
    %v1528 = vadd.f32 %v1526, %v1294
    %vm1529 = vcmp.gt.f32.partialorder %v1528, %v1522
    %v1530 = vsel %vm1529, %v1528, %v1522
    %v1531 = vsel %vm1529, 3, %v1523
    %1532 = vset.pattern.permute.xlu0 4
    %1533 = vperm.xlu0 %1532, %v1501
    %v1534 = vpop.permute.xlu0 %1533
    %v1536 = vadd.f32 %v1534, %v1303
    %vm1537 = vcmp.gt.f32.partialorder %v1536, %v1530
    %v1538 = vsel %vm1537, %v1536, %v1530
    %v1539 = vsel %vm1537, 4, %v1531
    %v1540 = vrot.slane %v1261, 4
    %v1542 = vadd.f32 %v1538, %v1540
    %1543 = vset.pattern.permute.xlu0 6
    %1544 = vperm.xlu0 %1543, %v1313
    %v1545 = vpop.permute.xlu0 %1544
    %vm1546 = vcmp.eq.s32.totalorder %v1545, 1
    %v1547 = vsel %vm1546, %v1542, %v1501
    %1549 = vset.pattern.permute.xlu0 0
    %1550 = vperm.xlu0 %1549, %v1547
    %v1551 = vpop.permute.xlu0 %1550
    %v1553 = vadd.f32 %v1551, %v1270
    %1554 = vset.pattern.permute.xlu0 1
    %1555 = vperm.xlu0 %1554, %v1547
    %v1556 = vpop.permute.xlu0 %1555
    %v1558 = vadd.f32 %v1556, %v1276
    %vm1559 = vcmp.gt.f32.partialorder %v1558, %v1553
    %v1560 = vsel %vm1559, %v1558, %v1553
    %v1561 = vsel %vm1559, 1, 0
    %1562 = vset.pattern.permute.xlu0 2
    %1563 = vperm.xlu0 %1562, %v1547
    %v1564 = vpop.permute.xlu0 %1563
    %v1566 = vadd.f32 %v1564, %v1285
    %vm1567 = vcmp.gt.f32.partialorder %v1566, %v1560
    %v1568 = vsel %vm1567, %v1566, %v1560
    %v1569 = vsel %vm1567, 2, %v1561
    %1570 = vset.pattern.permute.xlu0 3
    %1571 = vperm.xlu0 %1570, %v1547
    %v1572 = vpop.permute.xlu0 %1571
    %v1574 = vadd.f32 %v1572, %v1294
    %vm1575 = vcmp.gt.f32.partialorder %v1574, %v1568
    %v1576 = vsel %vm1575, %v1574, %v1568
    %v1577 = vsel %vm1575, 3, %v1569
    %1578 = vset.pattern.permute.xlu0 4
    %1579 = vperm.xlu0 %1578, %v1547
    %v1580 = vpop.permute.xlu0 %1579
    %v1582 = vadd.f32 %v1580, %v1303
    %vm1583 = vcmp.gt.f32.partialorder %v1582, %v1576
    %v1584 = vsel %vm1583, %v1582, %v1576
    %v1585 = vsel %vm1583, 4, %v1577
    %v1586 = vrot.slane %v1261, 6
    %v1588 = vadd.f32 %v1584, %v1586
    %1589 = vset.pattern.permute.xlu0 7
    %1590 = vperm.xlu0 %1589, %v1313
    %v1591 = vpop.permute.xlu0 %1590
    %vm1592 = vcmp.eq.s32.totalorder %v1591, 1
    %v1593 = vsel %vm1592, %v1588, %v1547
    %v1594 = vperm.slane %v1232, 2
    %v1595 = vadd.f32 %v1593, %v1594
    %vm1596 = vcmask 33792
    %v1597 = vsel %vm1596, %v1595, -inf
    %1598 = vmax.xlane.f32.xlu0 %v1597
    %v1599 = vpop.xlane.xlu0 %1598
    %vm1600 = vcmp.eq.f32.partialorder %v1595, %v1599
    %v1601 = vsel %vm1600, %v52, 5
    %v1602 = vsel %vm1596, %v1601, 2147483647
    %v1603 = vand.u32 %v1602, 65535
    %v1604 = vshra.s32 %v1602, 16
    %v1605 = vcvt.s32.f32 %v1603
    %v1606 = vcvt.s32.f32 %v1604
    %1607 = vmin.xlane.f32.xlu0 %v1606
    %v1608 = vpop.xlane.xlu0 %1607
    %vm1609 = vcmp.eq.f32.partialorder %v1606, %v1608
    %v1610 = vsel %vm1609, %v1605, inf
    %1611 = vmin.xlane.f32.xlu0 %v1610
    %v1612 = vpop.xlane.xlu0 %1611
    %v1613 = vcvt.f32.s32 %v1612
    %v1614 = vcvt.f32.s32 %v1608
    %v1615 = vshll.u32 %v1614, 16
    %v1616 = vadd.s32 %v1615, %v1613
    %vm1617 = vcmp.le.f32.partialorder 0.0, 0.5
    %vm1618 = vmand %vm1308, %vm1617
    %vm1619 = vcmp.gt.f32.partialorder 0.0, 0.5
    %vm1620 = vmand %vm1308, %vm1619
    %v1621 = vsel %vm1620, %v1616, 4294967295
    %v1622 = vsel %vm1618, %v1616, %v1621
    %v1623 = vsel %vm1308, %v1622, 0
    %1624 = vset.pattern.permute.xlu0 7
    %1625 = vperm.xlu0 %1624, %v1623
    %v1626 = vpop.permute.xlu0 %1625
    %vm1627 = vcmp.eq.s32.totalorder %v52, %v1626
    %v1628 = vsel %vm1627, %v1585, 0
    %v1629 = vsel %vm1596, %v1628, 0
    %v1630 = vand.u32 %v1629, 65535
    %v1631 = vshrl.u32 %v1629, 16
    %v1632 = vcvt.s32.f32 %v1630
    %v1633 = vcvt.s32.f32 %v1631
    %1634 = vadd.xlane.f32.xlu0 %v1632
    %v1635 = vpop.xlane.xlu0 %1634
    %1636 = vadd.xlane.f32.xlu0 %v1633
    %v1637 = vpop.xlane.xlu0 %1636
    %v1638 = vcvt.f32.s32 %v1635
    %v1639 = vcvt.f32.s32 %v1637
    %v1640 = vshll.u32 %v1639, 16
    %v1641 = vadd.s32 %v1640, %v1638
    %vm1642 = vcmp.le.f32.partialorder %v30, 0.5
    %v1643 = vsel %vm1642, 1, 0
    %1644 = vrot.lane.b32.xlu0 %v1643, 127
    %v1645 = vpop.permute.xlu0 %1644
    %vm1646 = vcmp.ne.s32.totalorder %v1645, 0
    %vm1647 = vmand %vm1308, %vm1646
    %1648 = vrot.lane.b32.xlu0 %v1313, 127
    %v1649 = vpop.permute.xlu0 %1648
    %vm1650 = vcmp.ne.s32.totalorder %v1649, 0
    %vm1651 = vmand %vm1308, %vm1650
    %v1652 = vsel %vm1651, %v1641, 4294967295
    %v1653 = vsel %vm1647, %v1616, %v1652
    %1654 = vrot.lane.b32.xlu0 %v1623, 127
    %v1655 = vpop.permute.xlu0 %1654
    %v1656 = vsel %vm1308, %v1653, %v1655
    %1657 = vset.pattern.permute.xlu0 6
    %1658 = vperm.xlu0 %1657, %v1656
    %v1659 = vpop.permute.xlu0 %1658
    %vm1660 = vcmp.eq.s32.totalorder %v52, %v1659
    %v1661 = vsel %vm1660, %v1539, 0
    %v1662 = vsel %vm1596, %v1661, 0
    %v1663 = vand.u32 %v1662, 65535
    %v1664 = vshrl.u32 %v1662, 16
    %v1665 = vcvt.s32.f32 %v1663
    %v1666 = vcvt.s32.f32 %v1664
    %1667 = vadd.xlane.f32.xlu0 %v1665
    %v1668 = vpop.xlane.xlu0 %1667
    %1669 = vadd.xlane.f32.xlu0 %v1666
    %v1670 = vpop.xlane.xlu0 %1669
    %v1671 = vcvt.f32.s32 %v1668
    %v1672 = vcvt.f32.s32 %v1670
    %v1673 = vshll.u32 %v1672, 16
    %v1674 = vadd.s32 %v1673, %v1671
    %v1675 = vsel %vm1651, %v1674, 4294967295
    %v1676 = vsel %vm1647, %v1616, %v1675
    %1677 = vrot.lane.b32.xlu0 %v1656, 127
    %v1678 = vpop.permute.xlu0 %1677
    %v1679 = vsel %vm1308, %v1676, %v1678
    %1680 = vset.pattern.permute.xlu0 5
    %1681 = vperm.xlu0 %1680, %v1679
    %v1682 = vpop.permute.xlu0 %1681
    %vm1683 = vcmp.eq.s32.totalorder %v52, %v1682
    %v1684 = vsel %vm1683, %v1492, 0
    %v1685 = vsel %vm1596, %v1684, 0
    %v1686 = vand.u32 %v1685, 65535
    %v1687 = vshrl.u32 %v1685, 16
    %v1688 = vcvt.s32.f32 %v1686
    %v1689 = vcvt.s32.f32 %v1687
    %1690 = vadd.xlane.f32.xlu0 %v1688
    %v1691 = vpop.xlane.xlu0 %1690
    %1692 = vadd.xlane.f32.xlu0 %v1689
    %v1693 = vpop.xlane.xlu0 %1692
    %v1694 = vcvt.f32.s32 %v1691
    %v1695 = vcvt.f32.s32 %v1693
    %v1696 = vshll.u32 %v1695, 16
    %v1697 = vadd.s32 %v1696, %v1694
    %v1698 = vsel %vm1651, %v1697, 4294967295
    %v1699 = vsel %vm1647, %v1616, %v1698
    %1700 = vrot.lane.b32.xlu0 %v1679, 127
    %v1701 = vpop.permute.xlu0 %1700
    %v1702 = vsel %vm1308, %v1699, %v1701
    %1703 = vset.pattern.permute.xlu0 4
    %1704 = vperm.xlu0 %1703, %v1702
    %v1705 = vpop.permute.xlu0 %1704
    %vm1706 = vcmp.eq.s32.totalorder %v52, %v1705
    %v1707 = vsel %vm1706, %v1448, 0
    %v1708 = vsel %vm1596, %v1707, 0
    %v1709 = vand.u32 %v1708, 65535
    %v1710 = vshrl.u32 %v1708, 16
    %v1711 = vcvt.s32.f32 %v1709
    %v1712 = vcvt.s32.f32 %v1710
    %1713 = vadd.xlane.f32.xlu0 %v1711
    %v1714 = vpop.xlane.xlu0 %1713
    %1715 = vadd.xlane.f32.xlu0 %v1712
    %v1716 = vpop.xlane.xlu0 %1715
    %v1717 = vcvt.f32.s32 %v1714
    %v1718 = vcvt.f32.s32 %v1716
    %v1719 = vshll.u32 %v1718, 16
    %v1720 = vadd.s32 %v1719, %v1717
    %v1721 = vsel %vm1651, %v1720, 4294967295
    %v1722 = vsel %vm1647, %v1616, %v1721
    %1723 = vrot.lane.b32.xlu0 %v1702, 127
    %v1724 = vpop.permute.xlu0 %1723
    %v1725 = vsel %vm1308, %v1722, %v1724
    %1726 = vset.pattern.permute.xlu0 3
    %1727 = vperm.xlu0 %1726, %v1725
    %v1728 = vpop.permute.xlu0 %1727
    %vm1729 = vcmp.eq.s32.totalorder %v52, %v1728
    %v1730 = vsel %vm1729, %v1402, 0
    %v1731 = vsel %vm1596, %v1730, 0
    %v1732 = vand.u32 %v1731, 65535
    %v1733 = vshrl.u32 %v1731, 16
    %v1734 = vcvt.s32.f32 %v1732
    %v1735 = vcvt.s32.f32 %v1733
    %1736 = vadd.xlane.f32.xlu0 %v1734
    %v1737 = vpop.xlane.xlu0 %1736
    %1738 = vadd.xlane.f32.xlu0 %v1735
    %v1739 = vpop.xlane.xlu0 %1738
    %v1740 = vcvt.f32.s32 %v1737
    %v1741 = vcvt.f32.s32 %v1739
    %v1742 = vshll.u32 %v1741, 16
    %v1743 = vadd.s32 %v1742, %v1740
    %v1744 = vsel %vm1651, %v1743, 4294967295
    %v1745 = vsel %vm1647, %v1616, %v1744
    %1746 = vrot.lane.b32.xlu0 %v1725, 127
    %v1747 = vpop.permute.xlu0 %1746
    %v1748 = vsel %vm1308, %v1745, %v1747
    %1749 = vset.pattern.permute.xlu0 2
    %1750 = vperm.xlu0 %1749, %v1748
    %v1751 = vpop.permute.xlu0 %1750
    %vm1752 = vcmp.eq.s32.totalorder %v52, %v1751
    %v1753 = vsel %vm1752, %v1356, 0
    %v1754 = vsel %vm1596, %v1753, 0
    %v1755 = vand.u32 %v1754, 65535
    %v1756 = vshrl.u32 %v1754, 16
    %v1757 = vcvt.s32.f32 %v1755
    %v1758 = vcvt.s32.f32 %v1756
    %1759 = vadd.xlane.f32.xlu0 %v1757
    %v1760 = vpop.xlane.xlu0 %1759
    %1761 = vadd.xlane.f32.xlu0 %v1758
    %v1762 = vpop.xlane.xlu0 %1761
    %v1763 = vcvt.f32.s32 %v1760
    %v1764 = vcvt.f32.s32 %v1762
    %v1765 = vshll.u32 %v1764, 16
    %v1766 = vadd.s32 %v1765, %v1763
    %v1767 = vsel %vm1651, %v1766, 4294967295
    %v1768 = vsel %vm1647, %v1616, %v1767
    %1769 = vrot.lane.b32.xlu0 %v1748, 127
    %v1770 = vpop.permute.xlu0 %1769
    %v1771 = vsel %vm1308, %v1768, %v1770
    %1772 = vset.pattern.permute.xlu0 1
    %1773 = vperm.xlu0 %1772, %v1771
    %v1774 = vpop.permute.xlu0 %1773
    %vm1775 = vcmp.eq.s32.totalorder %v52, %v1774
    %v1776 = vsel %vm1775, %v1307, 0
    %v1777 = vsel %vm1596, %v1776, 0
    %v1778 = vand.u32 %v1777, 65535
    %v1779 = vshrl.u32 %v1777, 16
    %v1780 = vcvt.s32.f32 %v1778
    %v1781 = vcvt.s32.f32 %v1779
    %1782 = vadd.xlane.f32.xlu0 %v1780
    %v1783 = vpop.xlane.xlu0 %1782
    %1784 = vadd.xlane.f32.xlu0 %v1781
    %v1785 = vpop.xlane.xlu0 %1784
    %v1786 = vcvt.f32.s32 %v1783
    %v1787 = vcvt.f32.s32 %v1785
    %v1788 = vshll.u32 %v1787, 16
    %v1789 = vadd.s32 %v1788, %v1786
    %v1790 = vsel %vm1651, %v1789, 4294967295
    %v1791 = vsel %vm1647, %v1616, %v1790
    %vm1792 = vcmask 7168
    %v1793 = vsel %vm1792, %v1791, %v1768
    %vm1794 = vcmask 15360
    %v1795 = vsel %vm1794, %v1793, %v1745
    %vm1796 = vcmask 23552
    %v1797 = vsel %vm1796, %v1795, %v1722
    %vm1798 = vcmask 31744
    %v1799 = vsel %vm1798, %v1797, %v1699
    %vm1800 = vcmask 39936
    %v1801 = vsel %vm1800, %v1799, %v1676
    %vm1802 = vcmask 48128
    %v1803 = vsel %vm1802, %v1801, %v1653
    %vm1804 = vcmask 56320
    %v1805 = vsel %vm1804, %v1803, %v1622
    %vm1806 = vcmask 58368
    %1807 = vst.msk [vmem:[#allocation2] sm:$0x3] %vm1806, %v1805
    // Predicated region
    $region34: #{bertcrf_forward.1} parent=1 // pred_check
      _
    $region35: #{bertcrf_forward.1} parent=1 // pred_check_branch
      %1809 = sbr.rel (0) target = $region37
    $region36: #{bertcrf_forward.1} parent=1 // pred_region
      %1811 = vsyncadd [#allocation3], 0
      %s1813 = sshll.u32 [#allocation2], 4
      %s1814 = int_to_ptr.vmem [resolvable:$true] %s1813
      %s1815 = sshll.u32 %s8, 4
      %s1816 = int_to_ptr.hbm [resolvable:$true] %s1815
      %1818 = dma.vmem_to_hbm [thread:$0]  %s1814, 32, %s1816, [#allocation3]
    $region37: #{bertcrf_forward.1} parent=1 // pred_fallthru
      _
    // Predicated region
    $region38: #{bertcrf_forward.1} parent=1 // pred_check
      _
    $region39: #{bertcrf_forward.1} parent=1 // pred_check_branch
      %1820 = sbr.rel (0) target = $region41
    $region40: #{bertcrf_forward.1} parent=1 // pred_region
      %1822 = dma.done [#allocation3], 32
    $region41: #{bertcrf_forward.1} parent=1 // pred_fallthru
      _
    %1823 = vsyncpa [#allocation3], 1

</llo_original>
